<compile_context>
chip_gen: v7x
topology: tpu7x:2x2x1
jax: 0.10.0
libtpu: 0.0.40
codegen_flags: <defaults>
</compile_context>

<pallas_src>
import math
from functools import partial

import jax
import jax.numpy as jnp
from jax.experimental import pallas as pl
from jax.experimental.pallas import tpu as pltpu


_TRANSCENDENTAL_NLS = ("sine", "sigmoid", "tanh", "selu", "softplus", "elu")


# ----------------------------------------------------------------------------
# Nonlinearities (forward only), matching FCBlock's nls_and_inits table.
# Always evaluated in f32 (v5e VPU/EUP has no bf16 path).
# ----------------------------------------------------------------------------
def _apply_nl(x, name):
    if name == "relu":
        return jnp.maximum(x, 0.0)
    if name == "sine":                      # Sine(): sin(30 * x)
        return jnp.sin(30.0 * x)
    if name == "sigmoid":
        return jax.nn.sigmoid(x)
    if name == "tanh":
        return jnp.tanh(x)
    if name == "selu":
        return jax.nn.selu(x)
    if name == "softplus":
        return jax.nn.softplus(x)
    if name == "elu":
        return jax.nn.elu(x)
    raise ValueError(f"unknown nonlinearity: {name}")


def _round_up(x, m):
    return pl.cdiv(x, m) * m


# ----------------------------------------------------------------------------
# Fused MLP kernel: one grid step pushes a (TM, in_features) row tile through
# ALL layers while it is resident in VMEM / vregs.
# ----------------------------------------------------------------------------
def _fcblock_kernel(*refs, num_linear, nl_name, final_nl):
    x_ref = refs[0]
    o_ref = refs[-1]
    param_refs = refs[1:-1]        # alternating (W, b); W pre-transposed (fan_in, fan_out)

    h = x_ref[...].astype(jnp.float32)
    for l in range(num_linear):    # static unroll (num_linear is small)
        w_ref = param_refs[2 * l]
        b = param_refs[2 * l + 1][...].astype(jnp.float32)
        # Feed the MXU in the stored (bf16) weight dtype; accumulate in f32.
        h = jnp.dot(h.astype(w_ref.dtype), w_ref[...],
                    preferred_element_type=jnp.float32) + b
        if (l < num_linear - 1) or final_nl:
            h = _apply_nl(h, nl_name)                                  # f32 VPU/EUP
    o_ref[...] = h.astype(o_ref.dtype)


# ----------------------------------------------------------------------------
# FCBlock: JAX/Pallas port of the PyTorch module (forward-pass semantics).
# ----------------------------------------------------------------------------
class FCBlock:
    def __init__(self, in_features, out_features, num_hidden_layers,
                 hidden_features, outermost_linear=False, nonlinearity="relu",
                 key=None, weight_dtype=jnp.bfloat16, tile_m=1024):
        # NOTE: for peak MXU utilization pick hidden_features as a multiple of
        # 128 (v5e) / 256 (v6e, v7x); this is a model-config choice.
        self.in_features = in_features
        self.out_features = out_features
        self.hidden_features = hidden_features
        self.num_hidden_layers = num_hidden_layers
        self.nonlinearity = nonlinearity
        self.final_nl = not outermost_linear
        self.tile_m = max(8, (tile_m // 8) * 8)   # TM must be a multiple of 8

        if key is None:
            key = jax.random.PRNGKey(0)
        sizes = ([(in_features, hidden_features)]
                 + [(hidden_features, hidden_features)] * num_hidden_layers
                 + [(hidden_features, out_features)])
        self.params = self._init_params(key, sizes, nonlinearity, weight_dtype)

    # Host-side parameter setup mirroring the PyTorch init table.
    # Weights stored pre-transposed as (fan_in, fan_out); bias as (1, fan_out) f32.
    def _init_params(self, key, sizes, nonlinearity, weight_dtype):
        params = []
        keys = jax.random.split(key, 2 * len(sizes))
        for idx, (fan_in, fan_out) in enumerate(sizes):
            wk, bk = keys[2 * idx], keys[2 * idx + 1]
            bias_bound = 1.0 / math.sqrt(fan_in)     # torch Linear default bias init
            if nonlinearity == "sine":
                # first_layer_sine_init / sine_init
                wb = (1.0 / fan_in) if idx == 0 else (math.sqrt(6.0 / fan_in) / 30.0)
                w = jax.random.uniform(wk, (fan_in, fan_out), jnp.float32, -wb, wb)
            elif nonlinearity == "relu":
                # init_weights_relu: uniform(-1/sqrt(fan_in), 1/sqrt(fan_in)) for W and b
                w = jax.random.uniform(wk, (fan_in, fan_out), jnp.float32,
                                       -bias_bound, bias_bound)
            elif nonlinearity in ("sigmoid", "tanh"):
                # init_weights_xavier (xavier normal)
                std = math.sqrt(2.0 / (fan_in + fan_out))
                w = std * jax.random.normal(wk, (fan_in, fan_out), jnp.float32)
            elif nonlinearity == "selu":
                w = (1.0 / math.sqrt(fan_in)) * jax.random.normal(
                    wk, (fan_in, fan_out), jnp.float32)
            elif nonlinearity == "softplus":
                # init_weights_normal (kaiming normal, relu, fan_in)
                w = math.sqrt(2.0 / fan_in) * jax.random.normal(
                    wk, (fan_in, fan_out), jnp.float32)
            elif nonlinearity == "elu":
                w = (math.sqrt(1.5505188080679277) / math.sqrt(fan_in)) * \
                    jax.random.normal(wk, (fan_in, fan_out), jnp.float32)
            else:
                raise ValueError(f"unknown nonlinearity: {nonlinearity}")
            b = jax.random.uniform(bk, (1, fan_out), jnp.float32,
                                   -bias_bound, bias_bound)
            params.append((w.astype(weight_dtype), b))
        return params

    @property
    def flops(self):
        return ((self.in_features + 1) * self.hidden_features
                + self.num_hidden_layers * (self.hidden_features + 1) * self.hidden_features
                + (self.hidden_features + 1) * self.out_features)

    def _build_pallas_call(self, m, tm, out_dtype, single_buffer_params):
        grid = (pl.cdiv(m, tm),)

        def const_spec(shape):
            # Params never change across the grid; single-buffer them to halve
            # resident-param VMEM.
            if single_buffer_params:
                return pl.BlockSpec(shape, lambda i: (0, 0),
                                    pipeline_mode=pl.Buffered(1))
            return pl.BlockSpec(shape, lambda i: (0, 0))

        in_specs = [pl.BlockSpec((tm, self.in_features), lambda i: (i, 0))]
        for (w, b) in self.params:
            in_specs.append(const_spec(w.shape))
            in_specs.append(const_spec(b.shape))

        kernel = partial(_fcblock_kernel,
                         num_linear=len(self.params),
                         nl_name=self.nonlinearity,
                         final_nl=self.final_nl)

        # VMEM budget: resident params (x2 for the non-single-buffered fallback)
        # + double-buffered in/out tiles + f32 activation staging, with headroom.
        param_bytes = sum(int(w.size) * w.dtype.itemsize + int(b.size) * b.dtype.itemsize
                          for (w, b) in self.params)
        widest = max(self.in_features, self.hidden_features, self.out_features)
        io_tile_bytes = 2 * tm * (self.in_features + self.out_features) * 4
        act_bytes = 3 * tm * widest * 4
        vmem_limit = int(min(max(2 * param_bytes + io_tile_bytes + act_bytes + (4 << 20),
                                 32 << 20),
                             64 << 20))

        # Advisory cost estimate (FLOPs = 2*MACs + bias adds).
        macs = m * (self.in_features * self.hidden_features
                    + self.num_hidden_layers * self.hidden_features * self.hidden_features
                    + self.hidden_features * self.out_features)
        n_acts = m * ((self.num_hidden_layers + 1) * self.hidden_features
                      + (self.out_features if self.final_nl else 0))
        transc = n_acts if self.nonlinearity in _TRANSCENDENTAL_NLS else 0
        cost = pl.CostEstimate(
            flops=int(2 * macs + n_acts),
            transcendentals=int(transc),
            bytes_accessed=int(m * (self.in_features + self.out_features) * 4 + param_bytes))

        return pl.pallas_call(
            kernel,
            out_shape=jax.ShapeDtypeStruct((m, self.out_features), out_dtype),
            grid=grid,
            in_specs=in_specs,
            out_specs=pl.BlockSpec((tm, self.out_features), lambda i: (i, 0)),
            compiler_params=pltpu.CompilerParams(
                dimension_semantics=("parallel",),
                vmem_limit_bytes=vmem_limit),
            cost_estimate=cost,
        )

    def __call__(self, coords):
        lead_shape = coords.shape[:-1]
        x = coords.reshape(-1, self.in_features)          # flatten B and spatial dims
        m = x.shape[0]

        tm = min(self.tile_m, _round_up(m, 8))
        # v7x megacore: prefer >= 2 grid steps so both TensorCores get work.
        if pl.cdiv(m, tm) == 1 and m >= 64:
            tm = _round_up(pl.cdiv(m, 2), 8)

        flat_params = [p for wb in self.params for p in wb]
        try:
            call = self._build_pallas_call(m, tm, coords.dtype,
                                           single_buffer_params=True)
            out = call(x, *flat_params)
        except Exception:
            # Fallback for JAX builds where pl.Buffered(1) is not accepted.
            call = self._build_pallas_call(m, tm, coords.dtype,
                                           single_buffer_params=False)
            out = call(x, *flat_params)

        return out.reshape(*lead_shape, self.out_features)


# ----------------------------------------------------------------------------
# Pure-JAX reference mirroring the PyTorch forward with the same precision
# recipe (bf16 dot operands, f32 accumulation, f32 nonlinearity).
# ----------------------------------------------------------------------------
def _reference_forward(coords, params, nl_name, final_nl, out_features):
    x = coords.reshape(-1, coords.shape[-1]).astype(jnp.float32)
    n = len(params)
    for l, (w, b) in enumerate(params):
        x = jnp.dot(x.astype(w.dtype), w,
                    preferred_element_type=jnp.float32) + b.astype(jnp.float32)
        if (l < n - 1) or final_nl:
            x = _apply_nl(x, nl_name)
    return x.reshape(*coords.shape[:-1], out_features).astype(coords.dtype)


if __name__ == "__main__":
    key = jax.random.PRNGKey(0)
    k_coords, k_net1, k_net2 = jax.random.split(key, 3)

    # Small shapes consistent with the module: 2-D coords over a 16x16 grid.
    B, H, W, Fin = 2, 16, 16, 2          # M = 512 rows
    coords = jax.random.uniform(k_coords, (B, H, W, Fin), jnp.float32, -1.0, 1.0)

    # Example 1: ReLU MLP with a linear output layer (typical decoder head).
    # tile_m=192 -> grid of 3 with a masked partial edge block (512 = 192+192+128).
    net = FCBlock(in_features=Fin, out_features=1, num_hidden_layers=2,
                  hidden_features=64, outermost_linear=True, nonlinearity="relu",
                  key=k_net1, tile_m=192)
    out = jax.block_until_ready(net(coords))
    ref = _reference_forward(coords, net.params, "relu", net.final_nl, net.out_features)
    assert out.shape == (B, H, W, 1), out.shape
    assert jnp.allclose(out, ref, atol=1e-3, rtol=1e-3), "relu FCBlock mismatch"

    # Example 2: SIREN-style sine MLP with the nonlinearity on the last layer too.
    # tile_m=256 -> grid of 2 (even split across v7x TensorCores).
    net2 = FCBlock(in_features=Fin, out_features=4, num_hidden_layers=1,
                   hidden_features=32, outermost_linear=False, nonlinearity="sine",
                   key=k_net2, tile_m=256)
    out2 = jax.block_until_ready(net2(coords))
    ref2 = _reference_forward(coords, net2.params, "sine", net2.final_nl, net2.out_features)
    assert out2.shape == (B, H, W, 4), out2.shape
    assert jnp.allclose(out2, ref2, atol=1e-3, rtol=1e-3), "sine FCBlock mismatch"

    print("KERNEL_OK")
</pallas_src>

<mosaic_0001>
module attributes {stable_mosaic.version = 11 : i64} {
  func.func @_fcblock_kernel(%arg0: i32, %arg1: memref<192x2xf32, #tpu.memory_space<vmem>>, %arg2: memref<2x64xbf16, #tpu.memory_space<vmem>>, %arg3: memref<1x64xf32, #tpu.memory_space<vmem>>, %arg4: memref<64x64xbf16, #tpu.memory_space<vmem>>, %arg5: memref<1x64xf32, #tpu.memory_space<vmem>>, %arg6: memref<64x64xbf16, #tpu.memory_space<vmem>>, %arg7: memref<1x64xf32, #tpu.memory_space<vmem>>, %arg8: memref<64x1xbf16, #tpu.memory_space<vmem>>, %arg9: memref<1x1xf32, #tpu.memory_space<vmem>>, %arg10: memref<192x1xf32, #tpu.memory_space<vmem>>) attributes {dimension_semantics = [#tpu.dimension_semantics<parallel>], iteration_bounds = array<i64: 3>, scalar_prefetch = 0 : i64, scratch_operands = 0 : i64, tpu.core_type = #tpu.core_type<tc>, window_params = [{transform_indices = @transform_0, window_bounds = array<i64: 192, 2>}, {pipeline_mode = #tpu.pipeline_mode<synchronous>, transform_indices = @transform_1, window_bounds = array<i64: 2, 64>}, {pipeline_mode = #tpu.pipeline_mode<synchronous>, transform_indices = @transform_2, window_bounds = array<i64: 1, 64>}, {pipeline_mode = #tpu.pipeline_mode<synchronous>, transform_indices = @transform_3, window_bounds = array<i64: 64, 64>}, {pipeline_mode = #tpu.pipeline_mode<synchronous>, transform_indices = @transform_4, window_bounds = array<i64: 1, 64>}, {pipeline_mode = #tpu.pipeline_mode<synchronous>, transform_indices = @transform_5, window_bounds = array<i64: 64, 64>}, {pipeline_mode = #tpu.pipeline_mode<synchronous>, transform_indices = @transform_6, window_bounds = array<i64: 1, 64>}, {pipeline_mode = #tpu.pipeline_mode<synchronous>, transform_indices = @transform_7, window_bounds = array<i64: 64, 1>}, {pipeline_mode = #tpu.pipeline_mode<synchronous>, transform_indices = @transform_8, window_bounds = array<i64: 1, 1>}, {transform_indices = @transform_9, window_bounds = array<i64: 192, 1>}]} {
    %c0 = arith.constant 0 : index
    %c0_0 = arith.constant 0 : index
    %0 = vector.load %arg1[%c0, %c0_0] : memref<192x2xf32, #tpu.memory_space<vmem>>, vector<192x2xf32>
    %c0_1 = arith.constant 0 : index
    %c0_2 = arith.constant 0 : index
    %1 = vector.load %arg3[%c0_1, %c0_2] : memref<1x64xf32, #tpu.memory_space<vmem>>, vector<1x64xf32>
    %2 = arith.truncf %0 : vector<192x2xf32> to vector<192x2xbf16>
    %c0_3 = arith.constant 0 : index
    %c0_4 = arith.constant 0 : index
    %3 = vector.load %arg2[%c0_3, %c0_4] : memref<2x64xbf16, #tpu.memory_space<vmem>>, vector<2x64xbf16>
    %cst = arith.constant dense<0.000000e+00> : vector<192x64xf32>
    %4 = tpu.matmul %2, %3, %cst {dimension_numbers = #tpu.dot_dimension_numbers<[1], [0], [0], [1], [0, 0, 1, 1], [], []>} : vector<192x2xbf16>, vector<2x64xbf16>, vector<192x64xf32> -> vector<192x64xf32>
    %5 = vector.broadcast %1 : vector<1x64xf32> to vector<192x64xf32>
    %6 = arith.addf %4, %5 : vector<192x64xf32>
    %cst_5 = arith.constant 0.000000e+00 : f32
    %7 = vector.broadcast %cst_5 : f32 to vector<192x64xf32>
    %8 = arith.maximumf %6, %7 : vector<192x64xf32>
    %c0_6 = arith.constant 0 : index
    %c0_7 = arith.constant 0 : index
    %9 = vector.load %arg5[%c0_6, %c0_7] : memref<1x64xf32, #tpu.memory_space<vmem>>, vector<1x64xf32>
    %10 = arith.truncf %8 : vector<192x64xf32> to vector<192x64xbf16>
    %c0_8 = arith.constant 0 : index
    %c0_9 = arith.constant 0 : index
    %11 = vector.load %arg4[%c0_8, %c0_9] : memref<64x64xbf16, #tpu.memory_space<vmem>>, vector<64x64xbf16>
    %cst_10 = arith.constant dense<0.000000e+00> : vector<192x64xf32>
    %12 = tpu.matmul %10, %11, %cst_10 {dimension_numbers = #tpu.dot_dimension_numbers<[1], [0], [0], [1], [0, 0, 1, 1], [], []>} : vector<192x64xbf16>, vector<64x64xbf16>, vector<192x64xf32> -> vector<192x64xf32>
    %13 = vector.broadcast %9 : vector<1x64xf32> to vector<192x64xf32>
    %14 = arith.addf %12, %13 : vector<192x64xf32>
    %cst_11 = arith.constant 0.000000e+00 : f32
    %15 = vector.broadcast %cst_11 : f32 to vector<192x64xf32>
    %16 = arith.maximumf %14, %15 : vector<192x64xf32>
    %c0_12 = arith.constant 0 : index
    %c0_13 = arith.constant 0 : index
    %17 = vector.load %arg7[%c0_12, %c0_13] : memref<1x64xf32, #tpu.memory_space<vmem>>, vector<1x64xf32>
    %18 = arith.truncf %16 : vector<192x64xf32> to vector<192x64xbf16>
    %c0_14 = arith.constant 0 : index
    %c0_15 = arith.constant 0 : index
    %19 = vector.load %arg6[%c0_14, %c0_15] : memref<64x64xbf16, #tpu.memory_space<vmem>>, vector<64x64xbf16>
    %cst_16 = arith.constant dense<0.000000e+00> : vector<192x64xf32>
    %20 = tpu.matmul %18, %19, %cst_16 {dimension_numbers = #tpu.dot_dimension_numbers<[1], [0], [0], [1], [0, 0, 1, 1], [], []>} : vector<192x64xbf16>, vector<64x64xbf16>, vector<192x64xf32> -> vector<192x64xf32>
    %21 = vector.broadcast %17 : vector<1x64xf32> to vector<192x64xf32>
    %22 = arith.addf %20, %21 : vector<192x64xf32>
    %cst_17 = arith.constant 0.000000e+00 : f32
    %23 = vector.broadcast %cst_17 : f32 to vector<192x64xf32>
    %24 = arith.maximumf %22, %23 : vector<192x64xf32>
    %c0_18 = arith.constant 0 : index
    %c0_19 = arith.constant 0 : index
    %25 = vector.load %arg9[%c0_18, %c0_19] : memref<1x1xf32, #tpu.memory_space<vmem>>, vector<1x1xf32>
    %26 = arith.truncf %24 : vector<192x64xf32> to vector<192x64xbf16>
    %c0_20 = arith.constant 0 : index
    %c0_21 = arith.constant 0 : index
    %27 = vector.load %arg8[%c0_20, %c0_21] : memref<64x1xbf16, #tpu.memory_space<vmem>>, vector<64x1xbf16>
    %cst_22 = arith.constant dense<0.000000e+00> : vector<192x1xf32>
    %28 = tpu.matmul %26, %27, %cst_22 {dimension_numbers = #tpu.dot_dimension_numbers<[1], [0], [0], [1], [0, 0, 1, 1], [], []>} : vector<192x64xbf16>, vector<64x1xbf16>, vector<192x1xf32> -> vector<192x1xf32>
    %29 = vector.broadcast %25 : vector<1x1xf32> to vector<192x1xf32>
    %30 = arith.addf %28, %29 : vector<192x1xf32>
    %c0_23 = arith.constant 0 : index
    %c0_24 = arith.constant 0 : index
    %31 = vector.load %arg10[%c0_23, %c0_24] : memref<192x1xf32, #tpu.memory_space<vmem>>, vector<192x1xf32>
    tpu.vector_store %arg10[%c0_23, %c0_24], %30 {strides = array<i32>} : memref<192x1xf32, #tpu.memory_space<vmem>>, vector<192x1xf32>,
    return
  }
  func.func @transform_0(%arg0: i32) -> (i32, i32) {
    %c0_i32 = arith.constant 0 : i32
    %c0_i32_0 = arith.constant 0 : i32
    return %arg0, %c0_i32 : i32, i32
  }
  func.func @transform_1(%arg0: i32) -> (i32, i32) {
    %c0_i32 = arith.constant 0 : i32
    %c0_i32_0 = arith.constant 0 : i32
    %c0_i32_1 = arith.constant 0 : i32
    return %c0_i32, %c0_i32_0 : i32, i32
  }
  func.func @transform_2(%arg0: i32) -> (i32, i32) {
    %c0_i32 = arith.constant 0 : i32
    %c0_i32_0 = arith.constant 0 : i32
    %c0_i32_1 = arith.constant 0 : i32
    return %c0_i32, %c0_i32_0 : i32, i32
  }
  func.func @transform_3(%arg0: i32) -> (i32, i32) {
    %c0_i32 = arith.constant 0 : i32
    %c0_i32_0 = arith.constant 0 : i32
    %c0_i32_1 = arith.constant 0 : i32
    return %c0_i32, %c0_i32_0 : i32, i32
  }
  func.func @transform_4(%arg0: i32) -> (i32, i32) {
    %c0_i32 = arith.constant 0 : i32
    %c0_i32_0 = arith.constant 0 : i32
    %c0_i32_1 = arith.constant 0 : i32
    return %c0_i32, %c0_i32_0 : i32, i32
  }
  func.func @transform_5(%arg0: i32) -> (i32, i32) {
    %c0_i32 = arith.constant 0 : i32
    %c0_i32_0 = arith.constant 0 : i32
    %c0_i32_1 = arith.constant 0 : i32
    return %c0_i32, %c0_i32_0 : i32, i32
  }
  func.func @transform_6(%arg0: i32) -> (i32, i32) {
    %c0_i32 = arith.constant 0 : i32
    %c0_i32_0 = arith.constant 0 : i32
    %c0_i32_1 = arith.constant 0 : i32
    return %c0_i32, %c0_i32_0 : i32, i32
  }
  func.func @transform_7(%arg0: i32) -> (i32, i32) {
    %c0_i32 = arith.constant 0 : i32
    %c0_i32_0 = arith.constant 0 : i32
    %c0_i32_1 = arith.constant 0 : i32
    return %c0_i32, %c0_i32_0 : i32, i32
  }
  func.func @transform_8(%arg0: i32) -> (i32, i32) {
    %c0_i32 = arith.constant 0 : i32
    %c0_i32_0 = arith.constant 0 : i32
    %c0_i32_1 = arith.constant 0 : i32
    return %c0_i32, %c0_i32_0 : i32, i32
  }
  func.func @transform_9(%arg0: i32) -> (i32, i32) {
    %c0_i32 = arith.constant 0 : i32
    %c0_i32_0 = arith.constant 0 : i32
    return %arg0, %c0_i32 : i32, i32
  }
}

module attributes {stable_mosaic.version = 11 : i64} {
  func.func @_fcblock_kernel(%arg0: i32, %arg1: memref<192x2xf32, #tpu.memory_space<vmem>>, %arg2: memref<2x64xbf16, #tpu.memory_space<vmem>>, %arg3: memref<1x64xf32, #tpu.memory_space<vmem>>, %arg4: memref<64x64xbf16, #tpu.memory_space<vmem>>, %arg5: memref<1x64xf32, #tpu.memory_space<vmem>>, %arg6: memref<64x64xbf16, #tpu.memory_space<vmem>>, %arg7: memref<1x64xf32, #tpu.memory_space<vmem>>, %arg8: memref<64x1xbf16, #tpu.memory_space<vmem>>, %arg9: memref<1x1xf32, #tpu.memory_space<vmem>>, %arg10: memref<192x1xf32, #tpu.memory_space<vmem>>) attributes {dimension_semantics = [#tpu.dimension_semantics<parallel>], iteration_bounds = array<i64: 3>, scalar_prefetch = 0 : i64, scratch_operands = 0 : i64, tpu.core_type = #tpu.core_type<tc>, window_params = [{transform_indices = @transform_0, window_bounds = array<i64: 192, 2>}, {pipeline_mode = #tpu.pipeline_mode<synchronous>, transform_indices = @transform_1, window_bounds = array<i64: 2, 64>}, {pipeline_mode = #tpu.pipeline_mode<synchronous>, transform_indices = @transform_2, window_bounds = array<i64: 1, 64>}, {pipeline_mode = #tpu.pipeline_mode<synchronous>, transform_indices = @transform_3, window_bounds = array<i64: 64, 64>}, {pipeline_mode = #tpu.pipeline_mode<synchronous>, transform_indices = @transform_4, window_bounds = array<i64: 1, 64>}, {pipeline_mode = #tpu.pipeline_mode<synchronous>, transform_indices = @transform_5, window_bounds = array<i64: 64, 64>}, {pipeline_mode = #tpu.pipeline_mode<synchronous>, transform_indices = @transform_6, window_bounds = array<i64: 1, 64>}, {pipeline_mode = #tpu.pipeline_mode<synchronous>, transform_indices = @transform_7, window_bounds = array<i64: 64, 1>}, {pipeline_mode = #tpu.pipeline_mode<synchronous>, transform_indices = @transform_8, window_bounds = array<i64: 1, 1>}, {transform_indices = @transform_9, window_bounds = array<i64: 192, 1>}]} {
    %c0 = arith.constant 0 : index
    %c0_0 = arith.constant 0 : index
    %0 = vector.load %arg1[%c0, %c0_0] : memref<192x2xf32, #tpu.memory_space<vmem>>, vector<192x2xf32>
    %c0_1 = arith.constant 0 : index
    %c0_2 = arith.constant 0 : index
    %1 = vector.load %arg3[%c0_1, %c0_2] : memref<1x64xf32, #tpu.memory_space<vmem>>, vector<1x64xf32>
    %2 = arith.truncf %0 : vector<192x2xf32> to vector<192x2xbf16>
    %c0_3 = arith.constant 0 : index
    %c0_4 = arith.constant 0 : index
    %3 = vector.load %arg2[%c0_3, %c0_4] : memref<2x64xbf16, #tpu.memory_space<vmem>>, vector<2x64xbf16>
    %cst = arith.constant dense<0.000000e+00> : vector<192x64xf32>
    %4 = tpu.matmul %2, %3, %cst {dimension_numbers = #tpu.dot_dimension_numbers<[1], [0], [0], [1], [0, 0, 1, 1], [], []>} : vector<192x2xbf16>, vector<2x64xbf16>, vector<192x64xf32> -> vector<192x64xf32>
    %5 = vector.broadcast %1 : vector<1x64xf32> to vector<192x64xf32>
    %6 = arith.addf %4, %5 : vector<192x64xf32>
    %cst_5 = arith.constant 0.000000e+00 : f32
    %7 = vector.broadcast %cst_5 : f32 to vector<192x64xf32>
    %8 = arith.maximumf %6, %7 : vector<192x64xf32>
    %c0_6 = arith.constant 0 : index
    %c0_7 = arith.constant 0 : index
    %9 = vector.load %arg5[%c0_6, %c0_7] : memref<1x64xf32, #tpu.memory_space<vmem>>, vector<1x64xf32>
    %10 = arith.truncf %8 : vector<192x64xf32> to vector<192x64xbf16>
    %c0_8 = arith.constant 0 : index
    %c0_9 = arith.constant 0 : index
    %11 = vector.load %arg4[%c0_8, %c0_9] : memref<64x64xbf16, #tpu.memory_space<vmem>>, vector<64x64xbf16>
    %cst_10 = arith.constant dense<0.000000e+00> : vector<192x64xf32>
    %12 = tpu.matmul %10, %11, %cst_10 {dimension_numbers = #tpu.dot_dimension_numbers<[1], [0], [0], [1], [0, 0, 1, 1], [], []>} : vector<192x64xbf16>, vector<64x64xbf16>, vector<192x64xf32> -> vector<192x64xf32>
    %13 = vector.broadcast %9 : vector<1x64xf32> to vector<192x64xf32>
    %14 = arith.addf %12, %13 : vector<192x64xf32>
    %cst_11 = arith.constant 0.000000e+00 : f32
    %15 = vector.broadcast %cst_11 : f32 to vector<192x64xf32>
    %16 = arith.maximumf %14, %15 : vector<192x64xf32>
    %c0_12 = arith.constant 0 : index
    %c0_13 = arith.constant 0 : index
    %17 = vector.load %arg7[%c0_12, %c0_13] : memref<1x64xf32, #tpu.memory_space<vmem>>, vector<1x64xf32>
    %18 = arith.truncf %16 : vector<192x64xf32> to vector<192x64xbf16>
    %c0_14 = arith.constant 0 : index
    %c0_15 = arith.constant 0 : index
    %19 = vector.load %arg6[%c0_14, %c0_15] : memref<64x64xbf16, #tpu.memory_space<vmem>>, vector<64x64xbf16>
    %cst_16 = arith.constant dense<0.000000e+00> : vector<192x64xf32>
    %20 = tpu.matmul %18, %19, %cst_16 {dimension_numbers = #tpu.dot_dimension_numbers<[1], [0], [0], [1], [0, 0, 1, 1], [], []>} : vector<192x64xbf16>, vector<64x64xbf16>, vector<192x64xf32> -> vector<192x64xf32>
    %21 = vector.broadcast %17 : vector<1x64xf32> to vector<192x64xf32>
    %22 = arith.addf %20, %21 : vector<192x64xf32>
    %cst_17 = arith.constant 0.000000e+00 : f32
    %23 = vector.broadcast %cst_17 : f32 to vector<192x64xf32>
    %24 = arith.maximumf %22, %23 : vector<192x64xf32>
    %c0_18 = arith.constant 0 : index
    %c0_19 = arith.constant 0 : index
    %25 = vector.load %arg9[%c0_18, %c0_19] : memref<1x1xf32, #tpu.memory_space<vmem>>, vector<1x1xf32>
    %26 = arith.truncf %24 : vector<192x64xf32> to vector<192x64xbf16>
    %c0_20 = arith.constant 0 : index
    %c0_21 = arith.constant 0 : index
    %27 = vector.load %arg8[%c0_20, %c0_21] : memref<64x1xbf16, #tpu.memory_space<vmem>>, vector<64x1xbf16>
    %cst_22 = arith.constant dense<0.000000e+00> : vector<192x1xf32>
    %28 = tpu.matmul %26, %27, %cst_22 {dimension_numbers = #tpu.dot_dimension_numbers<[1], [0], [0], [1], [0, 0, 1, 1], [], []>} : vector<192x64xbf16>, vector<64x1xbf16>, vector<192x1xf32> -> vector<192x1xf32>
    %29 = vector.broadcast %25 : vector<1x1xf32> to vector<192x1xf32>
    %30 = arith.addf %28, %29 : vector<192x1xf32>
    %c0_23 = arith.constant 0 : index
    %c0_24 = arith.constant 0 : index
    %31 = vector.load %arg10[%c0_23, %c0_24] : memref<192x1xf32, #tpu.memory_space<vmem>>, vector<192x1xf32>
    tpu.vector_store %arg10[%c0_23, %c0_24], %30 {strides = array<i32>} : memref<192x1xf32, #tpu.memory_space<vmem>>, vector<192x1xf32>,
    return
  }
  func.func @transform_0(%arg0: i32) -> (i32, i32) {
    %c0_i32 = arith.constant 0 : i32
    %c0_i32_0 = arith.constant 0 : i32
    return %arg0, %c0_i32 : i32, i32
  }
  func.func @transform_1(%arg0: i32) -> (i32, i32) {
    %c0_i32 = arith.constant 0 : i32
    %c0_i32_0 = arith.constant 0 : i32
    %c0_i32_1 = arith.constant 0 : i32
    return %c0_i32, %c0_i32_0 : i32, i32
  }
  func.func @transform_2(%arg0: i32) -> (i32, i32) {
    %c0_i32 = arith.constant 0 : i32
    %c0_i32_0 = arith.constant 0 : i32
    %c0_i32_1 = arith.constant 0 : i32
    return %c0_i32, %c0_i32_0 : i32, i32
  }
  func.func @transform_3(%arg0: i32) -> (i32, i32) {
    %c0_i32 = arith.constant 0 : i32
    %c0_i32_0 = arith.constant 0 : i32
    %c0_i32_1 = arith.constant 0 : i32
    return %c0_i32, %c0_i32_0 : i32, i32
  }
  func.func @transform_4(%arg0: i32) -> (i32, i32) {
    %c0_i32 = arith.constant 0 : i32
    %c0_i32_0 = arith.constant 0 : i32
    %c0_i32_1 = arith.constant 0 : i32
    return %c0_i32, %c0_i32_0 : i32, i32
  }
  func.func @transform_5(%arg0: i32) -> (i32, i32) {
    %c0_i32 = arith.constant 0 : i32
    %c0_i32_0 = arith.constant 0 : i32
    %c0_i32_1 = arith.constant 0 : i32
    return %c0_i32, %c0_i32_0 : i32, i32
  }
  func.func @transform_6(%arg0: i32) -> (i32, i32) {
    %c0_i32 = arith.constant 0 : i32
    %c0_i32_0 = arith.constant 0 : i32
    %c0_i32_1 = arith.constant 0 : i32
    return %c0_i32, %c0_i32_0 : i32, i32
  }
  func.func @transform_7(%arg0: i32) -> (i32, i32) {
    %c0_i32 = arith.constant 0 : i32
    %c0_i32_0 = arith.constant 0 : i32
    %c0_i32_1 = arith.constant 0 : i32
    return %c0_i32, %c0_i32_0 : i32, i32
  }
  func.func @transform_8(%arg0: i32) -> (i32, i32) {
    %c0_i32 = arith.constant 0 : i32
    %c0_i32_0 = arith.constant 0 : i32
    %c0_i32_1 = arith.constant 0 : i32
    return %c0_i32, %c0_i32_0 : i32, i32
  }
  func.func @transform_9(%arg0: i32) -> (i32, i32) {
    %c0_i32 = arith.constant 0 : i32
    %c0_i32_0 = arith.constant 0 : i32
    return %arg0, %c0_i32 : i32, i32
  }
}

</mosaic_0001>

<llo_original>
// kernel: tpu_custom_call.1
$region0: #{tpu_custom_call.1}
  #allocation0 [shape = 'u32[]', space=smem, size = 0x4, offset = 0x4, fixed_abs, tag = 'smem constant byte address 0x4 - core index']
  #allocation1 [shape = 'u32[144,128]{1,0:T(1,128)}', space=vmem, size = 0x12000, scoped, tag = 'internal scratch']
  #allocation2 [shape = 'f32[1,1]{1,0:T(1,128)S(1)}', space=vmem, size = 0x200, scoped, tag = 'scoped memory for tpu_custom_call.1']
  %s0 = inlined_call_operand.vmem [shape: f32[512,2], index: 0, kind: input, shape index: {}]
  %s1 = inlined_call_operand.vmem [shape: bf16[2,64], index: 1, kind: input, shape index: {}]
  %s2 = inlined_call_operand.vmem [shape: f32[1,64], index: 2, kind: input, shape index: {}]
  %s3 = inlined_call_operand.vmem [shape: bf16[64,64], index: 3, kind: input, shape index: {}]
  %s4 = inlined_call_operand.vmem [shape: f32[1,64], index: 4, kind: input, shape index: {}]
  %s5 = inlined_call_operand.vmem [shape: bf16[64,64], index: 5, kind: input, shape index: {}]
  %s6 = inlined_call_operand.vmem [shape: f32[1,64], index: 6, kind: input, shape index: {}]
  %s7 = inlined_call_operand.vmem [shape: bf16[64,1], index: 7, kind: input, shape index: {}]
  %s8 = inlined_call_operand.<no memory space> [shape: f32[1,1], index: 8, kind: input, shape index: {}]
  %s9 = inlined_call_operand.vmem [shape: f32[512,1], index: 9, kind: output, shape index: {}]
  %s10 = sld [smem:[#allocation0]]
  $region117: #{tpu_custom_call.1} parent=0
    _
  %s12 = ssub.s32 1, %s10
  %s13 = scalar_select 0, %s12, %s10
  %v14 = vstv %s8
  %15 = vst [vmem:[#allocation2] sm:$0x1] %v14
  $region1: #{tpu_custom_call.1} parent=0
    #allocation3 [shape = 'u8[196608]{0}', space=vmem, size = 0x30000, scoped, tag = 'output window, operand 0']
    loop: start=0, step=1, limit=5
    $region2: #{tpu_custom_call.1} parent=1 // loop_pre_header
      _
    $region3: #{tpu_custom_call.1} parent=1 // loop_header
      %s17 = sphi 0, %s21
      %p18 = scmp.ge.s32.totalorder %s17, 5
      %s27 = sphi 0, %s29
      %s30 = sphi 0, %s27
      %s31 = sphi 0, %s30
      %s47 = sphi 0, %s31
      %s51 = sphi 0, %s51
      %s53 = sphi 0, %s51
      %s54 = sphi 0, %s53
      %s68 = sphi 0, %s54
      %s72 = sphi 0, %s72
      %s74 = sphi 0, %s72
      %s75 = sphi 0, %s74
      %s89 = sphi 0, %s75
      %s93 = sphi 0, %s93
      %s95 = sphi 0, %s93
      %s96 = sphi 0, %s95
      %s110 = sphi 0, %s96
      %s114 = sphi 0, %s114
      %s116 = sphi 0, %s114
      %s117 = sphi 0, %s116
      %s131 = sphi 0, %s117
      %s135 = sphi 0, %s135
      %s137 = sphi 0, %s135
      %s138 = sphi 0, %s137
      %s152 = sphi 0, %s138
      %s156 = sphi 0, %s156
      %s158 = sphi 0, %s156
      %s159 = sphi 0, %s158
      %s173 = sphi 0, %s159
      %s177 = sphi 0, %s177
      %s179 = sphi 0, %s177
      %s180 = sphi 0, %s179
      %s194 = sphi 0, %s180
      %s198 = sphi 0, %s198
      %s200 = sphi 0, %s198
      %s201 = sphi 0, %s200
      %s215 = sphi 0, %s201
      %s221 = sphi 0, %s223
      %s224 = sphi 0, %s221
      %s225 = sphi 0, %s224
      %s241 = sphi 0, %s225
    $region4: #{tpu_custom_call.1} parent=1 // loop_header_branch
      %20 = sbr.rel (%p18) target = $region8
    $region5: #{tpu_custom_call.1} parent=1 // loop_body
      %s22 = ssub.s32 %s17, 1
      %s23 = ssub.s32 %s17, 2
      %s24 = sadd.s32 %s17, 1
      %s25 = ssub.s32 %s17, %s24
      %p26 = scmp.eq.s32.totalorder %s25, 0
      %s28 = sadd.s32 %s27, 1
      %s29 = scalar_select %p26, %s27, %s28
      %p32 = pneg %p26
      %p33 = scmp.eq.s32.totalorder %s17, 2
      %p34 = por %p32, %p33
      %p35 = scmp.ne.s32.totalorder %s27, %s30
      %p36 = scmp.eq.s32.totalorder %s17, 0
      %p37 = por %p35, %p36
      %p38 = scmp.ne.s32.totalorder %s27, %s30
      %p39 = scmp.eq.s32.totalorder %s22, 2
      %p40 = por %p38, %p39
      %p41 = scmp.ne.s32.totalorder %s30, %s31
      %p42 = scmp.eq.s32.totalorder %s22, 0
      %p43 = por %p41, %p42
      %p44 = scmp.ne.s32.totalorder %s30, %s31
      %p45 = scmp.eq.s32.totalorder %s23, 2
      %p46 = por %p44, %p45
      %p48 = scmp.ne.s32.totalorder %s31, %s47
      %p49 = scmp.eq.s32.totalorder %s23, 0
      %p50 = por %p48, %p49
      %s52 = sadd.s32 %s51, 1
      %p55 = scmp.eq.s32.totalorder %s17, 2
      %p56 = scmp.ne.s32.totalorder %s51, %s53
      %p57 = scmp.eq.s32.totalorder %s17, 0
      %p58 = por %p56, %p57
      %p59 = scmp.ne.s32.totalorder %s51, %s53
      %p60 = scmp.eq.s32.totalorder %s22, 2
      %p61 = por %p59, %p60
      %p62 = scmp.ne.s32.totalorder %s53, %s54
      %p63 = scmp.eq.s32.totalorder %s22, 0
      %p64 = por %p62, %p63
      %p65 = scmp.ne.s32.totalorder %s53, %s54
      %p66 = scmp.eq.s32.totalorder %s23, 2
      %p67 = por %p65, %p66
      %p69 = scmp.ne.s32.totalorder %s54, %s68
      %p70 = scmp.eq.s32.totalorder %s23, 0
      %p71 = por %p69, %p70
      %s73 = sadd.s32 %s72, 1
      %p76 = scmp.eq.s32.totalorder %s17, 2
      %p77 = scmp.ne.s32.totalorder %s72, %s74
      %p78 = scmp.eq.s32.totalorder %s17, 0
      %p79 = por %p77, %p78
      %p80 = scmp.ne.s32.totalorder %s72, %s74
      %p81 = scmp.eq.s32.totalorder %s22, 2
      %p82 = por %p80, %p81
      %p83 = scmp.ne.s32.totalorder %s74, %s75
      %p84 = scmp.eq.s32.totalorder %s22, 0
      %p85 = por %p83, %p84
      %p86 = scmp.ne.s32.totalorder %s74, %s75
      %p87 = scmp.eq.s32.totalorder %s23, 2
      %p88 = por %p86, %p87
      %p90 = scmp.ne.s32.totalorder %s75, %s89
      %p91 = scmp.eq.s32.totalorder %s23, 0
      %p92 = por %p90, %p91
      %s94 = sadd.s32 %s93, 1
      %p97 = scmp.eq.s32.totalorder %s17, 2
      %p98 = scmp.ne.s32.totalorder %s93, %s95
      %p99 = scmp.eq.s32.totalorder %s17, 0
      %p100 = por %p98, %p99
      %p101 = scmp.ne.s32.totalorder %s93, %s95
      %p102 = scmp.eq.s32.totalorder %s22, 2
      %p103 = por %p101, %p102
      %p104 = scmp.ne.s32.totalorder %s95, %s96
      %p105 = scmp.eq.s32.totalorder %s22, 0
      %p106 = por %p104, %p105
      %p107 = scmp.ne.s32.totalorder %s95, %s96
      %p108 = scmp.eq.s32.totalorder %s23, 2
      %p109 = por %p107, %p108
      %p111 = scmp.ne.s32.totalorder %s96, %s110
      %p112 = scmp.eq.s32.totalorder %s23, 0
      %p113 = por %p111, %p112
      %s115 = sadd.s32 %s114, 1
      %p118 = scmp.eq.s32.totalorder %s17, 2
      %p119 = scmp.ne.s32.totalorder %s114, %s116
      %p120 = scmp.eq.s32.totalorder %s17, 0
      %p121 = por %p119, %p120
      %p122 = scmp.ne.s32.totalorder %s114, %s116
      %p123 = scmp.eq.s32.totalorder %s22, 2
      %p124 = por %p122, %p123
      %p125 = scmp.ne.s32.totalorder %s116, %s117
      %p126 = scmp.eq.s32.totalorder %s22, 0
      %p127 = por %p125, %p126
      %p128 = scmp.ne.s32.totalorder %s116, %s117
      %p129 = scmp.eq.s32.totalorder %s23, 2
      %p130 = por %p128, %p129
      %p132 = scmp.ne.s32.totalorder %s117, %s131
      %p133 = scmp.eq.s32.totalorder %s23, 0
      %p134 = por %p132, %p133
      %s136 = sadd.s32 %s135, 1
      %p139 = scmp.eq.s32.totalorder %s17, 2
      %p140 = scmp.ne.s32.totalorder %s135, %s137
      %p141 = scmp.eq.s32.totalorder %s17, 0
      %p142 = por %p140, %p141
      %p143 = scmp.ne.s32.totalorder %s135, %s137
      %p144 = scmp.eq.s32.totalorder %s22, 2
      %p145 = por %p143, %p144
      %p146 = scmp.ne.s32.totalorder %s137, %s138
      %p147 = scmp.eq.s32.totalorder %s22, 0
      %p148 = por %p146, %p147
      %p149 = scmp.ne.s32.totalorder %s137, %s138
      %p150 = scmp.eq.s32.totalorder %s23, 2
      %p151 = por %p149, %p150
      %p153 = scmp.ne.s32.totalorder %s138, %s152
      %p154 = scmp.eq.s32.totalorder %s23, 0
      %p155 = por %p153, %p154
      %s157 = sadd.s32 %s156, 1
      %p160 = scmp.eq.s32.totalorder %s17, 2
      %p161 = scmp.ne.s32.totalorder %s156, %s158
      %p162 = scmp.eq.s32.totalorder %s17, 0
      %p163 = por %p161, %p162
      %p164 = scmp.ne.s32.totalorder %s156, %s158
      %p165 = scmp.eq.s32.totalorder %s22, 2
      %p166 = por %p164, %p165
      %p167 = scmp.ne.s32.totalorder %s158, %s159
      %p168 = scmp.eq.s32.totalorder %s22, 0
      %p169 = por %p167, %p168
      %p170 = scmp.ne.s32.totalorder %s158, %s159
      %p171 = scmp.eq.s32.totalorder %s23, 2
      %p172 = por %p170, %p171
      %p174 = scmp.ne.s32.totalorder %s159, %s173
      %p175 = scmp.eq.s32.totalorder %s23, 0
      %p176 = por %p174, %p175
      %s178 = sadd.s32 %s177, 1
      %p181 = scmp.eq.s32.totalorder %s17, 2
      %p182 = scmp.ne.s32.totalorder %s177, %s179
      %p183 = scmp.eq.s32.totalorder %s17, 0
      %p184 = por %p182, %p183
      %p185 = scmp.ne.s32.totalorder %s177, %s179
      %p186 = scmp.eq.s32.totalorder %s22, 2
      %p187 = por %p185, %p186
      %p188 = scmp.ne.s32.totalorder %s179, %s180
      %p189 = scmp.eq.s32.totalorder %s22, 0
      %p190 = por %p188, %p189
      %p191 = scmp.ne.s32.totalorder %s179, %s180
      %p192 = scmp.eq.s32.totalorder %s23, 2
      %p193 = por %p191, %p192
      %p195 = scmp.ne.s32.totalorder %s180, %s194
      %p196 = scmp.eq.s32.totalorder %s23, 0
      %p197 = por %p195, %p196
      %s199 = sadd.s32 %s198, 1
      %p202 = scmp.eq.s32.totalorder %s17, 2
      %p203 = scmp.ne.s32.totalorder %s198, %s200
      %p204 = scmp.eq.s32.totalorder %s17, 0
      %p205 = por %p203, %p204
      %p206 = scmp.ne.s32.totalorder %s198, %s200
      %p207 = scmp.eq.s32.totalorder %s22, 2
      %p208 = por %p206, %p207
      %p209 = scmp.ne.s32.totalorder %s200, %s201
      %p210 = scmp.eq.s32.totalorder %s22, 0
      %p211 = por %p209, %p210
      %p212 = scmp.ne.s32.totalorder %s200, %s201
      %p213 = scmp.eq.s32.totalorder %s23, 2
      %p214 = por %p212, %p213
      %p216 = scmp.ne.s32.totalorder %s201, %s215
      %p217 = scmp.eq.s32.totalorder %s23, 0
      %p218 = por %p216, %p217
      %s219 = ssub.s32 %s17, %s24
      %p220 = scmp.eq.s32.totalorder %s219, 0
      %s222 = sadd.s32 %s221, 1
      %s223 = scalar_select %p220, %s221, %s222
      %p226 = pneg %p220
      %p227 = scmp.eq.s32.totalorder %s17, 2
      %p228 = por %p226, %p227
      %p229 = scmp.ne.s32.totalorder %s221, %s224
      %p230 = scmp.eq.s32.totalorder %s17, 0
      %p231 = por %p229, %p230
      %p232 = scmp.ne.s32.totalorder %s221, %s224
      %p233 = scmp.eq.s32.totalorder %s22, 2
      %p234 = por %p232, %p233
      %p235 = scmp.ne.s32.totalorder %s224, %s225
      %p236 = scmp.eq.s32.totalorder %s22, 0
      %p237 = por %p235, %p236
      %p238 = scmp.ne.s32.totalorder %s224, %s225
      %p239 = scmp.eq.s32.totalorder %s23, 2
      %p240 = por %p238, %p239
      %p242 = scmp.ne.s32.totalorder %s225, %s241
      %p243 = scmp.eq.s32.totalorder %s23, 0
      %p244 = por %p242, %p243
      %p245 = scmp.le.s32.totalorder 1, %s17
      %p246 = scmp.lt.s32.totalorder %s17, 4
      %p247 = pnand %p245, %p246
      %p248 = pneg %p247
      // Predicated region
      $region9: #{tpu_custom_call.1} parent=5 // pred_check
        _
      $region10: #{tpu_custom_call.1} parent=5 // pred_check_branch
        %250 = sbr.rel (%p247) target = $region12
      $region11: #{tpu_custom_call.1} parent=5 // pred_region
        %s251 = ssub.s32 %s17, 1
        // Predicated region
        $region13: #{tpu_custom_call.1} parent=11 // pred_check
          %p252 = pneg %p64
        $region14: #{tpu_custom_call.1} parent=11 // pred_check_branch
          %254 = sbr.rel (%p252) target = $region16
        $region15: #{tpu_custom_call.1} parent=11 // pred_region
          _
        $region16: #{tpu_custom_call.1} parent=11 // pred_fallthru
          _
        // Predicated region
        $region17: #{tpu_custom_call.1} parent=11 // pred_check
          %p255 = pneg %p85
        $region18: #{tpu_custom_call.1} parent=11 // pred_check_branch
          %257 = sbr.rel (%p255) target = $region20
        $region19: #{tpu_custom_call.1} parent=11 // pred_region
          _
        $region20: #{tpu_custom_call.1} parent=11 // pred_fallthru
          _
        // Predicated region
        $region21: #{tpu_custom_call.1} parent=11 // pred_check
          %p258 = pneg %p106
        $region22: #{tpu_custom_call.1} parent=11 // pred_check_branch
          %260 = sbr.rel (%p258) target = $region24
        $region23: #{tpu_custom_call.1} parent=11 // pred_region
          _
        $region24: #{tpu_custom_call.1} parent=11 // pred_fallthru
          _
        // Predicated region
        $region25: #{tpu_custom_call.1} parent=11 // pred_check
          %p261 = pneg %p127
        $region26: #{tpu_custom_call.1} parent=11 // pred_check_branch
          %263 = sbr.rel (%p261) target = $region28
        $region27: #{tpu_custom_call.1} parent=11 // pred_region
          _
        $region28: #{tpu_custom_call.1} parent=11 // pred_fallthru
          _
        // Predicated region
        $region29: #{tpu_custom_call.1} parent=11 // pred_check
          %p264 = pneg %p148
        $region30: #{tpu_custom_call.1} parent=11 // pred_check_branch
          %266 = sbr.rel (%p264) target = $region32
        $region31: #{tpu_custom_call.1} parent=11 // pred_region
          _
        $region32: #{tpu_custom_call.1} parent=11 // pred_fallthru
          _
        // Predicated region
        $region33: #{tpu_custom_call.1} parent=11 // pred_check
          %p267 = pneg %p169
        $region34: #{tpu_custom_call.1} parent=11 // pred_check_branch
          %269 = sbr.rel (%p267) target = $region36
        $region35: #{tpu_custom_call.1} parent=11 // pred_region
          _
        $region36: #{tpu_custom_call.1} parent=11 // pred_fallthru
          _
        // Predicated region
        $region37: #{tpu_custom_call.1} parent=11 // pred_check
          %p270 = pneg %p190
        $region38: #{tpu_custom_call.1} parent=11 // pred_check_branch
          %272 = sbr.rel (%p270) target = $region40
        $region39: #{tpu_custom_call.1} parent=11 // pred_region
          _
        $region40: #{tpu_custom_call.1} parent=11 // pred_fallthru
          _
        // Predicated region
        $region41: #{tpu_custom_call.1} parent=11 // pred_check
          %p273 = pneg %p211
        $region42: #{tpu_custom_call.1} parent=11 // pred_check_branch
          %275 = sbr.rel (%p273) target = $region44
        $region43: #{tpu_custom_call.1} parent=11 // pred_region
          _
        $region44: #{tpu_custom_call.1} parent=11 // pred_fallthru
          _
      $region12: #{tpu_custom_call.1} parent=5 // pred_fallthru
        _
      %p276 = scmp.lt.s32.totalorder %s17, 3
      // Predicated region
      $region45: #{tpu_custom_call.1} parent=5 // pred_check
        %p277 = pneg %p276
      $region46: #{tpu_custom_call.1} parent=5 // pred_check_branch
        %279 = sbr.rel (%p277) target = $region48
      $region47: #{tpu_custom_call.1} parent=5 // pred_region
        // Predicated region
        $region49: #{tpu_custom_call.1} parent=47 // pred_check
          %p280 = pneg %p37
        $region50: #{tpu_custom_call.1} parent=47 // pred_check_branch
          %282 = sbr.rel (%p280) target = $region52
        $region51: #{tpu_custom_call.1} parent=47 // pred_region
          %s283 = smul.u32 24, %s17
          %s284 = ssub.s32 64, %s283
          %p285 = scmp.lt.s32.totalorder %s284, 24
          %s286 = scalar_select %p285, %s284, 24
          %s287 = smul.u32 128, %s286
          %p288 = scmp.lt.s32.totalorder %s283, 63
          %s289 = scalar_select %p288, %s283, 63
          %s290 = smul.addr %s289, 8
          %s291 = scalar_lea.vmem %s0, %s290
          %s292 = smul.u32 24, %s17
          %s293 = ssub.s32 64, %s292
          %p294 = scmp.lt.s32.totalorder %s293, 24
          %s295 = scalar_select %p294, %s293, 24
          %s296 = smul.u32 128, %s295
        $region52: #{tpu_custom_call.1} parent=47 // pred_fallthru
          _
      $region48: #{tpu_custom_call.1} parent=5 // pred_fallthru
        _
      %p297 = scmp.le.s32.totalorder 1, %s17
      %p298 = scmp.lt.s32.totalorder %s17, 4
      %p299 = pnand %p297, %p298
      %p300 = pneg %p299
      // Predicated region
      $region53: #{tpu_custom_call.1} parent=5 // pred_check
        _
      $region54: #{tpu_custom_call.1} parent=5 // pred_check_branch
        %302 = sbr.rel (%p299) target = $region56
      $region55: #{tpu_custom_call.1} parent=5 // pred_region
        %s303 = ssub.s32 %s17, 1
        %s304 = smul.u32 24, %s22
        %s305 = ssub.s32 64, %s304
        %p306 = scmp.lt.s32.totalorder %s305, 24
        %s307 = scalar_select %p306, %s305, 24
        %s308 = smul.u32 128, %s307
        %p309 = scmp.lt.s32.totalorder %s304, 63
        %s310 = scalar_select %p309, %s304, 63
        %s311 = smul.addr %s310, 8
        %s312 = scalar_lea.vmem %s0, %s311
        %p313 = pneg %p43
        %p314 = pneg %p40
        %p315 = pneg %p64
        %p316 = pneg %p61
        %p317 = pneg %p85
        %p318 = pneg %p82
        %p319 = pneg %p106
        %p320 = pneg %p103
        %p321 = pneg %p127
        %p322 = pneg %p124
        %p323 = pneg %p148
        %p324 = pneg %p145
        %p325 = pneg %p169
        %p326 = pneg %p166
        %p327 = pneg %p190
        %p328 = pneg %p187
        %p329 = pneg %p211
        %p330 = pneg %p208
        %p331 = pneg %p237
        %p332 = pneg %p234
        %s333 = sand.u32 %s224, 1
        %s334 = sand.u32 %s224, 1
        %s335 = smul.addr %s334, 192
        %s336 = scalar_lea.vmem [#allocation3], %s335
        %s337 = smul.u32 24, %s22
        %s338 = ssub.s32 64, %s337
        %p339 = scmp.lt.s32.totalorder %s338, 24
        %s340 = scalar_select %p339, %s338, 24
        %s341 = smul.u32 128, %s340
        %p342 = scmp.lt.s32.totalorder %s337, 63
        %s343 = scalar_select %p342, %s337, 63
        %s344 = smul.addr %s343, 8
        %s345 = scalar_lea.vmem %s0, %s344
        %s346 = smul.u32 24, %s22
        %s347 = ssub.s32 64, %s346
        %p348 = scmp.lt.s32.totalorder %s347, 24
        %s349 = scalar_select %p348, %s347, 24
        %s350 = smul.u32 128, %s349
        %s351 = smul.u32 24, %s22
        %s352 = ssub.s32 64, %s351
        %p353 = scmp.lt.s32.totalorder %s352, 24
        %s354 = scalar_select %p353, %s352, 24
        %s355 = smul.u32 128, %s354
        %v357 = vld [vmem:[%s345] sm:$0xff]
        %v358 = vld [vmem:[%s345 + $0x8] sm:$0xff]
        %v359 = vld [vmem:[%s345 + $0x10] sm:$0xff]
        %v360 = vld [vmem:[%s345 + $0x18] sm:$0xff]
        %v361 = vld [vmem:[%s345 + $0x20] sm:$0xff]
        %v362 = vld [vmem:[%s345 + $0x28] sm:$0xff]
        %v363 = vld [vmem:[%s345 + $0x30] sm:$0xff]
        %v364 = vld [vmem:[%s345 + $0x38] sm:$0xff]
        %v365 = vld [vmem:[%s345 + $0x40] sm:$0xff]
        %v366 = vld [vmem:[%s345 + $0x48] sm:$0xff]
        %v367 = vld [vmem:[%s345 + $0x50] sm:$0xff]
        %v368 = vld [vmem:[%s345 + $0x58] sm:$0xff]
        %v369 = vld [vmem:[%s345 + $0x60] sm:$0xff]
        %v370 = vld [vmem:[%s345 + $0x68] sm:$0xff]
        %v371 = vld [vmem:[%s345 + $0x70] sm:$0xff]
        %v372 = vld [vmem:[%s345 + $0x78] sm:$0xff]
        %v373 = vld [vmem:[%s345 + $0x80] sm:$0xff]
        %v374 = vld [vmem:[%s345 + $0x88] sm:$0xff]
        %v375 = vld [vmem:[%s345 + $0x90] sm:$0xff]
        %v376 = vld [vmem:[%s345 + $0x98] sm:$0xff]
        %v377 = vld [vmem:[%s345 + $0xa0] sm:$0xff]
        %v378 = vld [vmem:[%s345 + $0xa8] sm:$0xff]
        %v379 = vld [vmem:[%s345 + $0xb0] sm:$0xff]
        %v380 = vld [vmem:[%s345 + $0xb8] sm:$0xff]
        %v381 = vld [vmem:[%s2] sm:$0x1]
        %v382 = vpack.c.bf16 %v358, %v357
        %v383 = vpack.c.bf16 %v360, %v359
        %v384 = vpack.c.bf16 %v362, %v361
        %v385 = vpack.c.bf16 %v364, %v363
        %v386 = vpack.c.bf16 %v366, %v365
        %v387 = vpack.c.bf16 %v368, %v367
        %v388 = vpack.c.bf16 %v370, %v369
        %v389 = vpack.c.bf16 %v372, %v371
        %v390 = vpack.c.bf16 %v374, %v373
        %v391 = vpack.c.bf16 %v376, %v375
        %v392 = vpack.c.bf16 %v378, %v377
        %v393 = vpack.c.bf16 %v380, %v379
        %v394 = vld [vmem:[%s1] sm:$0x1]
        %v396 = vlaneseq
        %v397 = vshrl.u32 %v396, 7
        %v398 = vsub.s32 0, %v397
        %v399 = vrot.slane %v381, %v398
        %vm401 = vcmask 15360
        %v403 = vsel %vm401, %v382, 0
        %v406 = vsel %vm401, %v383, 0
        %v409 = vsel %vm401, %v384, 0
        %v412 = vsel %vm401, %v385, 0
        %v415 = vsel %vm401, %v386, 0
        %v418 = vsel %vm401, %v387, 0
        %v421 = vsel %vm401, %v388, 0
        %v424 = vsel %vm401, %v389, 0
        %v427 = vsel %vm401, %v390, 0
        %v430 = vsel %vm401, %v391, 0
        %v433 = vsel %vm401, %v392, 0
        %v436 = vsel %vm401, %v393, 0
        %vm438 = vcmask 1040384
        %v440 = vsel %vm438, %v394, 0
        %442 = vmatprep.subr.bf16.mxu0 0
        %443 = vmatpush1.bf16.msra.mxu0 %v440
        %444 = vmatprep.subr.bf16.mxu0 0
        %445 = vmatpush1.bf16.msra.mxu0 0
        %446 = vmatprep.subr.bf16.mxu0 0
        %447 = vmatpush1.bf16.msra.mxu0 0
        %448 = vmatprep.subr.bf16.mxu0 0
        %449 = vmatpush1.bf16.msra.mxu0 0
        %450 = vmatprep.subr.bf16.mxu0 0
        %451 = vmatpush1.bf16.msra.mxu0 0
        %452 = vmatprep.subr.bf16.mxu0 0
        %453 = vmatpush1.bf16.msra.mxu0 0
        %454 = vmatprep.subr.bf16.mxu0 0
        %455 = vmatpush1.bf16.msra.mxu0 0
        %456 = vmatprep.subr.bf16.mxu0 0
        %457 = vmatpush1.bf16.msra.mxu0 0
        %458 = vmatprep.subr.bf16.mxu0 0
        %459 = vmatpush1.bf16.msra.mxu0 0
        %460 = vmatprep.subr.bf16.mxu0 0
        %461 = vmatpush1.bf16.msra.mxu0 0
        %462 = vmatprep.subr.bf16.mxu0 0
        %463 = vmatpush1.bf16.msra.mxu0 0
        %464 = vmatprep.subr.bf16.mxu0 0
        %465 = vmatpush1.bf16.msra.mxu0 0
        %466 = vmatprep.subr.bf16.mxu0 0
        %467 = vmatpush1.bf16.msra.mxu0 0
        %468 = vmatprep.subr.bf16.mxu0 0
        %469 = vmatpush1.bf16.msra.mxu0 0
        %470 = vmatprep.subr.bf16.mxu0 0
        %471 = vmatpush1.bf16.msra.mxu0 0
        %472 = vmatprep.subr.bf16.mxu0 0
        %473 = vmatpush1.bf16.msra.mxu0 0
        %474 = vmatprep.mubr.bf16.mxu0 0
        %475 = vmatmul.mubr.bf16.gmra.mrb[0].mxu0 %v403
        %v476 = vpop.f32.mrb[0].mxu0
        %v477 = vadd.f32 %v399, %v476
        %v478 = vpop.f32.mrb[0].mxu0
        %v479 = vpop.f32.mrb[0].mxu0
        %v480 = vadd.f32 %v399, %v479
        %v481 = vpop.f32.mrb[0].mxu0
        %482 = vmatprep.mubr.bf16.mxu0 0
        %483 = vmatmul.mubr.bf16.gmra.mrb[0].mxu0 %v406
        %v484 = vpop.f32.mrb[0].mxu0
        %v485 = vadd.f32 %v399, %v484
        %v486 = vpop.f32.mrb[0].mxu0
        %v487 = vpop.f32.mrb[0].mxu0
        %v488 = vadd.f32 %v399, %v487
        %v489 = vpop.f32.mrb[0].mxu0
        %490 = vmatprep.mubr.bf16.mxu0 0
        %491 = vmatmul.mubr.bf16.gmra.mrb[0].mxu0 %v409
        %v492 = vpop.f32.mrb[0].mxu0
        %v493 = vadd.f32 %v399, %v492
        %v494 = vpop.f32.mrb[0].mxu0
        %v495 = vpop.f32.mrb[0].mxu0
        %v496 = vadd.f32 %v399, %v495
        %v497 = vpop.f32.mrb[0].mxu0
        %498 = vmatprep.mubr.bf16.mxu0 0
        %499 = vmatmul.mubr.bf16.gmra.mrb[0].mxu0 %v412
        %v500 = vpop.f32.mrb[0].mxu0
        %v501 = vadd.f32 %v399, %v500
        %v502 = vpop.f32.mrb[0].mxu0
        %v503 = vpop.f32.mrb[0].mxu0
        %v504 = vadd.f32 %v399, %v503
        %v505 = vpop.f32.mrb[0].mxu0
        %506 = vmatprep.mubr.bf16.mxu0 0
        %507 = vmatmul.mubr.bf16.gmra.mrb[0].mxu0 %v415
        %v508 = vpop.f32.mrb[0].mxu0
        %v509 = vadd.f32 %v399, %v508
        %v510 = vpop.f32.mrb[0].mxu0
        %v511 = vpop.f32.mrb[0].mxu0
        %v512 = vadd.f32 %v399, %v511
        %v513 = vpop.f32.mrb[0].mxu0
        %514 = vmatprep.mubr.bf16.mxu0 0
        %515 = vmatmul.mubr.bf16.gmra.mrb[0].mxu0 %v418
        %v516 = vpop.f32.mrb[0].mxu0
        %v517 = vadd.f32 %v399, %v516
        %v518 = vpop.f32.mrb[0].mxu0
        %v519 = vpop.f32.mrb[0].mxu0
        %v520 = vadd.f32 %v399, %v519
        %v521 = vpop.f32.mrb[0].mxu0
        %522 = vmatprep.mubr.bf16.mxu0 0
        %523 = vmatmul.mubr.bf16.gmra.mrb[0].mxu0 %v421
        %v524 = vpop.f32.mrb[0].mxu0
        %v525 = vadd.f32 %v399, %v524
        %v526 = vpop.f32.mrb[0].mxu0
        %v527 = vpop.f32.mrb[0].mxu0
        %v528 = vadd.f32 %v399, %v527
        %v529 = vpop.f32.mrb[0].mxu0
        %530 = vmatprep.mubr.bf16.mxu0 0
        %531 = vmatmul.mubr.bf16.gmra.mrb[0].mxu0 %v424
        %v532 = vpop.f32.mrb[0].mxu0
        %v533 = vadd.f32 %v399, %v532
        %v534 = vpop.f32.mrb[0].mxu0
        %v535 = vpop.f32.mrb[0].mxu0
        %v536 = vadd.f32 %v399, %v535
        %v537 = vpop.f32.mrb[0].mxu0
        %538 = vmatprep.mubr.bf16.mxu0 0
        %539 = vmatmul.mubr.bf16.gmra.mrb[0].mxu0 %v427
        %v540 = vpop.f32.mrb[0].mxu0
        %v541 = vadd.f32 %v399, %v540
        %v542 = vpop.f32.mrb[0].mxu0
        %v543 = vpop.f32.mrb[0].mxu0
        %v544 = vadd.f32 %v399, %v543
        %v545 = vpop.f32.mrb[0].mxu0
        %546 = vmatprep.mubr.bf16.mxu0 0
        %547 = vmatmul.mubr.bf16.gmra.mrb[0].mxu0 %v430
        %v548 = vpop.f32.mrb[0].mxu0
        %v549 = vadd.f32 %v399, %v548
        %v550 = vpop.f32.mrb[0].mxu0
        %v551 = vpop.f32.mrb[0].mxu0
        %v552 = vadd.f32 %v399, %v551
        %v553 = vpop.f32.mrb[0].mxu0
        %554 = vmatprep.mubr.bf16.mxu0 0
        %555 = vmatmul.mubr.bf16.gmra.mrb[0].mxu0 %v433
        %v556 = vpop.f32.mrb[0].mxu0
        %v557 = vadd.f32 %v399, %v556
        %v558 = vpop.f32.mrb[0].mxu0
        %v559 = vpop.f32.mrb[0].mxu0
        %v560 = vadd.f32 %v399, %v559
        %v561 = vpop.f32.mrb[0].mxu0
        %562 = vmatprep.mubr.bf16.mxu0 0
        %563 = vmatmul.mubr.bf16.gmra.mrb[0].mxu0 %v436
        %v564 = vpop.f32.mrb[0].mxu0
        %v565 = vadd.f32 %v399, %v564
        %v566 = vpop.f32.mrb[0].mxu0
        %v567 = vpop.f32.mrb[0].mxu0
        %v568 = vadd.f32 %v399, %v567
        %v569 = vpop.f32.mrb[0].mxu0
        %570 = vdwg.mxu0
        %v571 = vmax.f32 %v477, 0.0
        %v572 = vmax.f32 %v480, 0.0
        %v573 = vmax.f32 %v485, 0.0
        %v574 = vmax.f32 %v488, 0.0
        %v575 = vmax.f32 %v493, 0.0
        %v576 = vmax.f32 %v496, 0.0
        %v577 = vmax.f32 %v501, 0.0
        %v578 = vmax.f32 %v504, 0.0
        %v579 = vmax.f32 %v509, 0.0
        %v580 = vmax.f32 %v512, 0.0
        %v581 = vmax.f32 %v517, 0.0
        %v582 = vmax.f32 %v520, 0.0
        %v583 = vmax.f32 %v525, 0.0
        %v584 = vmax.f32 %v528, 0.0
        %v585 = vmax.f32 %v533, 0.0
        %v586 = vmax.f32 %v536, 0.0
        %v587 = vmax.f32 %v541, 0.0
        %v588 = vmax.f32 %v544, 0.0
        %v589 = vmax.f32 %v549, 0.0
        %v590 = vmax.f32 %v552, 0.0
        %v591 = vmax.f32 %v557, 0.0
        %v592 = vmax.f32 %v560, 0.0
        %v593 = vmax.f32 %v565, 0.0
        %v594 = vmax.f32 %v568, 0.0
        %v595 = vld [vmem:[%s4] sm:$0x1]
        %v596 = vpack.c.bf16 %v572, %v571
        %v597 = vpack.c.bf16 %v574, %v573
        %v598 = vpack.c.bf16 %v576, %v575
        %v599 = vpack.c.bf16 %v578, %v577
        %v600 = vpack.c.bf16 %v580, %v579
        %v601 = vpack.c.bf16 %v582, %v581
        %v602 = vpack.c.bf16 %v584, %v583
        %v603 = vpack.c.bf16 %v586, %v585
        %v604 = vpack.c.bf16 %v588, %v587
        %v605 = vpack.c.bf16 %v590, %v589
        %v606 = vpack.c.bf16 %v592, %v591
        %v607 = vpack.c.bf16 %v594, %v593
        %v608 = vld [vmem:[%s3] sm:$0xf]
        %v609 = vld [vmem:[%s3 + $0x4] sm:$0xf]
        %v610 = vld [vmem:[%s3 + $0x8] sm:$0xf]
        %v611 = vld [vmem:[%s3 + $0xc] sm:$0xf]
        %v612 = vld [vmem:[%s3 + $0x10] sm:$0xf]
        %v613 = vld [vmem:[%s3 + $0x14] sm:$0xf]
        %v614 = vld [vmem:[%s3 + $0x18] sm:$0xf]
        %v615 = vld [vmem:[%s3 + $0x1c] sm:$0xf]
        %v617 = vlaneseq
        %v618 = vshrl.u32 %v617, 7
        %v619 = vsub.s32 0, %v618
        %v620 = vrot.slane %v595, %v619
        %v630 = vunpack.c.l.b16 %v608
        %v631 = vunpack.c.l.b16 %v609
        %v632 = vunpack.c.l.b16 %v610
        %v633 = vunpack.c.l.b16 %v611
        %v634 = vunpack.c.l.b16 %v612
        %v635 = vunpack.c.l.b16 %v613
        %v636 = vunpack.c.l.b16 %v614
        %v637 = vunpack.c.l.b16 %v615
        %v638 = vpack.c.b16 %v631, %v630
        %v639 = vpack.c.b16 %v633, %v632
        %v640 = vpack.c.b16 %v635, %v634
        %v641 = vpack.c.b16 %v637, %v636
        %vm646 = vcmask 523264
        %v648 = vsel %vm646, %v596, 0
        %v651 = vsel %vm646, %v597, 0
        %v654 = vsel %vm646, %v598, 0
        %v657 = vsel %vm646, %v599, 0
        %v660 = vsel %vm646, %v600, 0
        %v663 = vsel %vm646, %v601, 0
        %v666 = vsel %vm646, %v602, 0
        %v669 = vsel %vm646, %v603, 0
        %v672 = vsel %vm646, %v604, 0
        %v675 = vsel %vm646, %v605, 0
        %v678 = vsel %vm646, %v606, 0
        %v681 = vsel %vm646, %v607, 0
        %683 = vmatprep.subr.bf16.mxu0 0
        %684 = vmatpush1.bf16.msra.mxu0 %v638
        %685 = vmatprep.subr.bf16.mxu0 0
        %686 = vmatpush1.bf16.msra.mxu0 %v639
        %687 = vmatprep.subr.bf16.mxu0 0
        %688 = vmatpush1.bf16.msra.mxu0 %v640
        %689 = vmatprep.subr.bf16.mxu0 0
        %690 = vmatpush1.bf16.msra.mxu0 %v641
        %691 = vmatprep.subr.bf16.mxu0 0
        %692 = vmatpush1.bf16.msra.mxu0 0
        %693 = vmatprep.subr.bf16.mxu0 0
        %694 = vmatpush1.bf16.msra.mxu0 0
        %695 = vmatprep.subr.bf16.mxu0 0
        %696 = vmatpush1.bf16.msra.mxu0 0
        %697 = vmatprep.subr.bf16.mxu0 0
        %698 = vmatpush1.bf16.msra.mxu0 0
        %699 = vmatprep.subr.bf16.mxu0 0
        %700 = vmatpush1.bf16.msra.mxu0 0
        %701 = vmatprep.subr.bf16.mxu0 0
        %702 = vmatpush1.bf16.msra.mxu0 0
        %703 = vmatprep.subr.bf16.mxu0 0
        %704 = vmatpush1.bf16.msra.mxu0 0
        %705 = vmatprep.subr.bf16.mxu0 0
        %706 = vmatpush1.bf16.msra.mxu0 0
        %707 = vmatprep.subr.bf16.mxu0 0
        %708 = vmatpush1.bf16.msra.mxu0 0
        %709 = vmatprep.subr.bf16.mxu0 0
        %710 = vmatpush1.bf16.msra.mxu0 0
        %711 = vmatprep.subr.bf16.mxu0 0
        %712 = vmatpush1.bf16.msra.mxu0 0
        %713 = vmatprep.subr.bf16.mxu0 0
        %714 = vmatpush1.bf16.msra.mxu0 0
        %715 = vmatprep.mubr.bf16.mxu0 0
        %716 = vmatmul.mubr.bf16.gmra.mrb[0].mxu0 %v648
        %v717 = vpop.f32.mrb[0].mxu0
        %v718 = vadd.f32 %v620, %v717
        %v719 = vpop.f32.mrb[0].mxu0
        %v720 = vpop.f32.mrb[0].mxu0
        %v721 = vadd.f32 %v620, %v720
        %v722 = vpop.f32.mrb[0].mxu0
        %723 = vmatprep.mubr.bf16.mxu0 0
        %724 = vmatmul.mubr.bf16.gmra.mrb[0].mxu0 %v651
        %v725 = vpop.f32.mrb[0].mxu0
        %v726 = vadd.f32 %v620, %v725
        %v727 = vpop.f32.mrb[0].mxu0
        %v728 = vpop.f32.mrb[0].mxu0
        %v729 = vadd.f32 %v620, %v728
        %v730 = vpop.f32.mrb[0].mxu0
        %731 = vmatprep.mubr.bf16.mxu0 0
        %732 = vmatmul.mubr.bf16.gmra.mrb[0].mxu0 %v654
        %v733 = vpop.f32.mrb[0].mxu0
        %v734 = vadd.f32 %v620, %v733
        %v735 = vpop.f32.mrb[0].mxu0
        %v736 = vpop.f32.mrb[0].mxu0
        %v737 = vadd.f32 %v620, %v736
        %v738 = vpop.f32.mrb[0].mxu0
        %739 = vmatprep.mubr.bf16.mxu0 0
        %740 = vmatmul.mubr.bf16.gmra.mrb[0].mxu0 %v657
        %v741 = vpop.f32.mrb[0].mxu0
        %v742 = vadd.f32 %v620, %v741
        %v743 = vpop.f32.mrb[0].mxu0
        %v744 = vpop.f32.mrb[0].mxu0
        %v745 = vadd.f32 %v620, %v744
        %v746 = vpop.f32.mrb[0].mxu0
        %747 = vmatprep.mubr.bf16.mxu0 0
        %748 = vmatmul.mubr.bf16.gmra.mrb[0].mxu0 %v660
        %v749 = vpop.f32.mrb[0].mxu0
        %v750 = vadd.f32 %v620, %v749
        %v751 = vpop.f32.mrb[0].mxu0
        %v752 = vpop.f32.mrb[0].mxu0
        %v753 = vadd.f32 %v620, %v752
        %v754 = vpop.f32.mrb[0].mxu0
        %755 = vmatprep.mubr.bf16.mxu0 0
        %756 = vmatmul.mubr.bf16.gmra.mrb[0].mxu0 %v663
        %v757 = vpop.f32.mrb[0].mxu0
        %v758 = vadd.f32 %v620, %v757
        %v759 = vpop.f32.mrb[0].mxu0
        %v760 = vpop.f32.mrb[0].mxu0
        %v761 = vadd.f32 %v620, %v760
        %v762 = vpop.f32.mrb[0].mxu0
        %763 = vmatprep.mubr.bf16.mxu0 0
        %764 = vmatmul.mubr.bf16.gmra.mrb[0].mxu0 %v666
        %v765 = vpop.f32.mrb[0].mxu0
        %v766 = vadd.f32 %v620, %v765
        %v767 = vpop.f32.mrb[0].mxu0
        %v768 = vpop.f32.mrb[0].mxu0
        %v769 = vadd.f32 %v620, %v768
        %v770 = vpop.f32.mrb[0].mxu0
        %771 = vmatprep.mubr.bf16.mxu0 0
        %772 = vmatmul.mubr.bf16.gmra.mrb[0].mxu0 %v669
        %v773 = vpop.f32.mrb[0].mxu0
        %v774 = vadd.f32 %v620, %v773
        %v775 = vpop.f32.mrb[0].mxu0
        %v776 = vpop.f32.mrb[0].mxu0
        %v777 = vadd.f32 %v620, %v776
        %v778 = vpop.f32.mrb[0].mxu0
        %779 = vmatprep.mubr.bf16.mxu0 0
        %780 = vmatmul.mubr.bf16.gmra.mrb[0].mxu0 %v672
        %v781 = vpop.f32.mrb[0].mxu0
        %v782 = vadd.f32 %v620, %v781
        %v783 = vpop.f32.mrb[0].mxu0
        %v784 = vpop.f32.mrb[0].mxu0
        %v785 = vadd.f32 %v620, %v784
        %v786 = vpop.f32.mrb[0].mxu0
        %787 = vmatprep.mubr.bf16.mxu0 0
        %788 = vmatmul.mubr.bf16.gmra.mrb[0].mxu0 %v675
        %v789 = vpop.f32.mrb[0].mxu0
        %v790 = vadd.f32 %v620, %v789
        %v791 = vpop.f32.mrb[0].mxu0
        %v792 = vpop.f32.mrb[0].mxu0
        %v793 = vadd.f32 %v620, %v792
        %v794 = vpop.f32.mrb[0].mxu0
        %795 = vmatprep.mubr.bf16.mxu0 0
        %796 = vmatmul.mubr.bf16.gmra.mrb[0].mxu0 %v678
        %v797 = vpop.f32.mrb[0].mxu0
        %v798 = vadd.f32 %v620, %v797
        %v799 = vpop.f32.mrb[0].mxu0
        %v800 = vpop.f32.mrb[0].mxu0
        %v801 = vadd.f32 %v620, %v800
        %v802 = vpop.f32.mrb[0].mxu0
        %803 = vmatprep.mubr.bf16.mxu0 0
        %804 = vmatmul.mubr.bf16.gmra.mrb[0].mxu0 %v681
        %v805 = vpop.f32.mrb[0].mxu0
        %v806 = vadd.f32 %v620, %v805
        %v807 = vpop.f32.mrb[0].mxu0
        %v808 = vpop.f32.mrb[0].mxu0
        %v809 = vadd.f32 %v620, %v808
        %v810 = vpop.f32.mrb[0].mxu0
        %811 = vdwg.mxu0
        %v812 = vmax.f32 %v718, 0.0
        %v813 = vmax.f32 %v721, 0.0
        %v814 = vmax.f32 %v726, 0.0
        %v815 = vmax.f32 %v729, 0.0
        %v816 = vmax.f32 %v734, 0.0
        %v817 = vmax.f32 %v737, 0.0
        %v818 = vmax.f32 %v742, 0.0
        %v819 = vmax.f32 %v745, 0.0
        %v820 = vmax.f32 %v750, 0.0
        %v821 = vmax.f32 %v753, 0.0
        %v822 = vmax.f32 %v758, 0.0
        %v823 = vmax.f32 %v761, 0.0
        %v824 = vmax.f32 %v766, 0.0
        %v825 = vmax.f32 %v769, 0.0
        %v826 = vmax.f32 %v774, 0.0
        %v827 = vmax.f32 %v777, 0.0
        %v828 = vmax.f32 %v782, 0.0
        %v829 = vmax.f32 %v785, 0.0
        %v830 = vmax.f32 %v790, 0.0
        %v831 = vmax.f32 %v793, 0.0
        %v832 = vmax.f32 %v798, 0.0
        %v833 = vmax.f32 %v801, 0.0
        %v834 = vmax.f32 %v806, 0.0
        %v835 = vmax.f32 %v809, 0.0
        %v836 = vld [vmem:[%s6] sm:$0x1]
        %v837 = vpack.c.bf16 %v813, %v812
        %v838 = vpack.c.bf16 %v815, %v814
        %v839 = vpack.c.bf16 %v817, %v816
        %v840 = vpack.c.bf16 %v819, %v818
        %v841 = vpack.c.bf16 %v821, %v820
        %v842 = vpack.c.bf16 %v823, %v822
        %v843 = vpack.c.bf16 %v825, %v824
        %v844 = vpack.c.bf16 %v827, %v826
        %v845 = vpack.c.bf16 %v829, %v828
        %v846 = vpack.c.bf16 %v831, %v830
        %v847 = vpack.c.bf16 %v833, %v832
        %v848 = vpack.c.bf16 %v835, %v834
        %v849 = vld [vmem:[%s5] sm:$0xf]
        %v850 = vld [vmem:[%s5 + $0x4] sm:$0xf]
        %v851 = vld [vmem:[%s5 + $0x8] sm:$0xf]
        %v852 = vld [vmem:[%s5 + $0xc] sm:$0xf]
        %v853 = vld [vmem:[%s5 + $0x10] sm:$0xf]
        %v854 = vld [vmem:[%s5 + $0x14] sm:$0xf]
        %v855 = vld [vmem:[%s5 + $0x18] sm:$0xf]
        %v856 = vld [vmem:[%s5 + $0x1c] sm:$0xf]
        %v858 = vlaneseq
        %v859 = vshrl.u32 %v858, 7
        %v860 = vsub.s32 0, %v859
        %v861 = vrot.slane %v836, %v860
        %v871 = vunpack.c.l.b16 %v849
        %v872 = vunpack.c.l.b16 %v850
        %v873 = vunpack.c.l.b16 %v851
        %v874 = vunpack.c.l.b16 %v852
        %v875 = vunpack.c.l.b16 %v853
        %v876 = vunpack.c.l.b16 %v854
        %v877 = vunpack.c.l.b16 %v855
        %v878 = vunpack.c.l.b16 %v856
        %v879 = vpack.c.b16 %v872, %v871
        %v880 = vpack.c.b16 %v874, %v873
        %v881 = vpack.c.b16 %v876, %v875
        %v882 = vpack.c.b16 %v878, %v877
        %v888 = vsel %vm646, %v837, 0
        %v891 = vsel %vm646, %v838, 0
        %v894 = vsel %vm646, %v839, 0
        %v897 = vsel %vm646, %v840, 0
        %v900 = vsel %vm646, %v841, 0
        %v903 = vsel %vm646, %v842, 0
        %v906 = vsel %vm646, %v843, 0
        %v909 = vsel %vm646, %v844, 0
        %v912 = vsel %vm646, %v845, 0
        %v915 = vsel %vm646, %v846, 0
        %v918 = vsel %vm646, %v847, 0
        %v921 = vsel %vm646, %v848, 0
        %923 = vmatprep.subr.bf16.mxu0 0
        %924 = vmatpush1.bf16.msra.mxu0 %v879
        %925 = vmatprep.subr.bf16.mxu0 0
        %926 = vmatpush1.bf16.msra.mxu0 %v880
        %927 = vmatprep.subr.bf16.mxu0 0
        %928 = vmatpush1.bf16.msra.mxu0 %v881
        %929 = vmatprep.subr.bf16.mxu0 0
        %930 = vmatpush1.bf16.msra.mxu0 %v882
        %931 = vmatprep.subr.bf16.mxu0 0
        %932 = vmatpush1.bf16.msra.mxu0 0
        %933 = vmatprep.subr.bf16.mxu0 0
        %934 = vmatpush1.bf16.msra.mxu0 0
        %935 = vmatprep.subr.bf16.mxu0 0
        %936 = vmatpush1.bf16.msra.mxu0 0
        %937 = vmatprep.subr.bf16.mxu0 0
        %938 = vmatpush1.bf16.msra.mxu0 0
        %939 = vmatprep.subr.bf16.mxu0 0
        %940 = vmatpush1.bf16.msra.mxu0 0
        %941 = vmatprep.subr.bf16.mxu0 0
        %942 = vmatpush1.bf16.msra.mxu0 0
        %943 = vmatprep.subr.bf16.mxu0 0
        %944 = vmatpush1.bf16.msra.mxu0 0
        %945 = vmatprep.subr.bf16.mxu0 0
        %946 = vmatpush1.bf16.msra.mxu0 0
        %947 = vmatprep.subr.bf16.mxu0 0
        %948 = vmatpush1.bf16.msra.mxu0 0
        %949 = vmatprep.subr.bf16.mxu0 0
        %950 = vmatpush1.bf16.msra.mxu0 0
        %951 = vmatprep.subr.bf16.mxu0 0
        %952 = vmatpush1.bf16.msra.mxu0 0
        %953 = vmatprep.subr.bf16.mxu0 0
        %954 = vmatpush1.bf16.msra.mxu0 0
        %955 = vmatprep.mubr.bf16.mxu0 0
        %956 = vmatmul.mubr.bf16.gmra.mrb[0].mxu0 %v888
        %v957 = vpop.f32.mrb[0].mxu0
        %v958 = vadd.f32 %v861, %v957
        %v959 = vpop.f32.mrb[0].mxu0
        %v960 = vpop.f32.mrb[0].mxu0
        %v961 = vadd.f32 %v861, %v960
        %v962 = vpop.f32.mrb[0].mxu0
        %963 = vmatprep.mubr.bf16.mxu0 0
        %964 = vmatmul.mubr.bf16.gmra.mrb[0].mxu0 %v891
        %v965 = vpop.f32.mrb[0].mxu0
        %v966 = vadd.f32 %v861, %v965
        %v967 = vpop.f32.mrb[0].mxu0
        %v968 = vpop.f32.mrb[0].mxu0
        %v969 = vadd.f32 %v861, %v968
        %v970 = vpop.f32.mrb[0].mxu0
        %971 = vmatprep.mubr.bf16.mxu0 0
        %972 = vmatmul.mubr.bf16.gmra.mrb[0].mxu0 %v894
        %v973 = vpop.f32.mrb[0].mxu0
        %v974 = vadd.f32 %v861, %v973
        %v975 = vpop.f32.mrb[0].mxu0
        %v976 = vpop.f32.mrb[0].mxu0
        %v977 = vadd.f32 %v861, %v976
        %v978 = vpop.f32.mrb[0].mxu0
        %979 = vmatprep.mubr.bf16.mxu0 0
        %980 = vmatmul.mubr.bf16.gmra.mrb[0].mxu0 %v897
        %v981 = vpop.f32.mrb[0].mxu0
        %v982 = vadd.f32 %v861, %v981
        %v983 = vpop.f32.mrb[0].mxu0
        %v984 = vpop.f32.mrb[0].mxu0
        %v985 = vadd.f32 %v861, %v984
        %v986 = vpop.f32.mrb[0].mxu0
        %987 = vmatprep.mubr.bf16.mxu0 0
        %988 = vmatmul.mubr.bf16.gmra.mrb[0].mxu0 %v900
        %v989 = vpop.f32.mrb[0].mxu0
        %v990 = vadd.f32 %v861, %v989
        %v991 = vpop.f32.mrb[0].mxu0
        %v992 = vpop.f32.mrb[0].mxu0
        %v993 = vadd.f32 %v861, %v992
        %v994 = vpop.f32.mrb[0].mxu0
        %995 = vmatprep.mubr.bf16.mxu0 0
        %996 = vmatmul.mubr.bf16.gmra.mrb[0].mxu0 %v903
        %v997 = vpop.f32.mrb[0].mxu0
        %v998 = vadd.f32 %v861, %v997
        %v999 = vpop.f32.mrb[0].mxu0
        %v1000 = vpop.f32.mrb[0].mxu0
        %v1001 = vadd.f32 %v861, %v1000
        %v1002 = vpop.f32.mrb[0].mxu0
        %1003 = vmatprep.mubr.bf16.mxu0 0
        %1004 = vmatmul.mubr.bf16.gmra.mrb[0].mxu0 %v906
        %v1005 = vpop.f32.mrb[0].mxu0
        %v1006 = vadd.f32 %v861, %v1005
        %v1007 = vpop.f32.mrb[0].mxu0
        %v1008 = vpop.f32.mrb[0].mxu0
        %v1009 = vadd.f32 %v861, %v1008
        %v1010 = vpop.f32.mrb[0].mxu0
        %1011 = vmatprep.mubr.bf16.mxu0 0
        %1012 = vmatmul.mubr.bf16.gmra.mrb[0].mxu0 %v909
        %v1013 = vpop.f32.mrb[0].mxu0
        %v1014 = vadd.f32 %v861, %v1013
        %v1015 = vpop.f32.mrb[0].mxu0
        %v1016 = vpop.f32.mrb[0].mxu0
        %v1017 = vadd.f32 %v861, %v1016
        %v1018 = vpop.f32.mrb[0].mxu0
        %1019 = vmatprep.mubr.bf16.mxu0 0
        %1020 = vmatmul.mubr.bf16.gmra.mrb[0].mxu0 %v912
        %v1021 = vpop.f32.mrb[0].mxu0
        %v1022 = vadd.f32 %v861, %v1021
        %v1023 = vpop.f32.mrb[0].mxu0
        %v1024 = vpop.f32.mrb[0].mxu0
        %v1025 = vadd.f32 %v861, %v1024
        %v1026 = vpop.f32.mrb[0].mxu0
        %1027 = vmatprep.mubr.bf16.mxu0 0
        %1028 = vmatmul.mubr.bf16.gmra.mrb[0].mxu0 %v915
        %v1029 = vpop.f32.mrb[0].mxu0
        %v1030 = vadd.f32 %v861, %v1029
        %v1031 = vpop.f32.mrb[0].mxu0
        %v1032 = vpop.f32.mrb[0].mxu0
        %v1033 = vadd.f32 %v861, %v1032
        %v1034 = vpop.f32.mrb[0].mxu0
        %1035 = vmatprep.mubr.bf16.mxu0 0
        %1036 = vmatmul.mubr.bf16.gmra.mrb[0].mxu0 %v918
        %v1037 = vpop.f32.mrb[0].mxu0
        %v1038 = vadd.f32 %v861, %v1037
        %v1039 = vpop.f32.mrb[0].mxu0
        %v1040 = vpop.f32.mrb[0].mxu0
        %v1041 = vadd.f32 %v861, %v1040
        %v1042 = vpop.f32.mrb[0].mxu0
        %1043 = vmatprep.mubr.bf16.mxu0 0
        %1044 = vmatmul.mubr.bf16.gmra.mrb[0].mxu0 %v921
        %v1045 = vpop.f32.mrb[0].mxu0
        %v1046 = vadd.f32 %v861, %v1045
        %v1047 = vpop.f32.mrb[0].mxu0
        %v1048 = vpop.f32.mrb[0].mxu0
        %v1049 = vadd.f32 %v861, %v1048
        %v1050 = vpop.f32.mrb[0].mxu0
        %1051 = vdwg.mxu0
        %v1052 = vmax.f32 %v958, 0.0
        %v1053 = vmax.f32 %v961, 0.0
        %v1054 = vmax.f32 %v966, 0.0
        %v1055 = vmax.f32 %v969, 0.0
        %v1056 = vmax.f32 %v974, 0.0
        %v1057 = vmax.f32 %v977, 0.0
        %v1058 = vmax.f32 %v982, 0.0
        %v1059 = vmax.f32 %v985, 0.0
        %v1060 = vmax.f32 %v990, 0.0
        %v1061 = vmax.f32 %v993, 0.0
        %v1062 = vmax.f32 %v998, 0.0
        %v1063 = vmax.f32 %v1001, 0.0
        %v1064 = vmax.f32 %v1006, 0.0
        %v1065 = vmax.f32 %v1009, 0.0
        %v1066 = vmax.f32 %v1014, 0.0
        %v1067 = vmax.f32 %v1017, 0.0
        %v1068 = vmax.f32 %v1022, 0.0
        %v1069 = vmax.f32 %v1025, 0.0
        %v1070 = vmax.f32 %v1030, 0.0
        %v1071 = vmax.f32 %v1033, 0.0
        %v1072 = vmax.f32 %v1038, 0.0
        %v1073 = vmax.f32 %v1041, 0.0
        %v1074 = vmax.f32 %v1046, 0.0
        %v1075 = vmax.f32 %v1049, 0.0
        %v1076 = vld [vmem:[#allocation2] sm:$0x1]
        %v1077 = vpack.c.bf16 %v1053, %v1052
        %v1078 = vpack.c.bf16 %v1055, %v1054
        %v1079 = vpack.c.bf16 %v1057, %v1056
        %v1080 = vpack.c.bf16 %v1059, %v1058
        %v1081 = vpack.c.bf16 %v1061, %v1060
        %v1082 = vpack.c.bf16 %v1063, %v1062
        %v1083 = vpack.c.bf16 %v1065, %v1064
        %v1084 = vpack.c.bf16 %v1067, %v1066
        %v1085 = vpack.c.bf16 %v1069, %v1068
        %v1086 = vpack.c.bf16 %v1071, %v1070
        %v1087 = vpack.c.bf16 %v1073, %v1072
        %v1088 = vpack.c.bf16 %v1075, %v1074
        %v1089 = vld [vmem:[%s7] sm:$0xf]
        %v1090 = vld [vmem:[%s7 + $0x4] sm:$0xf]
        %v1091 = vld [vmem:[%s7 + $0x8] sm:$0xf]
        %v1092 = vld [vmem:[%s7 + $0xc] sm:$0xf]
        %v1093 = vld [vmem:[%s7 + $0x10] sm:$0xf]
        %v1094 = vld [vmem:[%s7 + $0x14] sm:$0xf]
        %v1095 = vld [vmem:[%s7 + $0x18] sm:$0xf]
        %v1096 = vld [vmem:[%s7 + $0x1c] sm:$0xf]
        %v1098 = vlaneseq
        %v1099 = vshrl.u32 %v1098, 7
        %v1100 = vsub.s32 0, %v1099
        %v1101 = vrot.slane %v1076, %v1100
        %v1111 = vunpack.c.l.b16 %v1089
        %v1112 = vunpack.c.l.b16 %v1090
        %v1113 = vunpack.c.l.b16 %v1091
        %v1114 = vunpack.c.l.b16 %v1092
        %v1115 = vunpack.c.l.b16 %v1093
        %v1116 = vunpack.c.l.b16 %v1094
        %v1117 = vunpack.c.l.b16 %v1095
        %v1118 = vunpack.c.l.b16 %v1096
        %v1119 = vpack.c.b16 %v1112, %v1111
        %v1120 = vpack.c.b16 %v1114, %v1113
        %v1121 = vpack.c.b16 %v1116, %v1115
        %v1122 = vpack.c.b16 %v1118, %v1117
        %v1128 = vsel %vm646, %v1077, 0
        %v1131 = vsel %vm646, %v1078, 0
        %v1134 = vsel %vm646, %v1079, 0
        %v1137 = vsel %vm646, %v1080, 0
        %v1140 = vsel %vm646, %v1081, 0
        %v1143 = vsel %vm646, %v1082, 0
        %v1146 = vsel %vm646, %v1083, 0
        %v1149 = vsel %vm646, %v1084, 0
        %v1152 = vsel %vm646, %v1085, 0
        %v1155 = vsel %vm646, %v1086, 0
        %v1158 = vsel %vm646, %v1087, 0
        %v1161 = vsel %vm646, %v1088, 0
        %1163 = vmatprep.subr.bf16.mxu0 0
        %1164 = vmatpush1.bf16.msra.mxu0 %v1119
        %1165 = vmatprep.subr.bf16.mxu0 0
        %1166 = vmatpush1.bf16.msra.mxu0 %v1120
        %1167 = vmatprep.subr.bf16.mxu0 0
        %1168 = vmatpush1.bf16.msra.mxu0 %v1121
        %1169 = vmatprep.subr.bf16.mxu0 0
        %1170 = vmatpush1.bf16.msra.mxu0 %v1122
        %1171 = vmatprep.subr.bf16.mxu0 0
        %1172 = vmatpush1.bf16.msra.mxu0 0
        %1173 = vmatprep.subr.bf16.mxu0 0
        %1174 = vmatpush1.bf16.msra.mxu0 0
        %1175 = vmatprep.subr.bf16.mxu0 0
        %1176 = vmatpush1.bf16.msra.mxu0 0
        %1177 = vmatprep.subr.bf16.mxu0 0
        %1178 = vmatpush1.bf16.msra.mxu0 0
        %1179 = vmatprep.subr.bf16.mxu0 0
        %1180 = vmatpush1.bf16.msra.mxu0 0
        %1181 = vmatprep.subr.bf16.mxu0 0
        %1182 = vmatpush1.bf16.msra.mxu0 0
        %1183 = vmatprep.subr.bf16.mxu0 0
        %1184 = vmatpush1.bf16.msra.mxu0 0
        %1185 = vmatprep.subr.bf16.mxu0 0
        %1186 = vmatpush1.bf16.msra.mxu0 0
        %1187 = vmatprep.subr.bf16.mxu0 0
        %1188 = vmatpush1.bf16.msra.mxu0 0
        %1189 = vmatprep.subr.bf16.mxu0 0
        %1190 = vmatpush1.bf16.msra.mxu0 0
        %1191 = vmatprep.subr.bf16.mxu0 0
        %1192 = vmatpush1.bf16.msra.mxu0 0
        %1193 = vmatprep.subr.bf16.mxu0 0
        %1194 = vmatpush1.bf16.msra.mxu0 0
        %1195 = vmatprep.mubr.bf16.mxu0 0
        %1196 = vmatmul.mubr.bf16.gmra.mrb[0].mxu0 %v1128
        %v1197 = vpop.f32.mrb[0].mxu0
        %v1198 = vadd.f32 %v1101, %v1197
        %v1199 = vpop.f32.mrb[0].mxu0
        %v1200 = vpop.f32.mrb[0].mxu0
        %v1201 = vadd.f32 %v1101, %v1200
        %v1202 = vpop.f32.mrb[0].mxu0
        %1203 = vmatprep.mubr.bf16.mxu0 0
        %1204 = vmatmul.mubr.bf16.gmra.mrb[0].mxu0 %v1131
        %v1205 = vpop.f32.mrb[0].mxu0
        %v1206 = vadd.f32 %v1101, %v1205
        %v1207 = vpop.f32.mrb[0].mxu0
        %v1208 = vpop.f32.mrb[0].mxu0
        %v1209 = vadd.f32 %v1101, %v1208
        %v1210 = vpop.f32.mrb[0].mxu0
        %1211 = vmatprep.mubr.bf16.mxu0 0
        %1212 = vmatmul.mubr.bf16.gmra.mrb[0].mxu0 %v1134
        %v1213 = vpop.f32.mrb[0].mxu0
        %v1214 = vadd.f32 %v1101, %v1213
        %v1215 = vpop.f32.mrb[0].mxu0
        %v1216 = vpop.f32.mrb[0].mxu0
        %v1217 = vadd.f32 %v1101, %v1216
        %v1218 = vpop.f32.mrb[0].mxu0
        %1219 = vmatprep.mubr.bf16.mxu0 0
        %1220 = vmatmul.mubr.bf16.gmra.mrb[0].mxu0 %v1137
        %v1221 = vpop.f32.mrb[0].mxu0
        %v1222 = vadd.f32 %v1101, %v1221
        %v1223 = vpop.f32.mrb[0].mxu0
        %v1224 = vpop.f32.mrb[0].mxu0
        %v1225 = vadd.f32 %v1101, %v1224
        %v1226 = vpop.f32.mrb[0].mxu0
        %1227 = vmatprep.mubr.bf16.mxu0 0
        %1228 = vmatmul.mubr.bf16.gmra.mrb[0].mxu0 %v1140
        %v1229 = vpop.f32.mrb[0].mxu0
        %v1230 = vadd.f32 %v1101, %v1229
        %v1231 = vpop.f32.mrb[0].mxu0
        %v1232 = vpop.f32.mrb[0].mxu0
        %v1233 = vadd.f32 %v1101, %v1232
        %v1234 = vpop.f32.mrb[0].mxu0
        %1235 = vmatprep.mubr.bf16.mxu0 0
        %1236 = vmatmul.mubr.bf16.gmra.mrb[0].mxu0 %v1143
        %v1237 = vpop.f32.mrb[0].mxu0
        %v1238 = vadd.f32 %v1101, %v1237
        %v1239 = vpop.f32.mrb[0].mxu0
        %v1240 = vpop.f32.mrb[0].mxu0
        %v1241 = vadd.f32 %v1101, %v1240
        %v1242 = vpop.f32.mrb[0].mxu0
        %1243 = vmatprep.mubr.bf16.mxu0 0
        %1244 = vmatmul.mubr.bf16.gmra.mrb[0].mxu0 %v1146
        %v1245 = vpop.f32.mrb[0].mxu0
        %v1246 = vadd.f32 %v1101, %v1245
        %v1247 = vpop.f32.mrb[0].mxu0
        %v1248 = vpop.f32.mrb[0].mxu0
        %v1249 = vadd.f32 %v1101, %v1248
        %v1250 = vpop.f32.mrb[0].mxu0
        %1251 = vmatprep.mubr.bf16.mxu0 0
        %1252 = vmatmul.mubr.bf16.gmra.mrb[0].mxu0 %v1149
        %v1253 = vpop.f32.mrb[0].mxu0
        %v1254 = vadd.f32 %v1101, %v1253
        %v1255 = vpop.f32.mrb[0].mxu0
        %v1256 = vpop.f32.mrb[0].mxu0
        %v1257 = vadd.f32 %v1101, %v1256
        %v1258 = vpop.f32.mrb[0].mxu0
        %1259 = vmatprep.mubr.bf16.mxu0 0
        %1260 = vmatmul.mubr.bf16.gmra.mrb[0].mxu0 %v1152
        %v1261 = vpop.f32.mrb[0].mxu0
        %v1262 = vadd.f32 %v1101, %v1261
        %v1263 = vpop.f32.mrb[0].mxu0
        %v1264 = vpop.f32.mrb[0].mxu0
        %v1265 = vadd.f32 %v1101, %v1264
        %v1266 = vpop.f32.mrb[0].mxu0
        %1267 = vmatprep.mubr.bf16.mxu0 0
        %1268 = vmatmul.mubr.bf16.gmra.mrb[0].mxu0 %v1155
        %v1269 = vpop.f32.mrb[0].mxu0
        %v1270 = vadd.f32 %v1101, %v1269
        %v1271 = vpop.f32.mrb[0].mxu0
        %v1272 = vpop.f32.mrb[0].mxu0
        %v1273 = vadd.f32 %v1101, %v1272
        %v1274 = vpop.f32.mrb[0].mxu0
        %1275 = vmatprep.mubr.bf16.mxu0 0
        %1276 = vmatmul.mubr.bf16.gmra.mrb[0].mxu0 %v1158
        %v1277 = vpop.f32.mrb[0].mxu0
        %v1278 = vadd.f32 %v1101, %v1277
        %v1279 = vpop.f32.mrb[0].mxu0
        %v1280 = vpop.f32.mrb[0].mxu0
        %v1281 = vadd.f32 %v1101, %v1280
        %v1282 = vpop.f32.mrb[0].mxu0
        %1283 = vmatprep.mubr.bf16.mxu0 0
        %1284 = vmatmul.mubr.bf16.gmra.mrb[0].mxu0 %v1161
        %v1285 = vpop.f32.mrb[0].mxu0
        %v1286 = vadd.f32 %v1101, %v1285
        %v1287 = vpop.f32.mrb[0].mxu0
        %v1288 = vpop.f32.mrb[0].mxu0
        %v1289 = vadd.f32 %v1101, %v1288
        %v1290 = vpop.f32.mrb[0].mxu0
        %1291 = vdwg.mxu0
        %vm1292 = vcmask 7168
        %1293 = vst.msk [vmem:[%s336] sm:$0xff] %vm1292, %v1198
        %1294 = vst.msk [vmem:[%s336 + $0x8] sm:$0xff] %vm1292, %v1201
        %1295 = vst.msk [vmem:[%s336 + $0x10] sm:$0xff] %vm1292, %v1206
        %1296 = vst.msk [vmem:[%s336 + $0x18] sm:$0xff] %vm1292, %v1209
        %1297 = vst.msk [vmem:[%s336 + $0x20] sm:$0xff] %vm1292, %v1214
        %1298 = vst.msk [vmem:[%s336 + $0x28] sm:$0xff] %vm1292, %v1217
        %1299 = vst.msk [vmem:[%s336 + $0x30] sm:$0xff] %vm1292, %v1222
        %1300 = vst.msk [vmem:[%s336 + $0x38] sm:$0xff] %vm1292, %v1225
        %1301 = vst.msk [vmem:[%s336 + $0x40] sm:$0xff] %vm1292, %v1230
        %1302 = vst.msk [vmem:[%s336 + $0x48] sm:$0xff] %vm1292, %v1233
        %1303 = vst.msk [vmem:[%s336 + $0x50] sm:$0xff] %vm1292, %v1238
        %1304 = vst.msk [vmem:[%s336 + $0x58] sm:$0xff] %vm1292, %v1241
        %1305 = vst.msk [vmem:[%s336 + $0x60] sm:$0xff] %vm1292, %v1246
        %1306 = vst.msk [vmem:[%s336 + $0x68] sm:$0xff] %vm1292, %v1249
        %1307 = vst.msk [vmem:[%s336 + $0x70] sm:$0xff] %vm1292, %v1254
        %1308 = vst.msk [vmem:[%s336 + $0x78] sm:$0xff] %vm1292, %v1257
        %1309 = vst.msk [vmem:[%s336 + $0x80] sm:$0xff] %vm1292, %v1262
        %1310 = vst.msk [vmem:[%s336 + $0x88] sm:$0xff] %vm1292, %v1265
        %1311 = vst.msk [vmem:[%s336 + $0x90] sm:$0xff] %vm1292, %v1270
        %1312 = vst.msk [vmem:[%s336 + $0x98] sm:$0xff] %vm1292, %v1273
        %1313 = vst.msk [vmem:[%s336 + $0xa0] sm:$0xff] %vm1292, %v1278
        %1314 = vst.msk [vmem:[%s336 + $0xa8] sm:$0xff] %vm1292, %v1281
        %1315 = vst.msk [vmem:[%s336 + $0xb0] sm:$0xff] %vm1292, %v1286
        %1316 = vst.msk [vmem:[%s336 + $0xb8] sm:$0xff] %vm1292, %v1289
        %s1317 = sand.u32 %s224, 1
        %s1318 = sand.u32 %s224, 1
        %s1319 = smul.addr %s1318, 192
        %s1320 = scalar_lea.vmem [#allocation3], %s1319
        // Predicated region
        $region57: #{tpu_custom_call.1} parent=55 // pred_check
          %p1321 = pneg %p234
        $region58: #{tpu_custom_call.1} parent=55 // pred_check_branch
          %1323 = sbr.rel (%p1321) target = $region60
        $region59: #{tpu_custom_call.1} parent=55 // pred_region
          %s1324 = smul.u32 24, %s22
          %s1325 = ssub.s32 64, %s1324
          %p1326 = scmp.lt.s32.totalorder %s1325, 24
          %s1327 = scalar_select %p1326, %s1325, 24
          %s1328 = smul.u32 128, %s1327
          %p1329 = scmp.ne.s32.totalorder 0, %s1328
          %s1330 = smul.addr %s1324, 8
          %s1331 = scalar_lea.vmem %s9, %s1330
          // Predicated region
          $region61: #{tpu_custom_call.1} parent=59 // pred_check
            %p1332 = pneg %p1329
          $region62: #{tpu_custom_call.1} parent=59 // pred_check_branch
            %1334 = sbr.rel (%p1332) target = $region64
          $region63: #{tpu_custom_call.1} parent=59 // pred_region
            // Predicated region
            $region65: #{tpu_custom_call.1} parent=63 // pred_check
              _
            $region66: #{tpu_custom_call.1} parent=63 // pred_check_branch
              %1336 = sbr.rel (0) target = $region68
            $region67: #{tpu_custom_call.1} parent=63 // pred_region
              // Predicated region
              $region87: #{tpu_custom_call.1} parent=67 // pred_check
                _
              $region88: #{tpu_custom_call.1} parent=67 // pred_check_branch
                %1432 = sbr.rel (0) target = $region90
              $region89: #{tpu_custom_call.1} parent=67 // pred_region
                %s1433 = sdiv.u32.pop %s1327, 24
                %s1434 = srem.u32.pop %s1327, 24
                // While loop
                $region91: #{tpu_custom_call.1} parent=89 // loop_pre_header
                  _
                $region92: #{tpu_custom_call.1} parent=89 // loop_header
                  %s1436 = sphi 0, %s1438
                  %p1437 = scmp.ge.s32.totalorder %s1436, %s1433
                  %s1441 = sphi 0, %s1494
                  %s1442 = sphi %s1320, %s1497
                  %s1443 = sphi %s1331, %s1498
                $region93: #{tpu_custom_call.1} parent=89 // loop_header_branch
                  %1440 = sbr.rel (%p1437) target = $region97
                $region94: #{tpu_custom_call.1} parent=89 // loop_body
                  %v1444 = vld [vmem:[%s1442] sm:$0xff]
                  %1445 = vst [vmem:[%s1443] sm:$0xff] %v1444
                  %v1446 = vld [vmem:[%s1442 + $0x8] sm:$0xff]
                  %1447 = vst [vmem:[%s1443 + $0x8] sm:$0xff] %v1446
                  %v1448 = vld [vmem:[%s1442 + $0x10] sm:$0xff]
                  %1449 = vst [vmem:[%s1443 + $0x10] sm:$0xff] %v1448
                  %v1450 = vld [vmem:[%s1442 + $0x18] sm:$0xff]
                  %1451 = vst [vmem:[%s1443 + $0x18] sm:$0xff] %v1450
                  %v1452 = vld [vmem:[%s1442 + $0x20] sm:$0xff]
                  %1453 = vst [vmem:[%s1443 + $0x20] sm:$0xff] %v1452
                  %v1454 = vld [vmem:[%s1442 + $0x28] sm:$0xff]
                  %1455 = vst [vmem:[%s1443 + $0x28] sm:$0xff] %v1454
                  %v1456 = vld [vmem:[%s1442 + $0x30] sm:$0xff]
                  %1457 = vst [vmem:[%s1443 + $0x30] sm:$0xff] %v1456
                  %v1458 = vld [vmem:[%s1442 + $0x38] sm:$0xff]
                  %1459 = vst [vmem:[%s1443 + $0x38] sm:$0xff] %v1458
                  %v1460 = vld [vmem:[%s1442 + $0x40] sm:$0xff]
                  %1461 = vst [vmem:[%s1443 + $0x40] sm:$0xff] %v1460
                  %v1462 = vld [vmem:[%s1442 + $0x48] sm:$0xff]
                  %1463 = vst [vmem:[%s1443 + $0x48] sm:$0xff] %v1462
                  %v1464 = vld [vmem:[%s1442 + $0x50] sm:$0xff]
                  %1465 = vst [vmem:[%s1443 + $0x50] sm:$0xff] %v1464
                  %v1466 = vld [vmem:[%s1442 + $0x58] sm:$0xff]
                  %1467 = vst [vmem:[%s1443 + $0x58] sm:$0xff] %v1466
                  %v1468 = vld [vmem:[%s1442 + $0x60] sm:$0xff]
                  %1469 = vst [vmem:[%s1443 + $0x60] sm:$0xff] %v1468
                  %v1470 = vld [vmem:[%s1442 + $0x68] sm:$0xff]
                  %1471 = vst [vmem:[%s1443 + $0x68] sm:$0xff] %v1470
                  %v1472 = vld [vmem:[%s1442 + $0x70] sm:$0xff]
                  %1473 = vst [vmem:[%s1443 + $0x70] sm:$0xff] %v1472
                  %v1474 = vld [vmem:[%s1442 + $0x78] sm:$0xff]
                  %1475 = vst [vmem:[%s1443 + $0x78] sm:$0xff] %v1474
                  %v1476 = vld [vmem:[%s1442 + $0x80] sm:$0xff]
                  %1477 = vst [vmem:[%s1443 + $0x80] sm:$0xff] %v1476
                  %v1478 = vld [vmem:[%s1442 + $0x88] sm:$0xff]
                  %1479 = vst [vmem:[%s1443 + $0x88] sm:$0xff] %v1478
                  %v1480 = vld [vmem:[%s1442 + $0x90] sm:$0xff]
                  %1481 = vst [vmem:[%s1443 + $0x90] sm:$0xff] %v1480
                  %v1482 = vld [vmem:[%s1442 + $0x98] sm:$0xff]
                  %1483 = vst [vmem:[%s1443 + $0x98] sm:$0xff] %v1482
                  %v1484 = vld [vmem:[%s1442 + $0xa0] sm:$0xff]
                  %1485 = vst [vmem:[%s1443 + $0xa0] sm:$0xff] %v1484
                  %v1486 = vld [vmem:[%s1442 + $0xa8] sm:$0xff]
                  %1487 = vst [vmem:[%s1443 + $0xa8] sm:$0xff] %v1486
                  %v1488 = vld [vmem:[%s1442 + $0xb0] sm:$0xff]
                  %1489 = vst [vmem:[%s1443 + $0xb0] sm:$0xff] %v1488
                  %v1490 = vld [vmem:[%s1442 + $0xb8] sm:$0xff]
                  %1491 = vst [vmem:[%s1443 + $0xb8] sm:$0xff] %v1490
                  %s1492 = sadd.s32 1, %s1441
                  %p1493 = scmp.ge.s32.totalorder %s1492, %s1433
                  %s1494 = scalar_select %p1493, 0, %s1492
                  %s1495 = smul.u32 %s1494, 192
                  %s1496 = smul.u32 %s1494, 192
                  %s1497 = scalar_lea.vmem %s1320, %s1495 [#allocation3]
                  %s1498 = scalar_lea.vmem %s1331, %s1496
                $region95: #{tpu_custom_call.1} parent=89 // loop_footer
                  %s1438 = sadd.s32 %s1436, 1
                $region96: #{tpu_custom_call.1} parent=89 // loop_footer_branch
                  %1435 = sbr.rel target = $region92
                $region97: #{tpu_custom_call.1} parent=89 // loop_exit
                  _
                %s1499 = sdiv.u32.pop %s1327, 24
                %s1500 = srem.u32.pop %s1327, 24
                %s1501 = smul.u32 %s1499, 24
                %s1502 = smul.u32 8, %s1501
                %s1503 = scalar_lea.vmem %s1320, %s1502 [#allocation3]
                %s1504 = smul.u32 8, %s1501
                %s1505 = scalar_lea.vmem %s1331, %s1504
                // While loop
                $region98: #{tpu_custom_call.1} parent=89 // loop_pre_header
                  _
                $region99: #{tpu_custom_call.1} parent=89 // loop_header
                  %s1507 = sphi 0, %s1509
                  %p1508 = scmp.ge.s32.totalorder %s1507, %s1500
                  %s1512 = sphi 0, %s1519
                  %s1513 = sphi %s1503, %s1522
                  %s1514 = sphi %s1505, %s1523
                $region100: #{tpu_custom_call.1} parent=89 // loop_header_branch
                  %1511 = sbr.rel (%p1508) target = $region104
                $region101: #{tpu_custom_call.1} parent=89 // loop_body
                  %v1515 = vld [vmem:[%s1513] sm:$0xff]
                  %1516 = vst [vmem:[%s1514] sm:$0xff] %v1515
                  %s1517 = sadd.s32 1, %s1512
                  %p1518 = scmp.ge.s32.totalorder %s1517, %s1500
                  %s1519 = scalar_select %p1518, 0, %s1517
                  %s1520 = smul.u32 %s1519, 8
                  %s1521 = smul.u32 %s1519, 8
                  %s1522 = scalar_lea.vmem %s1503, %s1520 [#allocation3]
                  %s1523 = scalar_lea.vmem %s1505, %s1521
                $region102: #{tpu_custom_call.1} parent=89 // loop_footer
                  %s1509 = sadd.s32 %s1507, 1
                $region103: #{tpu_custom_call.1} parent=89 // loop_footer_branch
                  %1506 = sbr.rel target = $region99
                $region104: #{tpu_custom_call.1} parent=89 // loop_exit
                  _
              $region90: #{tpu_custom_call.1} parent=67 // pred_fallthru
                _
              // Predicated region
              $region105: #{tpu_custom_call.1} parent=67 // pred_check
                _
              $region106: #{tpu_custom_call.1} parent=67 // pred_check_branch
                %1525 = sbr.rel target = $region108
              $region107: #{tpu_custom_call.1} parent=67 // pred_region
                _
              $region108: #{tpu_custom_call.1} parent=67 // pred_fallthru
                _
            $region68: #{tpu_custom_call.1} parent=63 // pred_fallthru
              _
            // Predicated region
            $region69: #{tpu_custom_call.1} parent=63 // pred_check
              _
            $region70: #{tpu_custom_call.1} parent=63 // pred_check_branch
              %1338 = sbr.rel target = $region72
            $region71: #{tpu_custom_call.1} parent=63 // pred_region
              %s1340 = sdiv.u32.pop %s1327, 24
              %s1341 = srem.u32.pop %s1327, 24
              // While loop
              $region73: #{tpu_custom_call.1} parent=71 // loop_pre_header
                _
              $region74: #{tpu_custom_call.1} parent=71 // loop_header
                %s1343 = sphi 0, %s1345
                %p1344 = scmp.ge.s32.totalorder %s1343, %s1340
                %s1348 = sphi 0, %s1401
                %s1349 = sphi %s1320, %s1404
                %s1350 = sphi %s1331, %s1405
              $region75: #{tpu_custom_call.1} parent=71 // loop_header_branch
                %1347 = sbr.rel (%p1344) target = $region79
              $region76: #{tpu_custom_call.1} parent=71 // loop_body
                %v1351 = vld [vmem:[%s1349] sm:$0xff]
                %1352 = vst [vmem:[%s1350] sm:$0xff] %v1351
                %v1353 = vld [vmem:[%s1349 + $0x8] sm:$0xff]
                %1354 = vst [vmem:[%s1350 + $0x8] sm:$0xff] %v1353
                %v1355 = vld [vmem:[%s1349 + $0x10] sm:$0xff]
                %1356 = vst [vmem:[%s1350 + $0x10] sm:$0xff] %v1355
                %v1357 = vld [vmem:[%s1349 + $0x18] sm:$0xff]
                %1358 = vst [vmem:[%s1350 + $0x18] sm:$0xff] %v1357
                %v1359 = vld [vmem:[%s1349 + $0x20] sm:$0xff]
                %1360 = vst [vmem:[%s1350 + $0x20] sm:$0xff] %v1359
                %v1361 = vld [vmem:[%s1349 + $0x28] sm:$0xff]
                %1362 = vst [vmem:[%s1350 + $0x28] sm:$0xff] %v1361
                %v1363 = vld [vmem:[%s1349 + $0x30] sm:$0xff]
                %1364 = vst [vmem:[%s1350 + $0x30] sm:$0xff] %v1363
                %v1365 = vld [vmem:[%s1349 + $0x38] sm:$0xff]
                %1366 = vst [vmem:[%s1350 + $0x38] sm:$0xff] %v1365
                %v1367 = vld [vmem:[%s1349 + $0x40] sm:$0xff]
                %1368 = vst [vmem:[%s1350 + $0x40] sm:$0xff] %v1367
                %v1369 = vld [vmem:[%s1349 + $0x48] sm:$0xff]
                %1370 = vst [vmem:[%s1350 + $0x48] sm:$0xff] %v1369
                %v1371 = vld [vmem:[%s1349 + $0x50] sm:$0xff]
                %1372 = vst [vmem:[%s1350 + $0x50] sm:$0xff] %v1371
                %v1373 = vld [vmem:[%s1349 + $0x58] sm:$0xff]
                %1374 = vst [vmem:[%s1350 + $0x58] sm:$0xff] %v1373
                %v1375 = vld [vmem:[%s1349 + $0x60] sm:$0xff]
                %1376 = vst [vmem:[%s1350 + $0x60] sm:$0xff] %v1375
                %v1377 = vld [vmem:[%s1349 + $0x68] sm:$0xff]
                %1378 = vst [vmem:[%s1350 + $0x68] sm:$0xff] %v1377
                %v1379 = vld [vmem:[%s1349 + $0x70] sm:$0xff]
                %1380 = vst [vmem:[%s1350 + $0x70] sm:$0xff] %v1379
                %v1381 = vld [vmem:[%s1349 + $0x78] sm:$0xff]
                %1382 = vst [vmem:[%s1350 + $0x78] sm:$0xff] %v1381
                %v1383 = vld [vmem:[%s1349 + $0x80] sm:$0xff]
                %1384 = vst [vmem:[%s1350 + $0x80] sm:$0xff] %v1383
                %v1385 = vld [vmem:[%s1349 + $0x88] sm:$0xff]
                %1386 = vst [vmem:[%s1350 + $0x88] sm:$0xff] %v1385
                %v1387 = vld [vmem:[%s1349 + $0x90] sm:$0xff]
                %1388 = vst [vmem:[%s1350 + $0x90] sm:$0xff] %v1387
                %v1389 = vld [vmem:[%s1349 + $0x98] sm:$0xff]
                %1390 = vst [vmem:[%s1350 + $0x98] sm:$0xff] %v1389
                %v1391 = vld [vmem:[%s1349 + $0xa0] sm:$0xff]
                %1392 = vst [vmem:[%s1350 + $0xa0] sm:$0xff] %v1391
                %v1393 = vld [vmem:[%s1349 + $0xa8] sm:$0xff]
                %1394 = vst [vmem:[%s1350 + $0xa8] sm:$0xff] %v1393
                %v1395 = vld [vmem:[%s1349 + $0xb0] sm:$0xff]
                %1396 = vst [vmem:[%s1350 + $0xb0] sm:$0xff] %v1395
                %v1397 = vld [vmem:[%s1349 + $0xb8] sm:$0xff]
                %1398 = vst [vmem:[%s1350 + $0xb8] sm:$0xff] %v1397
                %s1399 = sadd.s32 1, %s1348
                %p1400 = scmp.ge.s32.totalorder %s1399, %s1340
                %s1401 = scalar_select %p1400, 0, %s1399
                %s1402 = smul.u32 %s1401, 192
                %s1403 = smul.u32 %s1401, 192
                %s1404 = scalar_lea.vmem %s1320, %s1402 [#allocation3]
                %s1405 = scalar_lea.vmem %s1331, %s1403
              $region77: #{tpu_custom_call.1} parent=71 // loop_footer
                %s1345 = sadd.s32 %s1343, 1
              $region78: #{tpu_custom_call.1} parent=71 // loop_footer_branch
                %1342 = sbr.rel target = $region74
              $region79: #{tpu_custom_call.1} parent=71 // loop_exit
                _
              %s1406 = sdiv.u32.pop %s1327, 24
              %s1407 = srem.u32.pop %s1327, 24
              %s1408 = smul.u32 %s1406, 24
              %s1409 = smul.u32 8, %s1408
              %s1410 = scalar_lea.vmem %s1320, %s1409 [#allocation3]
              %s1411 = smul.u32 8, %s1408
              %s1412 = scalar_lea.vmem %s1331, %s1411
              // While loop
              $region80: #{tpu_custom_call.1} parent=71 // loop_pre_header
                _
              $region81: #{tpu_custom_call.1} parent=71 // loop_header
                %s1414 = sphi 0, %s1416
                %p1415 = scmp.ge.s32.totalorder %s1414, %s1407
                %s1419 = sphi 0, %s1426
                %s1420 = sphi %s1410, %s1429
                %s1421 = sphi %s1412, %s1430
              $region82: #{tpu_custom_call.1} parent=71 // loop_header_branch
                %1418 = sbr.rel (%p1415) target = $region86
              $region83: #{tpu_custom_call.1} parent=71 // loop_body
                %v1422 = vld [vmem:[%s1420] sm:$0xff]
                %1423 = vst [vmem:[%s1421] sm:$0xff] %v1422
                %s1424 = sadd.s32 1, %s1419
                %p1425 = scmp.ge.s32.totalorder %s1424, %s1407
                %s1426 = scalar_select %p1425, 0, %s1424
                %s1427 = smul.u32 %s1426, 8
                %s1428 = smul.u32 %s1426, 8
                %s1429 = scalar_lea.vmem %s1410, %s1427 [#allocation3]
                %s1430 = scalar_lea.vmem %s1412, %s1428
              $region84: #{tpu_custom_call.1} parent=71 // loop_footer
                %s1416 = sadd.s32 %s1414, 1
              $region85: #{tpu_custom_call.1} parent=71 // loop_footer_branch
                %1413 = sbr.rel target = $region81
              $region86: #{tpu_custom_call.1} parent=71 // loop_exit
                _
            $region72: #{tpu_custom_call.1} parent=63 // pred_fallthru
              _
          $region64: #{tpu_custom_call.1} parent=59 // pred_fallthru
            _
          %1526 = vnop
        $region60: #{tpu_custom_call.1} parent=55 // pred_fallthru
          _
      $region56: #{tpu_custom_call.1} parent=5 // pred_fallthru
        _
      %p1527 = scmp.le.s32.totalorder 2, %s17
      // Predicated region
      $region109: #{tpu_custom_call.1} parent=5 // pred_check
        %p1528 = pneg %p1527
      $region110: #{tpu_custom_call.1} parent=5 // pred_check_branch
        %1530 = sbr.rel (%p1528) target = $region112
      $region111: #{tpu_custom_call.1} parent=5 // pred_region
        %s1531 = ssub.s32 %s17, 2
        // Predicated region
        $region113: #{tpu_custom_call.1} parent=111 // pred_check
          %p1532 = pneg %p240
        $region114: #{tpu_custom_call.1} parent=111 // pred_check_branch
          %1534 = sbr.rel (%p1532) target = $region116
        $region115: #{tpu_custom_call.1} parent=111 // pred_region
          %s1535 = sand.u32 %s225, 1
          %s1536 = sand.u32 %s225, 1
          %s1537 = smul.addr %s1536, 192
          %s1538 = scalar_lea.vmem [#allocation3], %s1537
        $region116: #{tpu_custom_call.1} parent=111 // pred_fallthru
          _
      $region112: #{tpu_custom_call.1} parent=5 // pred_fallthru
        _
    $region6: #{tpu_custom_call.1} parent=1 // loop_footer
      %s21 = sadd.s32 1, %s17
    $region7: #{tpu_custom_call.1} parent=1 // loop_footer_branch
      %16 = sbr.rel target = $region3
    $region8: #{tpu_custom_call.1} parent=1 // loop_exit
      _

// kernel: tpu_custom_call.1
$region0: #{tpu_custom_call.1}
  #allocation0 [shape = 'u32[]', space=smem, size = 0x4, offset = 0x4, fixed_abs, tag = 'smem constant byte address 0x4 - core index']
  #allocation1 [shape = 'u32[144,128]{1,0:T(1,128)}', space=vmem, size = 0x12000, scoped, tag = 'internal scratch']
  #allocation2 [shape = 'f32[1,1]{1,0:T(1,128)S(1)}', space=vmem, size = 0x200, scoped, tag = 'scoped memory for tpu_custom_call.1']
  %s0 = inlined_call_operand.vmem [shape: f32[512,2], index: 0, kind: input, shape index: {}]
  %s1 = inlined_call_operand.vmem [shape: bf16[2,64], index: 1, kind: input, shape index: {}]
  %s2 = inlined_call_operand.vmem [shape: f32[1,64], index: 2, kind: input, shape index: {}]
  %s3 = inlined_call_operand.vmem [shape: bf16[64,64], index: 3, kind: input, shape index: {}]
  %s4 = inlined_call_operand.vmem [shape: f32[1,64], index: 4, kind: input, shape index: {}]
  %s5 = inlined_call_operand.vmem [shape: bf16[64,64], index: 5, kind: input, shape index: {}]
  %s6 = inlined_call_operand.vmem [shape: f32[1,64], index: 6, kind: input, shape index: {}]
  %s7 = inlined_call_operand.vmem [shape: bf16[64,1], index: 7, kind: input, shape index: {}]
  %s8 = inlined_call_operand.<no memory space> [shape: f32[1,1], index: 8, kind: input, shape index: {}]
  %s9 = inlined_call_operand.vmem [shape: f32[512,1], index: 9, kind: output, shape index: {}]
  %s10 = sld [smem:[#allocation0]]
  $region117: #{tpu_custom_call.1} parent=0
    _
  %s12 = ssub.s32 1, %s10
  %s13 = scalar_select 0, %s12, %s10
  %v14 = vstv %s8
  %15 = vst [vmem:[#allocation2] sm:$0x1] %v14
  $region1: #{tpu_custom_call.1} parent=0
    #allocation3 [shape = 'u8[196608]{0}', space=vmem, size = 0x30000, scoped, tag = 'output window, operand 0']
    loop: start=0, step=1, limit=5
    $region2: #{tpu_custom_call.1} parent=1 // loop_pre_header
      _
    $region3: #{tpu_custom_call.1} parent=1 // loop_header
      %s17 = sphi 0, %s21
      %p18 = scmp.ge.s32.totalorder %s17, 5
      %s27 = sphi 0, %s29
      %s30 = sphi 0, %s27
      %s31 = sphi 0, %s30
      %s47 = sphi 0, %s31
      %s51 = sphi 0, %s51
      %s53 = sphi 0, %s51
      %s54 = sphi 0, %s53
      %s68 = sphi 0, %s54
      %s72 = sphi 0, %s72
      %s74 = sphi 0, %s72
      %s75 = sphi 0, %s74
      %s89 = sphi 0, %s75
      %s93 = sphi 0, %s93
      %s95 = sphi 0, %s93
      %s96 = sphi 0, %s95
      %s110 = sphi 0, %s96
      %s114 = sphi 0, %s114
      %s116 = sphi 0, %s114
      %s117 = sphi 0, %s116
      %s131 = sphi 0, %s117
      %s135 = sphi 0, %s135
      %s137 = sphi 0, %s135
      %s138 = sphi 0, %s137
      %s152 = sphi 0, %s138
      %s156 = sphi 0, %s156
      %s158 = sphi 0, %s156
      %s159 = sphi 0, %s158
      %s173 = sphi 0, %s159
      %s177 = sphi 0, %s177
      %s179 = sphi 0, %s177
      %s180 = sphi 0, %s179
      %s194 = sphi 0, %s180
      %s198 = sphi 0, %s198
      %s200 = sphi 0, %s198
      %s201 = sphi 0, %s200
      %s215 = sphi 0, %s201
      %s221 = sphi 0, %s223
      %s224 = sphi 0, %s221
      %s225 = sphi 0, %s224
      %s241 = sphi 0, %s225
    $region4: #{tpu_custom_call.1} parent=1 // loop_header_branch
      %20 = sbr.rel (%p18) target = $region8
    $region5: #{tpu_custom_call.1} parent=1 // loop_body
      %s22 = ssub.s32 %s17, 1
      %s23 = ssub.s32 %s17, 2
      %s24 = sadd.s32 %s17, 1
      %s25 = ssub.s32 %s17, %s24
      %p26 = scmp.eq.s32.totalorder %s25, 0
      %s28 = sadd.s32 %s27, 1
      %s29 = scalar_select %p26, %s27, %s28
      %p32 = pneg %p26
      %p33 = scmp.eq.s32.totalorder %s17, 2
      %p34 = por %p32, %p33
      %p35 = scmp.ne.s32.totalorder %s27, %s30
      %p36 = scmp.eq.s32.totalorder %s17, 0
      %p37 = por %p35, %p36
      %p38 = scmp.ne.s32.totalorder %s27, %s30
      %p39 = scmp.eq.s32.totalorder %s22, 2
      %p40 = por %p38, %p39
      %p41 = scmp.ne.s32.totalorder %s30, %s31
      %p42 = scmp.eq.s32.totalorder %s22, 0
      %p43 = por %p41, %p42
      %p44 = scmp.ne.s32.totalorder %s30, %s31
      %p45 = scmp.eq.s32.totalorder %s23, 2
      %p46 = por %p44, %p45
      %p48 = scmp.ne.s32.totalorder %s31, %s47
      %p49 = scmp.eq.s32.totalorder %s23, 0
      %p50 = por %p48, %p49
      %s52 = sadd.s32 %s51, 1
      %p55 = scmp.eq.s32.totalorder %s17, 2
      %p56 = scmp.ne.s32.totalorder %s51, %s53
      %p57 = scmp.eq.s32.totalorder %s17, 0
      %p58 = por %p56, %p57
      %p59 = scmp.ne.s32.totalorder %s51, %s53
      %p60 = scmp.eq.s32.totalorder %s22, 2
      %p61 = por %p59, %p60
      %p62 = scmp.ne.s32.totalorder %s53, %s54
      %p63 = scmp.eq.s32.totalorder %s22, 0
      %p64 = por %p62, %p63
      %p65 = scmp.ne.s32.totalorder %s53, %s54
      %p66 = scmp.eq.s32.totalorder %s23, 2
      %p67 = por %p65, %p66
      %p69 = scmp.ne.s32.totalorder %s54, %s68
      %p70 = scmp.eq.s32.totalorder %s23, 0
      %p71 = por %p69, %p70
      %s73 = sadd.s32 %s72, 1
      %p76 = scmp.eq.s32.totalorder %s17, 2
      %p77 = scmp.ne.s32.totalorder %s72, %s74
      %p78 = scmp.eq.s32.totalorder %s17, 0
      %p79 = por %p77, %p78
      %p80 = scmp.ne.s32.totalorder %s72, %s74
      %p81 = scmp.eq.s32.totalorder %s22, 2
      %p82 = por %p80, %p81
      %p83 = scmp.ne.s32.totalorder %s74, %s75
      %p84 = scmp.eq.s32.totalorder %s22, 0
      %p85 = por %p83, %p84
      %p86 = scmp.ne.s32.totalorder %s74, %s75
      %p87 = scmp.eq.s32.totalorder %s23, 2
      %p88 = por %p86, %p87
      %p90 = scmp.ne.s32.totalorder %s75, %s89
      %p91 = scmp.eq.s32.totalorder %s23, 0
      %p92 = por %p90, %p91
      %s94 = sadd.s32 %s93, 1
      %p97 = scmp.eq.s32.totalorder %s17, 2
      %p98 = scmp.ne.s32.totalorder %s93, %s95
      %p99 = scmp.eq.s32.totalorder %s17, 0
      %p100 = por %p98, %p99
      %p101 = scmp.ne.s32.totalorder %s93, %s95
      %p102 = scmp.eq.s32.totalorder %s22, 2
      %p103 = por %p101, %p102
      %p104 = scmp.ne.s32.totalorder %s95, %s96
      %p105 = scmp.eq.s32.totalorder %s22, 0
      %p106 = por %p104, %p105
      %p107 = scmp.ne.s32.totalorder %s95, %s96
      %p108 = scmp.eq.s32.totalorder %s23, 2
      %p109 = por %p107, %p108
      %p111 = scmp.ne.s32.totalorder %s96, %s110
      %p112 = scmp.eq.s32.totalorder %s23, 0
      %p113 = por %p111, %p112
      %s115 = sadd.s32 %s114, 1
      %p118 = scmp.eq.s32.totalorder %s17, 2
      %p119 = scmp.ne.s32.totalorder %s114, %s116
      %p120 = scmp.eq.s32.totalorder %s17, 0
      %p121 = por %p119, %p120
      %p122 = scmp.ne.s32.totalorder %s114, %s116
      %p123 = scmp.eq.s32.totalorder %s22, 2
      %p124 = por %p122, %p123
      %p125 = scmp.ne.s32.totalorder %s116, %s117
      %p126 = scmp.eq.s32.totalorder %s22, 0
      %p127 = por %p125, %p126
      %p128 = scmp.ne.s32.totalorder %s116, %s117
      %p129 = scmp.eq.s32.totalorder %s23, 2
      %p130 = por %p128, %p129
      %p132 = scmp.ne.s32.totalorder %s117, %s131
      %p133 = scmp.eq.s32.totalorder %s23, 0
      %p134 = por %p132, %p133
      %s136 = sadd.s32 %s135, 1
      %p139 = scmp.eq.s32.totalorder %s17, 2
      %p140 = scmp.ne.s32.totalorder %s135, %s137
      %p141 = scmp.eq.s32.totalorder %s17, 0
      %p142 = por %p140, %p141
      %p143 = scmp.ne.s32.totalorder %s135, %s137
      %p144 = scmp.eq.s32.totalorder %s22, 2
      %p145 = por %p143, %p144
      %p146 = scmp.ne.s32.totalorder %s137, %s138
      %p147 = scmp.eq.s32.totalorder %s22, 0
      %p148 = por %p146, %p147
      %p149 = scmp.ne.s32.totalorder %s137, %s138
      %p150 = scmp.eq.s32.totalorder %s23, 2
      %p151 = por %p149, %p150
      %p153 = scmp.ne.s32.totalorder %s138, %s152
      %p154 = scmp.eq.s32.totalorder %s23, 0
      %p155 = por %p153, %p154
      %s157 = sadd.s32 %s156, 1
      %p160 = scmp.eq.s32.totalorder %s17, 2
      %p161 = scmp.ne.s32.totalorder %s156, %s158
      %p162 = scmp.eq.s32.totalorder %s17, 0
      %p163 = por %p161, %p162
      %p164 = scmp.ne.s32.totalorder %s156, %s158
      %p165 = scmp.eq.s32.totalorder %s22, 2
      %p166 = por %p164, %p165
      %p167 = scmp.ne.s32.totalorder %s158, %s159
      %p168 = scmp.eq.s32.totalorder %s22, 0
      %p169 = por %p167, %p168
      %p170 = scmp.ne.s32.totalorder %s158, %s159
      %p171 = scmp.eq.s32.totalorder %s23, 2
      %p172 = por %p170, %p171
      %p174 = scmp.ne.s32.totalorder %s159, %s173
      %p175 = scmp.eq.s32.totalorder %s23, 0
      %p176 = por %p174, %p175
      %s178 = sadd.s32 %s177, 1
      %p181 = scmp.eq.s32.totalorder %s17, 2
      %p182 = scmp.ne.s32.totalorder %s177, %s179
      %p183 = scmp.eq.s32.totalorder %s17, 0
      %p184 = por %p182, %p183
      %p185 = scmp.ne.s32.totalorder %s177, %s179
      %p186 = scmp.eq.s32.totalorder %s22, 2
      %p187 = por %p185, %p186
      %p188 = scmp.ne.s32.totalorder %s179, %s180
      %p189 = scmp.eq.s32.totalorder %s22, 0
      %p190 = por %p188, %p189
      %p191 = scmp.ne.s32.totalorder %s179, %s180
      %p192 = scmp.eq.s32.totalorder %s23, 2
      %p193 = por %p191, %p192
      %p195 = scmp.ne.s32.totalorder %s180, %s194
      %p196 = scmp.eq.s32.totalorder %s23, 0
      %p197 = por %p195, %p196
      %s199 = sadd.s32 %s198, 1
      %p202 = scmp.eq.s32.totalorder %s17, 2
      %p203 = scmp.ne.s32.totalorder %s198, %s200
      %p204 = scmp.eq.s32.totalorder %s17, 0
      %p205 = por %p203, %p204
      %p206 = scmp.ne.s32.totalorder %s198, %s200
      %p207 = scmp.eq.s32.totalorder %s22, 2
      %p208 = por %p206, %p207
      %p209 = scmp.ne.s32.totalorder %s200, %s201
      %p210 = scmp.eq.s32.totalorder %s22, 0
      %p211 = por %p209, %p210
      %p212 = scmp.ne.s32.totalorder %s200, %s201
      %p213 = scmp.eq.s32.totalorder %s23, 2
      %p214 = por %p212, %p213
      %p216 = scmp.ne.s32.totalorder %s201, %s215
      %p217 = scmp.eq.s32.totalorder %s23, 0
      %p218 = por %p216, %p217
      %s219 = ssub.s32 %s17, %s24
      %p220 = scmp.eq.s32.totalorder %s219, 0
      %s222 = sadd.s32 %s221, 1
      %s223 = scalar_select %p220, %s221, %s222
      %p226 = pneg %p220
      %p227 = scmp.eq.s32.totalorder %s17, 2
      %p228 = por %p226, %p227
      %p229 = scmp.ne.s32.totalorder %s221, %s224
      %p230 = scmp.eq.s32.totalorder %s17, 0
      %p231 = por %p229, %p230
      %p232 = scmp.ne.s32.totalorder %s221, %s224
      %p233 = scmp.eq.s32.totalorder %s22, 2
      %p234 = por %p232, %p233
      %p235 = scmp.ne.s32.totalorder %s224, %s225
      %p236 = scmp.eq.s32.totalorder %s22, 0
      %p237 = por %p235, %p236
      %p238 = scmp.ne.s32.totalorder %s224, %s225
      %p239 = scmp.eq.s32.totalorder %s23, 2
      %p240 = por %p238, %p239
      %p242 = scmp.ne.s32.totalorder %s225, %s241
      %p243 = scmp.eq.s32.totalorder %s23, 0
      %p244 = por %p242, %p243
      %p245 = scmp.le.s32.totalorder 1, %s17
      %p246 = scmp.lt.s32.totalorder %s17, 4
      %p247 = pnand %p245, %p246
      %p248 = pneg %p247
      // Predicated region
      $region9: #{tpu_custom_call.1} parent=5 // pred_check
        _
      $region10: #{tpu_custom_call.1} parent=5 // pred_check_branch
        %250 = sbr.rel (%p247) target = $region12
      $region11: #{tpu_custom_call.1} parent=5 // pred_region
        %s251 = ssub.s32 %s17, 1
        // Predicated region
        $region13: #{tpu_custom_call.1} parent=11 // pred_check
          %p252 = pneg %p64
        $region14: #{tpu_custom_call.1} parent=11 // pred_check_branch
          %254 = sbr.rel (%p252) target = $region16
        $region15: #{tpu_custom_call.1} parent=11 // pred_region
          _
        $region16: #{tpu_custom_call.1} parent=11 // pred_fallthru
          _
        // Predicated region
        $region17: #{tpu_custom_call.1} parent=11 // pred_check
          %p255 = pneg %p85
        $region18: #{tpu_custom_call.1} parent=11 // pred_check_branch
          %257 = sbr.rel (%p255) target = $region20
        $region19: #{tpu_custom_call.1} parent=11 // pred_region
          _
        $region20: #{tpu_custom_call.1} parent=11 // pred_fallthru
          _
        // Predicated region
        $region21: #{tpu_custom_call.1} parent=11 // pred_check
          %p258 = pneg %p106
        $region22: #{tpu_custom_call.1} parent=11 // pred_check_branch
          %260 = sbr.rel (%p258) target = $region24
        $region23: #{tpu_custom_call.1} parent=11 // pred_region
          _
        $region24: #{tpu_custom_call.1} parent=11 // pred_fallthru
          _
        // Predicated region
        $region25: #{tpu_custom_call.1} parent=11 // pred_check
          %p261 = pneg %p127
        $region26: #{tpu_custom_call.1} parent=11 // pred_check_branch
          %263 = sbr.rel (%p261) target = $region28
        $region27: #{tpu_custom_call.1} parent=11 // pred_region
          _
        $region28: #{tpu_custom_call.1} parent=11 // pred_fallthru
          _
        // Predicated region
        $region29: #{tpu_custom_call.1} parent=11 // pred_check
          %p264 = pneg %p148
        $region30: #{tpu_custom_call.1} parent=11 // pred_check_branch
          %266 = sbr.rel (%p264) target = $region32
        $region31: #{tpu_custom_call.1} parent=11 // pred_region
          _
        $region32: #{tpu_custom_call.1} parent=11 // pred_fallthru
          _
        // Predicated region
        $region33: #{tpu_custom_call.1} parent=11 // pred_check
          %p267 = pneg %p169
        $region34: #{tpu_custom_call.1} parent=11 // pred_check_branch
          %269 = sbr.rel (%p267) target = $region36
        $region35: #{tpu_custom_call.1} parent=11 // pred_region
          _
        $region36: #{tpu_custom_call.1} parent=11 // pred_fallthru
          _
        // Predicated region
        $region37: #{tpu_custom_call.1} parent=11 // pred_check
          %p270 = pneg %p190
        $region38: #{tpu_custom_call.1} parent=11 // pred_check_branch
          %272 = sbr.rel (%p270) target = $region40
        $region39: #{tpu_custom_call.1} parent=11 // pred_region
          _
        $region40: #{tpu_custom_call.1} parent=11 // pred_fallthru
          _
        // Predicated region
        $region41: #{tpu_custom_call.1} parent=11 // pred_check
          %p273 = pneg %p211
        $region42: #{tpu_custom_call.1} parent=11 // pred_check_branch
          %275 = sbr.rel (%p273) target = $region44
        $region43: #{tpu_custom_call.1} parent=11 // pred_region
          _
        $region44: #{tpu_custom_call.1} parent=11 // pred_fallthru
          _
      $region12: #{tpu_custom_call.1} parent=5 // pred_fallthru
        _
      %p276 = scmp.lt.s32.totalorder %s17, 3
      // Predicated region
      $region45: #{tpu_custom_call.1} parent=5 // pred_check
        %p277 = pneg %p276
      $region46: #{tpu_custom_call.1} parent=5 // pred_check_branch
        %279 = sbr.rel (%p277) target = $region48
      $region47: #{tpu_custom_call.1} parent=5 // pred_region
        // Predicated region
        $region49: #{tpu_custom_call.1} parent=47 // pred_check
          %p280 = pneg %p37
        $region50: #{tpu_custom_call.1} parent=47 // pred_check_branch
          %282 = sbr.rel (%p280) target = $region52
        $region51: #{tpu_custom_call.1} parent=47 // pred_region
          %s283 = smul.u32 24, %s17
          %s284 = ssub.s32 64, %s283
          %p285 = scmp.lt.s32.totalorder %s284, 24
          %s286 = scalar_select %p285, %s284, 24
          %s287 = smul.u32 128, %s286
          %p288 = scmp.lt.s32.totalorder %s283, 63
          %s289 = scalar_select %p288, %s283, 63
          %s290 = smul.addr %s289, 8
          %s291 = scalar_lea.vmem %s0, %s290
          %s292 = smul.u32 24, %s17
          %s293 = ssub.s32 64, %s292
          %p294 = scmp.lt.s32.totalorder %s293, 24
          %s295 = scalar_select %p294, %s293, 24
          %s296 = smul.u32 128, %s295
        $region52: #{tpu_custom_call.1} parent=47 // pred_fallthru
          _
      $region48: #{tpu_custom_call.1} parent=5 // pred_fallthru
        _
      %p297 = scmp.le.s32.totalorder 1, %s17
      %p298 = scmp.lt.s32.totalorder %s17, 4
      %p299 = pnand %p297, %p298
      %p300 = pneg %p299
      // Predicated region
      $region53: #{tpu_custom_call.1} parent=5 // pred_check
        _
      $region54: #{tpu_custom_call.1} parent=5 // pred_check_branch
        %302 = sbr.rel (%p299) target = $region56
      $region55: #{tpu_custom_call.1} parent=5 // pred_region
        %s303 = ssub.s32 %s17, 1
        %s304 = smul.u32 24, %s22
        %s305 = ssub.s32 64, %s304
        %p306 = scmp.lt.s32.totalorder %s305, 24
        %s307 = scalar_select %p306, %s305, 24
        %s308 = smul.u32 128, %s307
        %p309 = scmp.lt.s32.totalorder %s304, 63
        %s310 = scalar_select %p309, %s304, 63
        %s311 = smul.addr %s310, 8
        %s312 = scalar_lea.vmem %s0, %s311
        %p313 = pneg %p43
        %p314 = pneg %p40
        %p315 = pneg %p64
        %p316 = pneg %p61
        %p317 = pneg %p85
        %p318 = pneg %p82
        %p319 = pneg %p106
        %p320 = pneg %p103
        %p321 = pneg %p127
        %p322 = pneg %p124
        %p323 = pneg %p148
        %p324 = pneg %p145
        %p325 = pneg %p169
        %p326 = pneg %p166
        %p327 = pneg %p190
        %p328 = pneg %p187
        %p329 = pneg %p211
        %p330 = pneg %p208
        %p331 = pneg %p237
        %p332 = pneg %p234
        %s333 = sand.u32 %s224, 1
        %s334 = sand.u32 %s224, 1
        %s335 = smul.addr %s334, 192
        %s336 = scalar_lea.vmem [#allocation3], %s335
        %s337 = smul.u32 24, %s22
        %s338 = ssub.s32 64, %s337
        %p339 = scmp.lt.s32.totalorder %s338, 24
        %s340 = scalar_select %p339, %s338, 24
        %s341 = smul.u32 128, %s340
        %p342 = scmp.lt.s32.totalorder %s337, 63
        %s343 = scalar_select %p342, %s337, 63
        %s344 = smul.addr %s343, 8
        %s345 = scalar_lea.vmem %s0, %s344
        %s346 = smul.u32 24, %s22
        %s347 = ssub.s32 64, %s346
        %p348 = scmp.lt.s32.totalorder %s347, 24
        %s349 = scalar_select %p348, %s347, 24
        %s350 = smul.u32 128, %s349
        %s351 = smul.u32 24, %s22
        %s352 = ssub.s32 64, %s351
        %p353 = scmp.lt.s32.totalorder %s352, 24
        %s354 = scalar_select %p353, %s352, 24
        %s355 = smul.u32 128, %s354
        %v357 = vld [vmem:[%s345] sm:$0xff]
        %v358 = vld [vmem:[%s345 + $0x8] sm:$0xff]
        %v359 = vld [vmem:[%s345 + $0x10] sm:$0xff]
        %v360 = vld [vmem:[%s345 + $0x18] sm:$0xff]
        %v361 = vld [vmem:[%s345 + $0x20] sm:$0xff]
        %v362 = vld [vmem:[%s345 + $0x28] sm:$0xff]
        %v363 = vld [vmem:[%s345 + $0x30] sm:$0xff]
        %v364 = vld [vmem:[%s345 + $0x38] sm:$0xff]
        %v365 = vld [vmem:[%s345 + $0x40] sm:$0xff]
        %v366 = vld [vmem:[%s345 + $0x48] sm:$0xff]
        %v367 = vld [vmem:[%s345 + $0x50] sm:$0xff]
        %v368 = vld [vmem:[%s345 + $0x58] sm:$0xff]
        %v369 = vld [vmem:[%s345 + $0x60] sm:$0xff]
        %v370 = vld [vmem:[%s345 + $0x68] sm:$0xff]
        %v371 = vld [vmem:[%s345 + $0x70] sm:$0xff]
        %v372 = vld [vmem:[%s345 + $0x78] sm:$0xff]
        %v373 = vld [vmem:[%s345 + $0x80] sm:$0xff]
        %v374 = vld [vmem:[%s345 + $0x88] sm:$0xff]
        %v375 = vld [vmem:[%s345 + $0x90] sm:$0xff]
        %v376 = vld [vmem:[%s345 + $0x98] sm:$0xff]
        %v377 = vld [vmem:[%s345 + $0xa0] sm:$0xff]
        %v378 = vld [vmem:[%s345 + $0xa8] sm:$0xff]
        %v379 = vld [vmem:[%s345 + $0xb0] sm:$0xff]
        %v380 = vld [vmem:[%s345 + $0xb8] sm:$0xff]
        %v381 = vld [vmem:[%s2] sm:$0x1]
        %v382 = vpack.c.bf16 %v358, %v357
        %v383 = vpack.c.bf16 %v360, %v359
        %v384 = vpack.c.bf16 %v362, %v361
        %v385 = vpack.c.bf16 %v364, %v363
        %v386 = vpack.c.bf16 %v366, %v365
        %v387 = vpack.c.bf16 %v368, %v367
        %v388 = vpack.c.bf16 %v370, %v369
        %v389 = vpack.c.bf16 %v372, %v371
        %v390 = vpack.c.bf16 %v374, %v373
        %v391 = vpack.c.bf16 %v376, %v375
        %v392 = vpack.c.bf16 %v378, %v377
        %v393 = vpack.c.bf16 %v380, %v379
        %v394 = vld [vmem:[%s1] sm:$0x1]
        %v396 = vlaneseq
        %v397 = vshrl.u32 %v396, 7
        %v398 = vsub.s32 0, %v397
        %v399 = vrot.slane %v381, %v398
        %vm401 = vcmask 15360
        %v403 = vsel %vm401, %v382, 0
        %v406 = vsel %vm401, %v383, 0
        %v409 = vsel %vm401, %v384, 0
        %v412 = vsel %vm401, %v385, 0
        %v415 = vsel %vm401, %v386, 0
        %v418 = vsel %vm401, %v387, 0
        %v421 = vsel %vm401, %v388, 0
        %v424 = vsel %vm401, %v389, 0
        %v427 = vsel %vm401, %v390, 0
        %v430 = vsel %vm401, %v391, 0
        %v433 = vsel %vm401, %v392, 0
        %v436 = vsel %vm401, %v393, 0
        %vm438 = vcmask 1040384
        %v440 = vsel %vm438, %v394, 0
        %442 = vmatprep.subr.bf16.mxu0 0
        %443 = vmatpush1.bf16.msra.mxu0 %v440
        %444 = vmatprep.subr.bf16.mxu0 0
        %445 = vmatpush1.bf16.msra.mxu0 0
        %446 = vmatprep.subr.bf16.mxu0 0
        %447 = vmatpush1.bf16.msra.mxu0 0
        %448 = vmatprep.subr.bf16.mxu0 0
        %449 = vmatpush1.bf16.msra.mxu0 0
        %450 = vmatprep.subr.bf16.mxu0 0
        %451 = vmatpush1.bf16.msra.mxu0 0
        %452 = vmatprep.subr.bf16.mxu0 0
        %453 = vmatpush1.bf16.msra.mxu0 0
        %454 = vmatprep.subr.bf16.mxu0 0
        %455 = vmatpush1.bf16.msra.mxu0 0
        %456 = vmatprep.subr.bf16.mxu0 0
        %457 = vmatpush1.bf16.msra.mxu0 0
        %458 = vmatprep.subr.bf16.mxu0 0
        %459 = vmatpush1.bf16.msra.mxu0 0
        %460 = vmatprep.subr.bf16.mxu0 0
        %461 = vmatpush1.bf16.msra.mxu0 0
        %462 = vmatprep.subr.bf16.mxu0 0
        %463 = vmatpush1.bf16.msra.mxu0 0
        %464 = vmatprep.subr.bf16.mxu0 0
        %465 = vmatpush1.bf16.msra.mxu0 0
        %466 = vmatprep.subr.bf16.mxu0 0
        %467 = vmatpush1.bf16.msra.mxu0 0
        %468 = vmatprep.subr.bf16.mxu0 0
        %469 = vmatpush1.bf16.msra.mxu0 0
        %470 = vmatprep.subr.bf16.mxu0 0
        %471 = vmatpush1.bf16.msra.mxu0 0
        %472 = vmatprep.subr.bf16.mxu0 0
        %473 = vmatpush1.bf16.msra.mxu0 0
        %474 = vmatprep.mubr.bf16.mxu0 0
        %475 = vmatmul.mubr.bf16.gmra.mrb[0].mxu0 %v403
        %v476 = vpop.f32.mrb[0].mxu0
        %v477 = vadd.f32 %v399, %v476
        %v478 = vpop.f32.mrb[0].mxu0
        %v479 = vpop.f32.mrb[0].mxu0
        %v480 = vadd.f32 %v399, %v479
        %v481 = vpop.f32.mrb[0].mxu0
        %482 = vmatprep.mubr.bf16.mxu0 0
        %483 = vmatmul.mubr.bf16.gmra.mrb[0].mxu0 %v406
        %v484 = vpop.f32.mrb[0].mxu0
        %v485 = vadd.f32 %v399, %v484
        %v486 = vpop.f32.mrb[0].mxu0
        %v487 = vpop.f32.mrb[0].mxu0
        %v488 = vadd.f32 %v399, %v487
        %v489 = vpop.f32.mrb[0].mxu0
        %490 = vmatprep.mubr.bf16.mxu0 0
        %491 = vmatmul.mubr.bf16.gmra.mrb[0].mxu0 %v409
        %v492 = vpop.f32.mrb[0].mxu0
        %v493 = vadd.f32 %v399, %v492
        %v494 = vpop.f32.mrb[0].mxu0
        %v495 = vpop.f32.mrb[0].mxu0
        %v496 = vadd.f32 %v399, %v495
        %v497 = vpop.f32.mrb[0].mxu0
        %498 = vmatprep.mubr.bf16.mxu0 0
        %499 = vmatmul.mubr.bf16.gmra.mrb[0].mxu0 %v412
        %v500 = vpop.f32.mrb[0].mxu0
        %v501 = vadd.f32 %v399, %v500
        %v502 = vpop.f32.mrb[0].mxu0
        %v503 = vpop.f32.mrb[0].mxu0
        %v504 = vadd.f32 %v399, %v503
        %v505 = vpop.f32.mrb[0].mxu0
        %506 = vmatprep.mubr.bf16.mxu0 0
        %507 = vmatmul.mubr.bf16.gmra.mrb[0].mxu0 %v415
        %v508 = vpop.f32.mrb[0].mxu0
        %v509 = vadd.f32 %v399, %v508
        %v510 = vpop.f32.mrb[0].mxu0
        %v511 = vpop.f32.mrb[0].mxu0
        %v512 = vadd.f32 %v399, %v511
        %v513 = vpop.f32.mrb[0].mxu0
        %514 = vmatprep.mubr.bf16.mxu0 0
        %515 = vmatmul.mubr.bf16.gmra.mrb[0].mxu0 %v418
        %v516 = vpop.f32.mrb[0].mxu0
        %v517 = vadd.f32 %v399, %v516
        %v518 = vpop.f32.mrb[0].mxu0
        %v519 = vpop.f32.mrb[0].mxu0
        %v520 = vadd.f32 %v399, %v519
        %v521 = vpop.f32.mrb[0].mxu0
        %522 = vmatprep.mubr.bf16.mxu0 0
        %523 = vmatmul.mubr.bf16.gmra.mrb[0].mxu0 %v421
        %v524 = vpop.f32.mrb[0].mxu0
        %v525 = vadd.f32 %v399, %v524
        %v526 = vpop.f32.mrb[0].mxu0
        %v527 = vpop.f32.mrb[0].mxu0
        %v528 = vadd.f32 %v399, %v527
        %v529 = vpop.f32.mrb[0].mxu0
        %530 = vmatprep.mubr.bf16.mxu0 0
        %531 = vmatmul.mubr.bf16.gmra.mrb[0].mxu0 %v424
        %v532 = vpop.f32.mrb[0].mxu0
        %v533 = vadd.f32 %v399, %v532
        %v534 = vpop.f32.mrb[0].mxu0
        %v535 = vpop.f32.mrb[0].mxu0
        %v536 = vadd.f32 %v399, %v535
        %v537 = vpop.f32.mrb[0].mxu0
        %538 = vmatprep.mubr.bf16.mxu0 0
        %539 = vmatmul.mubr.bf16.gmra.mrb[0].mxu0 %v427
        %v540 = vpop.f32.mrb[0].mxu0
        %v541 = vadd.f32 %v399, %v540
        %v542 = vpop.f32.mrb[0].mxu0
        %v543 = vpop.f32.mrb[0].mxu0
        %v544 = vadd.f32 %v399, %v543
        %v545 = vpop.f32.mrb[0].mxu0
        %546 = vmatprep.mubr.bf16.mxu0 0
        %547 = vmatmul.mubr.bf16.gmra.mrb[0].mxu0 %v430
        %v548 = vpop.f32.mrb[0].mxu0
        %v549 = vadd.f32 %v399, %v548
        %v550 = vpop.f32.mrb[0].mxu0
        %v551 = vpop.f32.mrb[0].mxu0
        %v552 = vadd.f32 %v399, %v551
        %v553 = vpop.f32.mrb[0].mxu0
        %554 = vmatprep.mubr.bf16.mxu0 0
        %555 = vmatmul.mubr.bf16.gmra.mrb[0].mxu0 %v433
        %v556 = vpop.f32.mrb[0].mxu0
        %v557 = vadd.f32 %v399, %v556
        %v558 = vpop.f32.mrb[0].mxu0
        %v559 = vpop.f32.mrb[0].mxu0
        %v560 = vadd.f32 %v399, %v559
        %v561 = vpop.f32.mrb[0].mxu0
        %562 = vmatprep.mubr.bf16.mxu0 0
        %563 = vmatmul.mubr.bf16.gmra.mrb[0].mxu0 %v436
        %v564 = vpop.f32.mrb[0].mxu0
        %v565 = vadd.f32 %v399, %v564
        %v566 = vpop.f32.mrb[0].mxu0
        %v567 = vpop.f32.mrb[0].mxu0
        %v568 = vadd.f32 %v399, %v567
        %v569 = vpop.f32.mrb[0].mxu0
        %570 = vdwg.mxu0
        %v571 = vmax.f32 %v477, 0.0
        %v572 = vmax.f32 %v480, 0.0
        %v573 = vmax.f32 %v485, 0.0
        %v574 = vmax.f32 %v488, 0.0
        %v575 = vmax.f32 %v493, 0.0
        %v576 = vmax.f32 %v496, 0.0
        %v577 = vmax.f32 %v501, 0.0
        %v578 = vmax.f32 %v504, 0.0
        %v579 = vmax.f32 %v509, 0.0
        %v580 = vmax.f32 %v512, 0.0
        %v581 = vmax.f32 %v517, 0.0
        %v582 = vmax.f32 %v520, 0.0
        %v583 = vmax.f32 %v525, 0.0
        %v584 = vmax.f32 %v528, 0.0
        %v585 = vmax.f32 %v533, 0.0
        %v586 = vmax.f32 %v536, 0.0
        %v587 = vmax.f32 %v541, 0.0
        %v588 = vmax.f32 %v544, 0.0
        %v589 = vmax.f32 %v549, 0.0
        %v590 = vmax.f32 %v552, 0.0
        %v591 = vmax.f32 %v557, 0.0
        %v592 = vmax.f32 %v560, 0.0
        %v593 = vmax.f32 %v565, 0.0
        %v594 = vmax.f32 %v568, 0.0
        %v595 = vld [vmem:[%s4] sm:$0x1]
        %v596 = vpack.c.bf16 %v572, %v571
        %v597 = vpack.c.bf16 %v574, %v573
        %v598 = vpack.c.bf16 %v576, %v575
        %v599 = vpack.c.bf16 %v578, %v577
        %v600 = vpack.c.bf16 %v580, %v579
        %v601 = vpack.c.bf16 %v582, %v581
        %v602 = vpack.c.bf16 %v584, %v583
        %v603 = vpack.c.bf16 %v586, %v585
        %v604 = vpack.c.bf16 %v588, %v587
        %v605 = vpack.c.bf16 %v590, %v589
        %v606 = vpack.c.bf16 %v592, %v591
        %v607 = vpack.c.bf16 %v594, %v593
        %v608 = vld [vmem:[%s3] sm:$0xf]
        %v609 = vld [vmem:[%s3 + $0x4] sm:$0xf]
        %v610 = vld [vmem:[%s3 + $0x8] sm:$0xf]
        %v611 = vld [vmem:[%s3 + $0xc] sm:$0xf]
        %v612 = vld [vmem:[%s3 + $0x10] sm:$0xf]
        %v613 = vld [vmem:[%s3 + $0x14] sm:$0xf]
        %v614 = vld [vmem:[%s3 + $0x18] sm:$0xf]
        %v615 = vld [vmem:[%s3 + $0x1c] sm:$0xf]
        %v617 = vlaneseq
        %v618 = vshrl.u32 %v617, 7
        %v619 = vsub.s32 0, %v618
        %v620 = vrot.slane %v595, %v619
        %v630 = vunpack.c.l.b16 %v608
        %v631 = vunpack.c.l.b16 %v609
        %v632 = vunpack.c.l.b16 %v610
        %v633 = vunpack.c.l.b16 %v611
        %v634 = vunpack.c.l.b16 %v612
        %v635 = vunpack.c.l.b16 %v613
        %v636 = vunpack.c.l.b16 %v614
        %v637 = vunpack.c.l.b16 %v615
        %v638 = vpack.c.b16 %v631, %v630
        %v639 = vpack.c.b16 %v633, %v632
        %v640 = vpack.c.b16 %v635, %v634
        %v641 = vpack.c.b16 %v637, %v636
        %vm646 = vcmask 523264
        %v648 = vsel %vm646, %v596, 0
        %v651 = vsel %vm646, %v597, 0
        %v654 = vsel %vm646, %v598, 0
        %v657 = vsel %vm646, %v599, 0
        %v660 = vsel %vm646, %v600, 0
        %v663 = vsel %vm646, %v601, 0
        %v666 = vsel %vm646, %v602, 0
        %v669 = vsel %vm646, %v603, 0
        %v672 = vsel %vm646, %v604, 0
        %v675 = vsel %vm646, %v605, 0
        %v678 = vsel %vm646, %v606, 0
        %v681 = vsel %vm646, %v607, 0
        %683 = vmatprep.subr.bf16.mxu0 0
        %684 = vmatpush1.bf16.msra.mxu0 %v638
        %685 = vmatprep.subr.bf16.mxu0 0
        %686 = vmatpush1.bf16.msra.mxu0 %v639
        %687 = vmatprep.subr.bf16.mxu0 0
        %688 = vmatpush1.bf16.msra.mxu0 %v640
        %689 = vmatprep.subr.bf16.mxu0 0
        %690 = vmatpush1.bf16.msra.mxu0 %v641
        %691 = vmatprep.subr.bf16.mxu0 0
        %692 = vmatpush1.bf16.msra.mxu0 0
        %693 = vmatprep.subr.bf16.mxu0 0
        %694 = vmatpush1.bf16.msra.mxu0 0
        %695 = vmatprep.subr.bf16.mxu0 0
        %696 = vmatpush1.bf16.msra.mxu0 0
        %697 = vmatprep.subr.bf16.mxu0 0
        %698 = vmatpush1.bf16.msra.mxu0 0
        %699 = vmatprep.subr.bf16.mxu0 0
        %700 = vmatpush1.bf16.msra.mxu0 0
        %701 = vmatprep.subr.bf16.mxu0 0
        %702 = vmatpush1.bf16.msra.mxu0 0
        %703 = vmatprep.subr.bf16.mxu0 0
        %704 = vmatpush1.bf16.msra.mxu0 0
        %705 = vmatprep.subr.bf16.mxu0 0
        %706 = vmatpush1.bf16.msra.mxu0 0
        %707 = vmatprep.subr.bf16.mxu0 0
        %708 = vmatpush1.bf16.msra.mxu0 0
        %709 = vmatprep.subr.bf16.mxu0 0
        %710 = vmatpush1.bf16.msra.mxu0 0
        %711 = vmatprep.subr.bf16.mxu0 0
        %712 = vmatpush1.bf16.msra.mxu0 0
        %713 = vmatprep.subr.bf16.mxu0 0
        %714 = vmatpush1.bf16.msra.mxu0 0
        %715 = vmatprep.mubr.bf16.mxu0 0
        %716 = vmatmul.mubr.bf16.gmra.mrb[0].mxu0 %v648
        %v717 = vpop.f32.mrb[0].mxu0
        %v718 = vadd.f32 %v620, %v717
        %v719 = vpop.f32.mrb[0].mxu0
        %v720 = vpop.f32.mrb[0].mxu0
        %v721 = vadd.f32 %v620, %v720
        %v722 = vpop.f32.mrb[0].mxu0
        %723 = vmatprep.mubr.bf16.mxu0 0
        %724 = vmatmul.mubr.bf16.gmra.mrb[0].mxu0 %v651
        %v725 = vpop.f32.mrb[0].mxu0
        %v726 = vadd.f32 %v620, %v725
        %v727 = vpop.f32.mrb[0].mxu0
        %v728 = vpop.f32.mrb[0].mxu0
        %v729 = vadd.f32 %v620, %v728
        %v730 = vpop.f32.mrb[0].mxu0
        %731 = vmatprep.mubr.bf16.mxu0 0
        %732 = vmatmul.mubr.bf16.gmra.mrb[0].mxu0 %v654
        %v733 = vpop.f32.mrb[0].mxu0
        %v734 = vadd.f32 %v620, %v733
        %v735 = vpop.f32.mrb[0].mxu0
        %v736 = vpop.f32.mrb[0].mxu0
        %v737 = vadd.f32 %v620, %v736
        %v738 = vpop.f32.mrb[0].mxu0
        %739 = vmatprep.mubr.bf16.mxu0 0
        %740 = vmatmul.mubr.bf16.gmra.mrb[0].mxu0 %v657
        %v741 = vpop.f32.mrb[0].mxu0
        %v742 = vadd.f32 %v620, %v741
        %v743 = vpop.f32.mrb[0].mxu0
        %v744 = vpop.f32.mrb[0].mxu0
        %v745 = vadd.f32 %v620, %v744
        %v746 = vpop.f32.mrb[0].mxu0
        %747 = vmatprep.mubr.bf16.mxu0 0
        %748 = vmatmul.mubr.bf16.gmra.mrb[0].mxu0 %v660
        %v749 = vpop.f32.mrb[0].mxu0
        %v750 = vadd.f32 %v620, %v749
        %v751 = vpop.f32.mrb[0].mxu0
        %v752 = vpop.f32.mrb[0].mxu0
        %v753 = vadd.f32 %v620, %v752
        %v754 = vpop.f32.mrb[0].mxu0
        %755 = vmatprep.mubr.bf16.mxu0 0
        %756 = vmatmul.mubr.bf16.gmra.mrb[0].mxu0 %v663
        %v757 = vpop.f32.mrb[0].mxu0
        %v758 = vadd.f32 %v620, %v757
        %v759 = vpop.f32.mrb[0].mxu0
        %v760 = vpop.f32.mrb[0].mxu0
        %v761 = vadd.f32 %v620, %v760
        %v762 = vpop.f32.mrb[0].mxu0
        %763 = vmatprep.mubr.bf16.mxu0 0
        %764 = vmatmul.mubr.bf16.gmra.mrb[0].mxu0 %v666
        %v765 = vpop.f32.mrb[0].mxu0
        %v766 = vadd.f32 %v620, %v765
        %v767 = vpop.f32.mrb[0].mxu0
        %v768 = vpop.f32.mrb[0].mxu0
        %v769 = vadd.f32 %v620, %v768
        %v770 = vpop.f32.mrb[0].mxu0
        %771 = vmatprep.mubr.bf16.mxu0 0
        %772 = vmatmul.mubr.bf16.gmra.mrb[0].mxu0 %v669
        %v773 = vpop.f32.mrb[0].mxu0
        %v774 = vadd.f32 %v620, %v773
        %v775 = vpop.f32.mrb[0].mxu0
        %v776 = vpop.f32.mrb[0].mxu0
        %v777 = vadd.f32 %v620, %v776
        %v778 = vpop.f32.mrb[0].mxu0
        %779 = vmatprep.mubr.bf16.mxu0 0
        %780 = vmatmul.mubr.bf16.gmra.mrb[0].mxu0 %v672
        %v781 = vpop.f32.mrb[0].mxu0
        %v782 = vadd.f32 %v620, %v781
        %v783 = vpop.f32.mrb[0].mxu0
        %v784 = vpop.f32.mrb[0].mxu0
        %v785 = vadd.f32 %v620, %v784
        %v786 = vpop.f32.mrb[0].mxu0
        %787 = vmatprep.mubr.bf16.mxu0 0
        %788 = vmatmul.mubr.bf16.gmra.mrb[0].mxu0 %v675
        %v789 = vpop.f32.mrb[0].mxu0
        %v790 = vadd.f32 %v620, %v789
        %v791 = vpop.f32.mrb[0].mxu0
        %v792 = vpop.f32.mrb[0].mxu0
        %v793 = vadd.f32 %v620, %v792
        %v794 = vpop.f32.mrb[0].mxu0
        %795 = vmatprep.mubr.bf16.mxu0 0
        %796 = vmatmul.mubr.bf16.gmra.mrb[0].mxu0 %v678
        %v797 = vpop.f32.mrb[0].mxu0
        %v798 = vadd.f32 %v620, %v797
        %v799 = vpop.f32.mrb[0].mxu0
        %v800 = vpop.f32.mrb[0].mxu0
        %v801 = vadd.f32 %v620, %v800
        %v802 = vpop.f32.mrb[0].mxu0
        %803 = vmatprep.mubr.bf16.mxu0 0
        %804 = vmatmul.mubr.bf16.gmra.mrb[0].mxu0 %v681
        %v805 = vpop.f32.mrb[0].mxu0
        %v806 = vadd.f32 %v620, %v805
        %v807 = vpop.f32.mrb[0].mxu0
        %v808 = vpop.f32.mrb[0].mxu0
        %v809 = vadd.f32 %v620, %v808
        %v810 = vpop.f32.mrb[0].mxu0
        %811 = vdwg.mxu0
        %v812 = vmax.f32 %v718, 0.0
        %v813 = vmax.f32 %v721, 0.0
        %v814 = vmax.f32 %v726, 0.0
        %v815 = vmax.f32 %v729, 0.0
        %v816 = vmax.f32 %v734, 0.0
        %v817 = vmax.f32 %v737, 0.0
        %v818 = vmax.f32 %v742, 0.0
        %v819 = vmax.f32 %v745, 0.0
        %v820 = vmax.f32 %v750, 0.0
        %v821 = vmax.f32 %v753, 0.0
        %v822 = vmax.f32 %v758, 0.0
        %v823 = vmax.f32 %v761, 0.0
        %v824 = vmax.f32 %v766, 0.0
        %v825 = vmax.f32 %v769, 0.0
        %v826 = vmax.f32 %v774, 0.0
        %v827 = vmax.f32 %v777, 0.0
        %v828 = vmax.f32 %v782, 0.0
        %v829 = vmax.f32 %v785, 0.0
        %v830 = vmax.f32 %v790, 0.0
        %v831 = vmax.f32 %v793, 0.0
        %v832 = vmax.f32 %v798, 0.0
        %v833 = vmax.f32 %v801, 0.0
        %v834 = vmax.f32 %v806, 0.0
        %v835 = vmax.f32 %v809, 0.0
        %v836 = vld [vmem:[%s6] sm:$0x1]
        %v837 = vpack.c.bf16 %v813, %v812
        %v838 = vpack.c.bf16 %v815, %v814
        %v839 = vpack.c.bf16 %v817, %v816
        %v840 = vpack.c.bf16 %v819, %v818
        %v841 = vpack.c.bf16 %v821, %v820
        %v842 = vpack.c.bf16 %v823, %v822
        %v843 = vpack.c.bf16 %v825, %v824
        %v844 = vpack.c.bf16 %v827, %v826
        %v845 = vpack.c.bf16 %v829, %v828
        %v846 = vpack.c.bf16 %v831, %v830
        %v847 = vpack.c.bf16 %v833, %v832
        %v848 = vpack.c.bf16 %v835, %v834
        %v849 = vld [vmem:[%s5] sm:$0xf]
        %v850 = vld [vmem:[%s5 + $0x4] sm:$0xf]
        %v851 = vld [vmem:[%s5 + $0x8] sm:$0xf]
        %v852 = vld [vmem:[%s5 + $0xc] sm:$0xf]
        %v853 = vld [vmem:[%s5 + $0x10] sm:$0xf]
        %v854 = vld [vmem:[%s5 + $0x14] sm:$0xf]
        %v855 = vld [vmem:[%s5 + $0x18] sm:$0xf]
        %v856 = vld [vmem:[%s5 + $0x1c] sm:$0xf]
        %v858 = vlaneseq
        %v859 = vshrl.u32 %v858, 7
        %v860 = vsub.s32 0, %v859
        %v861 = vrot.slane %v836, %v860
        %v871 = vunpack.c.l.b16 %v849
        %v872 = vunpack.c.l.b16 %v850
        %v873 = vunpack.c.l.b16 %v851
        %v874 = vunpack.c.l.b16 %v852
        %v875 = vunpack.c.l.b16 %v853
        %v876 = vunpack.c.l.b16 %v854
        %v877 = vunpack.c.l.b16 %v855
        %v878 = vunpack.c.l.b16 %v856
        %v879 = vpack.c.b16 %v872, %v871
        %v880 = vpack.c.b16 %v874, %v873
        %v881 = vpack.c.b16 %v876, %v875
        %v882 = vpack.c.b16 %v878, %v877
        %v888 = vsel %vm646, %v837, 0
        %v891 = vsel %vm646, %v838, 0
        %v894 = vsel %vm646, %v839, 0
        %v897 = vsel %vm646, %v840, 0
        %v900 = vsel %vm646, %v841, 0
        %v903 = vsel %vm646, %v842, 0
        %v906 = vsel %vm646, %v843, 0
        %v909 = vsel %vm646, %v844, 0
        %v912 = vsel %vm646, %v845, 0
        %v915 = vsel %vm646, %v846, 0
        %v918 = vsel %vm646, %v847, 0
        %v921 = vsel %vm646, %v848, 0
        %923 = vmatprep.subr.bf16.mxu0 0
        %924 = vmatpush1.bf16.msra.mxu0 %v879
        %925 = vmatprep.subr.bf16.mxu0 0
        %926 = vmatpush1.bf16.msra.mxu0 %v880
        %927 = vmatprep.subr.bf16.mxu0 0
        %928 = vmatpush1.bf16.msra.mxu0 %v881
        %929 = vmatprep.subr.bf16.mxu0 0
        %930 = vmatpush1.bf16.msra.mxu0 %v882
        %931 = vmatprep.subr.bf16.mxu0 0
        %932 = vmatpush1.bf16.msra.mxu0 0
        %933 = vmatprep.subr.bf16.mxu0 0
        %934 = vmatpush1.bf16.msra.mxu0 0
        %935 = vmatprep.subr.bf16.mxu0 0
        %936 = vmatpush1.bf16.msra.mxu0 0
        %937 = vmatprep.subr.bf16.mxu0 0
        %938 = vmatpush1.bf16.msra.mxu0 0
        %939 = vmatprep.subr.bf16.mxu0 0
        %940 = vmatpush1.bf16.msra.mxu0 0
        %941 = vmatprep.subr.bf16.mxu0 0
        %942 = vmatpush1.bf16.msra.mxu0 0
        %943 = vmatprep.subr.bf16.mxu0 0
        %944 = vmatpush1.bf16.msra.mxu0 0
        %945 = vmatprep.subr.bf16.mxu0 0
        %946 = vmatpush1.bf16.msra.mxu0 0
        %947 = vmatprep.subr.bf16.mxu0 0
        %948 = vmatpush1.bf16.msra.mxu0 0
        %949 = vmatprep.subr.bf16.mxu0 0
        %950 = vmatpush1.bf16.msra.mxu0 0
        %951 = vmatprep.subr.bf16.mxu0 0
        %952 = vmatpush1.bf16.msra.mxu0 0
        %953 = vmatprep.subr.bf16.mxu0 0
        %954 = vmatpush1.bf16.msra.mxu0 0
        %955 = vmatprep.mubr.bf16.mxu0 0
        %956 = vmatmul.mubr.bf16.gmra.mrb[0].mxu0 %v888
        %v957 = vpop.f32.mrb[0].mxu0
        %v958 = vadd.f32 %v861, %v957
        %v959 = vpop.f32.mrb[0].mxu0
        %v960 = vpop.f32.mrb[0].mxu0
        %v961 = vadd.f32 %v861, %v960
        %v962 = vpop.f32.mrb[0].mxu0
        %963 = vmatprep.mubr.bf16.mxu0 0
        %964 = vmatmul.mubr.bf16.gmra.mrb[0].mxu0 %v891
        %v965 = vpop.f32.mrb[0].mxu0
        %v966 = vadd.f32 %v861, %v965
        %v967 = vpop.f32.mrb[0].mxu0
        %v968 = vpop.f32.mrb[0].mxu0
        %v969 = vadd.f32 %v861, %v968
        %v970 = vpop.f32.mrb[0].mxu0
        %971 = vmatprep.mubr.bf16.mxu0 0
        %972 = vmatmul.mubr.bf16.gmra.mrb[0].mxu0 %v894
        %v973 = vpop.f32.mrb[0].mxu0
        %v974 = vadd.f32 %v861, %v973
        %v975 = vpop.f32.mrb[0].mxu0
        %v976 = vpop.f32.mrb[0].mxu0
        %v977 = vadd.f32 %v861, %v976
        %v978 = vpop.f32.mrb[0].mxu0
        %979 = vmatprep.mubr.bf16.mxu0 0
        %980 = vmatmul.mubr.bf16.gmra.mrb[0].mxu0 %v897
        %v981 = vpop.f32.mrb[0].mxu0
        %v982 = vadd.f32 %v861, %v981
        %v983 = vpop.f32.mrb[0].mxu0
        %v984 = vpop.f32.mrb[0].mxu0
        %v985 = vadd.f32 %v861, %v984
        %v986 = vpop.f32.mrb[0].mxu0
        %987 = vmatprep.mubr.bf16.mxu0 0
        %988 = vmatmul.mubr.bf16.gmra.mrb[0].mxu0 %v900
        %v989 = vpop.f32.mrb[0].mxu0
        %v990 = vadd.f32 %v861, %v989
        %v991 = vpop.f32.mrb[0].mxu0
        %v992 = vpop.f32.mrb[0].mxu0
        %v993 = vadd.f32 %v861, %v992
        %v994 = vpop.f32.mrb[0].mxu0
        %995 = vmatprep.mubr.bf16.mxu0 0
        %996 = vmatmul.mubr.bf16.gmra.mrb[0].mxu0 %v903
        %v997 = vpop.f32.mrb[0].mxu0
        %v998 = vadd.f32 %v861, %v997
        %v999 = vpop.f32.mrb[0].mxu0
        %v1000 = vpop.f32.mrb[0].mxu0
        %v1001 = vadd.f32 %v861, %v1000
        %v1002 = vpop.f32.mrb[0].mxu0
        %1003 = vmatprep.mubr.bf16.mxu0 0
        %1004 = vmatmul.mubr.bf16.gmra.mrb[0].mxu0 %v906
        %v1005 = vpop.f32.mrb[0].mxu0
        %v1006 = vadd.f32 %v861, %v1005
        %v1007 = vpop.f32.mrb[0].mxu0
        %v1008 = vpop.f32.mrb[0].mxu0
        %v1009 = vadd.f32 %v861, %v1008
        %v1010 = vpop.f32.mrb[0].mxu0
        %1011 = vmatprep.mubr.bf16.mxu0 0
        %1012 = vmatmul.mubr.bf16.gmra.mrb[0].mxu0 %v909
        %v1013 = vpop.f32.mrb[0].mxu0
        %v1014 = vadd.f32 %v861, %v1013
        %v1015 = vpop.f32.mrb[0].mxu0
        %v1016 = vpop.f32.mrb[0].mxu0
        %v1017 = vadd.f32 %v861, %v1016
        %v1018 = vpop.f32.mrb[0].mxu0
        %1019 = vmatprep.mubr.bf16.mxu0 0
        %1020 = vmatmul.mubr.bf16.gmra.mrb[0].mxu0 %v912
        %v1021 = vpop.f32.mrb[0].mxu0
        %v1022 = vadd.f32 %v861, %v1021
        %v1023 = vpop.f32.mrb[0].mxu0
        %v1024 = vpop.f32.mrb[0].mxu0
        %v1025 = vadd.f32 %v861, %v1024
        %v1026 = vpop.f32.mrb[0].mxu0
        %1027 = vmatprep.mubr.bf16.mxu0 0
        %1028 = vmatmul.mubr.bf16.gmra.mrb[0].mxu0 %v915
        %v1029 = vpop.f32.mrb[0].mxu0
        %v1030 = vadd.f32 %v861, %v1029
        %v1031 = vpop.f32.mrb[0].mxu0
        %v1032 = vpop.f32.mrb[0].mxu0
        %v1033 = vadd.f32 %v861, %v1032
        %v1034 = vpop.f32.mrb[0].mxu0
        %1035 = vmatprep.mubr.bf16.mxu0 0
        %1036 = vmatmul.mubr.bf16.gmra.mrb[0].mxu0 %v918
        %v1037 = vpop.f32.mrb[0].mxu0
        %v1038 = vadd.f32 %v861, %v1037
        %v1039 = vpop.f32.mrb[0].mxu0
        %v1040 = vpop.f32.mrb[0].mxu0
        %v1041 = vadd.f32 %v861, %v1040
        %v1042 = vpop.f32.mrb[0].mxu0
        %1043 = vmatprep.mubr.bf16.mxu0 0
        %1044 = vmatmul.mubr.bf16.gmra.mrb[0].mxu0 %v921
        %v1045 = vpop.f32.mrb[0].mxu0
        %v1046 = vadd.f32 %v861, %v1045
        %v1047 = vpop.f32.mrb[0].mxu0
        %v1048 = vpop.f32.mrb[0].mxu0
        %v1049 = vadd.f32 %v861, %v1048
        %v1050 = vpop.f32.mrb[0].mxu0
        %1051 = vdwg.mxu0
        %v1052 = vmax.f32 %v958, 0.0
        %v1053 = vmax.f32 %v961, 0.0
        %v1054 = vmax.f32 %v966, 0.0
        %v1055 = vmax.f32 %v969, 0.0
        %v1056 = vmax.f32 %v974, 0.0
        %v1057 = vmax.f32 %v977, 0.0
        %v1058 = vmax.f32 %v982, 0.0
        %v1059 = vmax.f32 %v985, 0.0
        %v1060 = vmax.f32 %v990, 0.0
        %v1061 = vmax.f32 %v993, 0.0
        %v1062 = vmax.f32 %v998, 0.0
        %v1063 = vmax.f32 %v1001, 0.0
        %v1064 = vmax.f32 %v1006, 0.0
        %v1065 = vmax.f32 %v1009, 0.0
        %v1066 = vmax.f32 %v1014, 0.0
        %v1067 = vmax.f32 %v1017, 0.0
        %v1068 = vmax.f32 %v1022, 0.0
        %v1069 = vmax.f32 %v1025, 0.0
        %v1070 = vmax.f32 %v1030, 0.0
        %v1071 = vmax.f32 %v1033, 0.0
        %v1072 = vmax.f32 %v1038, 0.0
        %v1073 = vmax.f32 %v1041, 0.0
        %v1074 = vmax.f32 %v1046, 0.0
        %v1075 = vmax.f32 %v1049, 0.0
        %v1076 = vld [vmem:[#allocation2] sm:$0x1]
        %v1077 = vpack.c.bf16 %v1053, %v1052
        %v1078 = vpack.c.bf16 %v1055, %v1054
        %v1079 = vpack.c.bf16 %v1057, %v1056
        %v1080 = vpack.c.bf16 %v1059, %v1058
        %v1081 = vpack.c.bf16 %v1061, %v1060
        %v1082 = vpack.c.bf16 %v1063, %v1062
        %v1083 = vpack.c.bf16 %v1065, %v1064
        %v1084 = vpack.c.bf16 %v1067, %v1066
        %v1085 = vpack.c.bf16 %v1069, %v1068
        %v1086 = vpack.c.bf16 %v1071, %v1070
        %v1087 = vpack.c.bf16 %v1073, %v1072
        %v1088 = vpack.c.bf16 %v1075, %v1074
        %v1089 = vld [vmem:[%s7] sm:$0xf]
        %v1090 = vld [vmem:[%s7 + $0x4] sm:$0xf]
        %v1091 = vld [vmem:[%s7 + $0x8] sm:$0xf]
        %v1092 = vld [vmem:[%s7 + $0xc] sm:$0xf]
        %v1093 = vld [vmem:[%s7 + $0x10] sm:$0xf]
        %v1094 = vld [vmem:[%s7 + $0x14] sm:$0xf]
        %v1095 = vld [vmem:[%s7 + $0x18] sm:$0xf]
        %v1096 = vld [vmem:[%s7 + $0x1c] sm:$0xf]
        %v1098 = vlaneseq
        %v1099 = vshrl.u32 %v1098, 7
        %v1100 = vsub.s32 0, %v1099
        %v1101 = vrot.slane %v1076, %v1100
        %v1111 = vunpack.c.l.b16 %v1089
        %v1112 = vunpack.c.l.b16 %v1090
        %v1113 = vunpack.c.l.b16 %v1091
        %v1114 = vunpack.c.l.b16 %v1092
        %v1115 = vunpack.c.l.b16 %v1093
        %v1116 = vunpack.c.l.b16 %v1094
        %v1117 = vunpack.c.l.b16 %v1095
        %v1118 = vunpack.c.l.b16 %v1096
        %v1119 = vpack.c.b16 %v1112, %v1111
        %v1120 = vpack.c.b16 %v1114, %v1113
        %v1121 = vpack.c.b16 %v1116, %v1115
        %v1122 = vpack.c.b16 %v1118, %v1117
        %v1128 = vsel %vm646, %v1077, 0
        %v1131 = vsel %vm646, %v1078, 0
        %v1134 = vsel %vm646, %v1079, 0
        %v1137 = vsel %vm646, %v1080, 0
        %v1140 = vsel %vm646, %v1081, 0
        %v1143 = vsel %vm646, %v1082, 0
        %v1146 = vsel %vm646, %v1083, 0
        %v1149 = vsel %vm646, %v1084, 0
        %v1152 = vsel %vm646, %v1085, 0
        %v1155 = vsel %vm646, %v1086, 0
        %v1158 = vsel %vm646, %v1087, 0
        %v1161 = vsel %vm646, %v1088, 0
        %1163 = vmatprep.subr.bf16.mxu0 0
        %1164 = vmatpush1.bf16.msra.mxu0 %v1119
        %1165 = vmatprep.subr.bf16.mxu0 0
        %1166 = vmatpush1.bf16.msra.mxu0 %v1120
        %1167 = vmatprep.subr.bf16.mxu0 0
        %1168 = vmatpush1.bf16.msra.mxu0 %v1121
        %1169 = vmatprep.subr.bf16.mxu0 0
        %1170 = vmatpush1.bf16.msra.mxu0 %v1122
        %1171 = vmatprep.subr.bf16.mxu0 0
        %1172 = vmatpush1.bf16.msra.mxu0 0
        %1173 = vmatprep.subr.bf16.mxu0 0
        %1174 = vmatpush1.bf16.msra.mxu0 0
        %1175 = vmatprep.subr.bf16.mxu0 0
        %1176 = vmatpush1.bf16.msra.mxu0 0
        %1177 = vmatprep.subr.bf16.mxu0 0
        %1178 = vmatpush1.bf16.msra.mxu0 0
        %1179 = vmatprep.subr.bf16.mxu0 0
        %1180 = vmatpush1.bf16.msra.mxu0 0
        %1181 = vmatprep.subr.bf16.mxu0 0
        %1182 = vmatpush1.bf16.msra.mxu0 0
        %1183 = vmatprep.subr.bf16.mxu0 0
        %1184 = vmatpush1.bf16.msra.mxu0 0
        %1185 = vmatprep.subr.bf16.mxu0 0
        %1186 = vmatpush1.bf16.msra.mxu0 0
        %1187 = vmatprep.subr.bf16.mxu0 0
        %1188 = vmatpush1.bf16.msra.mxu0 0
        %1189 = vmatprep.subr.bf16.mxu0 0
        %1190 = vmatpush1.bf16.msra.mxu0 0
        %1191 = vmatprep.subr.bf16.mxu0 0
        %1192 = vmatpush1.bf16.msra.mxu0 0
        %1193 = vmatprep.subr.bf16.mxu0 0
        %1194 = vmatpush1.bf16.msra.mxu0 0
        %1195 = vmatprep.mubr.bf16.mxu0 0
        %1196 = vmatmul.mubr.bf16.gmra.mrb[0].mxu0 %v1128
        %v1197 = vpop.f32.mrb[0].mxu0
        %v1198 = vadd.f32 %v1101, %v1197
        %v1199 = vpop.f32.mrb[0].mxu0
        %v1200 = vpop.f32.mrb[0].mxu0
        %v1201 = vadd.f32 %v1101, %v1200
        %v1202 = vpop.f32.mrb[0].mxu0
        %1203 = vmatprep.mubr.bf16.mxu0 0
        %1204 = vmatmul.mubr.bf16.gmra.mrb[0].mxu0 %v1131
        %v1205 = vpop.f32.mrb[0].mxu0
        %v1206 = vadd.f32 %v1101, %v1205
        %v1207 = vpop.f32.mrb[0].mxu0
        %v1208 = vpop.f32.mrb[0].mxu0
        %v1209 = vadd.f32 %v1101, %v1208
        %v1210 = vpop.f32.mrb[0].mxu0
        %1211 = vmatprep.mubr.bf16.mxu0 0
        %1212 = vmatmul.mubr.bf16.gmra.mrb[0].mxu0 %v1134
        %v1213 = vpop.f32.mrb[0].mxu0
        %v1214 = vadd.f32 %v1101, %v1213
        %v1215 = vpop.f32.mrb[0].mxu0
        %v1216 = vpop.f32.mrb[0].mxu0
        %v1217 = vadd.f32 %v1101, %v1216
        %v1218 = vpop.f32.mrb[0].mxu0
        %1219 = vmatprep.mubr.bf16.mxu0 0
        %1220 = vmatmul.mubr.bf16.gmra.mrb[0].mxu0 %v1137
        %v1221 = vpop.f32.mrb[0].mxu0
        %v1222 = vadd.f32 %v1101, %v1221
        %v1223 = vpop.f32.mrb[0].mxu0
        %v1224 = vpop.f32.mrb[0].mxu0
        %v1225 = vadd.f32 %v1101, %v1224
        %v1226 = vpop.f32.mrb[0].mxu0
        %1227 = vmatprep.mubr.bf16.mxu0 0
        %1228 = vmatmul.mubr.bf16.gmra.mrb[0].mxu0 %v1140
        %v1229 = vpop.f32.mrb[0].mxu0
        %v1230 = vadd.f32 %v1101, %v1229
        %v1231 = vpop.f32.mrb[0].mxu0
        %v1232 = vpop.f32.mrb[0].mxu0
        %v1233 = vadd.f32 %v1101, %v1232
        %v1234 = vpop.f32.mrb[0].mxu0
        %1235 = vmatprep.mubr.bf16.mxu0 0
        %1236 = vmatmul.mubr.bf16.gmra.mrb[0].mxu0 %v1143
        %v1237 = vpop.f32.mrb[0].mxu0
        %v1238 = vadd.f32 %v1101, %v1237
        %v1239 = vpop.f32.mrb[0].mxu0
        %v1240 = vpop.f32.mrb[0].mxu0
        %v1241 = vadd.f32 %v1101, %v1240
        %v1242 = vpop.f32.mrb[0].mxu0
        %1243 = vmatprep.mubr.bf16.mxu0 0
        %1244 = vmatmul.mubr.bf16.gmra.mrb[0].mxu0 %v1146
        %v1245 = vpop.f32.mrb[0].mxu0
        %v1246 = vadd.f32 %v1101, %v1245
        %v1247 = vpop.f32.mrb[0].mxu0
        %v1248 = vpop.f32.mrb[0].mxu0
        %v1249 = vadd.f32 %v1101, %v1248
        %v1250 = vpop.f32.mrb[0].mxu0
        %1251 = vmatprep.mubr.bf16.mxu0 0
        %1252 = vmatmul.mubr.bf16.gmra.mrb[0].mxu0 %v1149
        %v1253 = vpop.f32.mrb[0].mxu0
        %v1254 = vadd.f32 %v1101, %v1253
        %v1255 = vpop.f32.mrb[0].mxu0
        %v1256 = vpop.f32.mrb[0].mxu0
        %v1257 = vadd.f32 %v1101, %v1256
        %v1258 = vpop.f32.mrb[0].mxu0
        %1259 = vmatprep.mubr.bf16.mxu0 0
        %1260 = vmatmul.mubr.bf16.gmra.mrb[0].mxu0 %v1152
        %v1261 = vpop.f32.mrb[0].mxu0
        %v1262 = vadd.f32 %v1101, %v1261
        %v1263 = vpop.f32.mrb[0].mxu0
        %v1264 = vpop.f32.mrb[0].mxu0
        %v1265 = vadd.f32 %v1101, %v1264
        %v1266 = vpop.f32.mrb[0].mxu0
        %1267 = vmatprep.mubr.bf16.mxu0 0
        %1268 = vmatmul.mubr.bf16.gmra.mrb[0].mxu0 %v1155
        %v1269 = vpop.f32.mrb[0].mxu0
        %v1270 = vadd.f32 %v1101, %v1269
        %v1271 = vpop.f32.mrb[0].mxu0
        %v1272 = vpop.f32.mrb[0].mxu0
        %v1273 = vadd.f32 %v1101, %v1272
        %v1274 = vpop.f32.mrb[0].mxu0
        %1275 = vmatprep.mubr.bf16.mxu0 0
        %1276 = vmatmul.mubr.bf16.gmra.mrb[0].mxu0 %v1158
        %v1277 = vpop.f32.mrb[0].mxu0
        %v1278 = vadd.f32 %v1101, %v1277
        %v1279 = vpop.f32.mrb[0].mxu0
        %v1280 = vpop.f32.mrb[0].mxu0
        %v1281 = vadd.f32 %v1101, %v1280
        %v1282 = vpop.f32.mrb[0].mxu0
        %1283 = vmatprep.mubr.bf16.mxu0 0
        %1284 = vmatmul.mubr.bf16.gmra.mrb[0].mxu0 %v1161
        %v1285 = vpop.f32.mrb[0].mxu0
        %v1286 = vadd.f32 %v1101, %v1285
        %v1287 = vpop.f32.mrb[0].mxu0
        %v1288 = vpop.f32.mrb[0].mxu0
        %v1289 = vadd.f32 %v1101, %v1288
        %v1290 = vpop.f32.mrb[0].mxu0
        %1291 = vdwg.mxu0
        %vm1292 = vcmask 7168
        %1293 = vst.msk [vmem:[%s336] sm:$0xff] %vm1292, %v1198
        %1294 = vst.msk [vmem:[%s336 + $0x8] sm:$0xff] %vm1292, %v1201
        %1295 = vst.msk [vmem:[%s336 + $0x10] sm:$0xff] %vm1292, %v1206
        %1296 = vst.msk [vmem:[%s336 + $0x18] sm:$0xff] %vm1292, %v1209
        %1297 = vst.msk [vmem:[%s336 + $0x20] sm:$0xff] %vm1292, %v1214
        %1298 = vst.msk [vmem:[%s336 + $0x28] sm:$0xff] %vm1292, %v1217
        %1299 = vst.msk [vmem:[%s336 + $0x30] sm:$0xff] %vm1292, %v1222
        %1300 = vst.msk [vmem:[%s336 + $0x38] sm:$0xff] %vm1292, %v1225
        %1301 = vst.msk [vmem:[%s336 + $0x40] sm:$0xff] %vm1292, %v1230
        %1302 = vst.msk [vmem:[%s336 + $0x48] sm:$0xff] %vm1292, %v1233
        %1303 = vst.msk [vmem:[%s336 + $0x50] sm:$0xff] %vm1292, %v1238
        %1304 = vst.msk [vmem:[%s336 + $0x58] sm:$0xff] %vm1292, %v1241
        %1305 = vst.msk [vmem:[%s336 + $0x60] sm:$0xff] %vm1292, %v1246
        %1306 = vst.msk [vmem:[%s336 + $0x68] sm:$0xff] %vm1292, %v1249
        %1307 = vst.msk [vmem:[%s336 + $0x70] sm:$0xff] %vm1292, %v1254
        %1308 = vst.msk [vmem:[%s336 + $0x78] sm:$0xff] %vm1292, %v1257
        %1309 = vst.msk [vmem:[%s336 + $0x80] sm:$0xff] %vm1292, %v1262
        %1310 = vst.msk [vmem:[%s336 + $0x88] sm:$0xff] %vm1292, %v1265
        %1311 = vst.msk [vmem:[%s336 + $0x90] sm:$0xff] %vm1292, %v1270
        %1312 = vst.msk [vmem:[%s336 + $0x98] sm:$0xff] %vm1292, %v1273
        %1313 = vst.msk [vmem:[%s336 + $0xa0] sm:$0xff] %vm1292, %v1278
        %1314 = vst.msk [vmem:[%s336 + $0xa8] sm:$0xff] %vm1292, %v1281
        %1315 = vst.msk [vmem:[%s336 + $0xb0] sm:$0xff] %vm1292, %v1286
        %1316 = vst.msk [vmem:[%s336 + $0xb8] sm:$0xff] %vm1292, %v1289
        %s1317 = sand.u32 %s224, 1
        %s1318 = sand.u32 %s224, 1
        %s1319 = smul.addr %s1318, 192
        %s1320 = scalar_lea.vmem [#allocation3], %s1319
        // Predicated region
        $region57: #{tpu_custom_call.1} parent=55 // pred_check
          %p1321 = pneg %p234
        $region58: #{tpu_custom_call.1} parent=55 // pred_check_branch
          %1323 = sbr.rel (%p1321) target = $region60
        $region59: #{tpu_custom_call.1} parent=55 // pred_region
          %s1324 = smul.u32 24, %s22
          %s1325 = ssub.s32 64, %s1324
          %p1326 = scmp.lt.s32.totalorder %s1325, 24
          %s1327 = scalar_select %p1326, %s1325, 24
          %s1328 = smul.u32 128, %s1327
          %p1329 = scmp.ne.s32.totalorder 0, %s1328
          %s1330 = smul.addr %s1324, 8
          %s1331 = scalar_lea.vmem %s9, %s1330
          // Predicated region
          $region61: #{tpu_custom_call.1} parent=59 // pred_check
            %p1332 = pneg %p1329
          $region62: #{tpu_custom_call.1} parent=59 // pred_check_branch
            %1334 = sbr.rel (%p1332) target = $region64
          $region63: #{tpu_custom_call.1} parent=59 // pred_region
            // Predicated region
            $region65: #{tpu_custom_call.1} parent=63 // pred_check
              _
            $region66: #{tpu_custom_call.1} parent=63 // pred_check_branch
              %1336 = sbr.rel (0) target = $region68
            $region67: #{tpu_custom_call.1} parent=63 // pred_region
              // Predicated region
              $region87: #{tpu_custom_call.1} parent=67 // pred_check
                _
              $region88: #{tpu_custom_call.1} parent=67 // pred_check_branch
                %1432 = sbr.rel (0) target = $region90
              $region89: #{tpu_custom_call.1} parent=67 // pred_region
                %s1433 = sdiv.u32.pop %s1327, 24
                %s1434 = srem.u32.pop %s1327, 24
                // While loop
                $region91: #{tpu_custom_call.1} parent=89 // loop_pre_header
                  _
                $region92: #{tpu_custom_call.1} parent=89 // loop_header
                  %s1436 = sphi 0, %s1438
                  %p1437 = scmp.ge.s32.totalorder %s1436, %s1433
                  %s1441 = sphi 0, %s1494
                  %s1442 = sphi %s1320, %s1497
                  %s1443 = sphi %s1331, %s1498
                $region93: #{tpu_custom_call.1} parent=89 // loop_header_branch
                  %1440 = sbr.rel (%p1437) target = $region97
                $region94: #{tpu_custom_call.1} parent=89 // loop_body
                  %v1444 = vld [vmem:[%s1442] sm:$0xff]
                  %1445 = vst [vmem:[%s1443] sm:$0xff] %v1444
                  %v1446 = vld [vmem:[%s1442 + $0x8] sm:$0xff]
                  %1447 = vst [vmem:[%s1443 + $0x8] sm:$0xff] %v1446
                  %v1448 = vld [vmem:[%s1442 + $0x10] sm:$0xff]
                  %1449 = vst [vmem:[%s1443 + $0x10] sm:$0xff] %v1448
                  %v1450 = vld [vmem:[%s1442 + $0x18] sm:$0xff]
                  %1451 = vst [vmem:[%s1443 + $0x18] sm:$0xff] %v1450
                  %v1452 = vld [vmem:[%s1442 + $0x20] sm:$0xff]
                  %1453 = vst [vmem:[%s1443 + $0x20] sm:$0xff] %v1452
                  %v1454 = vld [vmem:[%s1442 + $0x28] sm:$0xff]
                  %1455 = vst [vmem:[%s1443 + $0x28] sm:$0xff] %v1454
                  %v1456 = vld [vmem:[%s1442 + $0x30] sm:$0xff]
                  %1457 = vst [vmem:[%s1443 + $0x30] sm:$0xff] %v1456
                  %v1458 = vld [vmem:[%s1442 + $0x38] sm:$0xff]
                  %1459 = vst [vmem:[%s1443 + $0x38] sm:$0xff] %v1458
                  %v1460 = vld [vmem:[%s1442 + $0x40] sm:$0xff]
                  %1461 = vst [vmem:[%s1443 + $0x40] sm:$0xff] %v1460
                  %v1462 = vld [vmem:[%s1442 + $0x48] sm:$0xff]
                  %1463 = vst [vmem:[%s1443 + $0x48] sm:$0xff] %v1462
                  %v1464 = vld [vmem:[%s1442 + $0x50] sm:$0xff]
                  %1465 = vst [vmem:[%s1443 + $0x50] sm:$0xff] %v1464
                  %v1466 = vld [vmem:[%s1442 + $0x58] sm:$0xff]
                  %1467 = vst [vmem:[%s1443 + $0x58] sm:$0xff] %v1466
                  %v1468 = vld [vmem:[%s1442 + $0x60] sm:$0xff]
                  %1469 = vst [vmem:[%s1443 + $0x60] sm:$0xff] %v1468
                  %v1470 = vld [vmem:[%s1442 + $0x68] sm:$0xff]
                  %1471 = vst [vmem:[%s1443 + $0x68] sm:$0xff] %v1470
                  %v1472 = vld [vmem:[%s1442 + $0x70] sm:$0xff]
                  %1473 = vst [vmem:[%s1443 + $0x70] sm:$0xff] %v1472
                  %v1474 = vld [vmem:[%s1442 + $0x78] sm:$0xff]
                  %1475 = vst [vmem:[%s1443 + $0x78] sm:$0xff] %v1474
                  %v1476 = vld [vmem:[%s1442 + $0x80] sm:$0xff]
                  %1477 = vst [vmem:[%s1443 + $0x80] sm:$0xff] %v1476
                  %v1478 = vld [vmem:[%s1442 + $0x88] sm:$0xff]
                  %1479 = vst [vmem:[%s1443 + $0x88] sm:$0xff] %v1478
                  %v1480 = vld [vmem:[%s1442 + $0x90] sm:$0xff]
                  %1481 = vst [vmem:[%s1443 + $0x90] sm:$0xff] %v1480
                  %v1482 = vld [vmem:[%s1442 + $0x98] sm:$0xff]
                  %1483 = vst [vmem:[%s1443 + $0x98] sm:$0xff] %v1482
                  %v1484 = vld [vmem:[%s1442 + $0xa0] sm:$0xff]
                  %1485 = vst [vmem:[%s1443 + $0xa0] sm:$0xff] %v1484
                  %v1486 = vld [vmem:[%s1442 + $0xa8] sm:$0xff]
                  %1487 = vst [vmem:[%s1443 + $0xa8] sm:$0xff] %v1486
                  %v1488 = vld [vmem:[%s1442 + $0xb0] sm:$0xff]
                  %1489 = vst [vmem:[%s1443 + $0xb0] sm:$0xff] %v1488
                  %v1490 = vld [vmem:[%s1442 + $0xb8] sm:$0xff]
                  %1491 = vst [vmem:[%s1443 + $0xb8] sm:$0xff] %v1490
                  %s1492 = sadd.s32 1, %s1441
                  %p1493 = scmp.ge.s32.totalorder %s1492, %s1433
                  %s1494 = scalar_select %p1493, 0, %s1492
                  %s1495 = smul.u32 %s1494, 192
                  %s1496 = smul.u32 %s1494, 192
                  %s1497 = scalar_lea.vmem %s1320, %s1495 [#allocation3]
                  %s1498 = scalar_lea.vmem %s1331, %s1496
                $region95: #{tpu_custom_call.1} parent=89 // loop_footer
                  %s1438 = sadd.s32 %s1436, 1
                $region96: #{tpu_custom_call.1} parent=89 // loop_footer_branch
                  %1435 = sbr.rel target = $region92
                $region97: #{tpu_custom_call.1} parent=89 // loop_exit
                  _
                %s1499 = sdiv.u32.pop %s1327, 24
                %s1500 = srem.u32.pop %s1327, 24
                %s1501 = smul.u32 %s1499, 24
                %s1502 = smul.u32 8, %s1501
                %s1503 = scalar_lea.vmem %s1320, %s1502 [#allocation3]
                %s1504 = smul.u32 8, %s1501
                %s1505 = scalar_lea.vmem %s1331, %s1504
                // While loop
                $region98: #{tpu_custom_call.1} parent=89 // loop_pre_header
                  _
                $region99: #{tpu_custom_call.1} parent=89 // loop_header
                  %s1507 = sphi 0, %s1509
                  %p1508 = scmp.ge.s32.totalorder %s1507, %s1500
                  %s1512 = sphi 0, %s1519
                  %s1513 = sphi %s1503, %s1522
                  %s1514 = sphi %s1505, %s1523
                $region100: #{tpu_custom_call.1} parent=89 // loop_header_branch
                  %1511 = sbr.rel (%p1508) target = $region104
                $region101: #{tpu_custom_call.1} parent=89 // loop_body
                  %v1515 = vld [vmem:[%s1513] sm:$0xff]
                  %1516 = vst [vmem:[%s1514] sm:$0xff] %v1515
                  %s1517 = sadd.s32 1, %s1512
                  %p1518 = scmp.ge.s32.totalorder %s1517, %s1500
                  %s1519 = scalar_select %p1518, 0, %s1517
                  %s1520 = smul.u32 %s1519, 8
                  %s1521 = smul.u32 %s1519, 8
                  %s1522 = scalar_lea.vmem %s1503, %s1520 [#allocation3]
                  %s1523 = scalar_lea.vmem %s1505, %s1521
                $region102: #{tpu_custom_call.1} parent=89 // loop_footer
                  %s1509 = sadd.s32 %s1507, 1
                $region103: #{tpu_custom_call.1} parent=89 // loop_footer_branch
                  %1506 = sbr.rel target = $region99
                $region104: #{tpu_custom_call.1} parent=89 // loop_exit
                  _
              $region90: #{tpu_custom_call.1} parent=67 // pred_fallthru
                _
              // Predicated region
              $region105: #{tpu_custom_call.1} parent=67 // pred_check
                _
              $region106: #{tpu_custom_call.1} parent=67 // pred_check_branch
                %1525 = sbr.rel target = $region108
              $region107: #{tpu_custom_call.1} parent=67 // pred_region
                _
              $region108: #{tpu_custom_call.1} parent=67 // pred_fallthru
                _
            $region68: #{tpu_custom_call.1} parent=63 // pred_fallthru
              _
            // Predicated region
            $region69: #{tpu_custom_call.1} parent=63 // pred_check
              _
            $region70: #{tpu_custom_call.1} parent=63 // pred_check_branch
              %1338 = sbr.rel target = $region72
            $region71: #{tpu_custom_call.1} parent=63 // pred_region
              %s1340 = sdiv.u32.pop %s1327, 24
              %s1341 = srem.u32.pop %s1327, 24
              // While loop
              $region73: #{tpu_custom_call.1} parent=71 // loop_pre_header
                _
              $region74: #{tpu_custom_call.1} parent=71 // loop_header
                %s1343 = sphi 0, %s1345
                %p1344 = scmp.ge.s32.totalorder %s1343, %s1340
                %s1348 = sphi 0, %s1401
                %s1349 = sphi %s1320, %s1404
                %s1350 = sphi %s1331, %s1405
              $region75: #{tpu_custom_call.1} parent=71 // loop_header_branch
                %1347 = sbr.rel (%p1344) target = $region79
              $region76: #{tpu_custom_call.1} parent=71 // loop_body
                %v1351 = vld [vmem:[%s1349] sm:$0xff]
                %1352 = vst [vmem:[%s1350] sm:$0xff] %v1351
                %v1353 = vld [vmem:[%s1349 + $0x8] sm:$0xff]
                %1354 = vst [vmem:[%s1350 + $0x8] sm:$0xff] %v1353
                %v1355 = vld [vmem:[%s1349 + $0x10] sm:$0xff]
                %1356 = vst [vmem:[%s1350 + $0x10] sm:$0xff] %v1355
                %v1357 = vld [vmem:[%s1349 + $0x18] sm:$0xff]
                %1358 = vst [vmem:[%s1350 + $0x18] sm:$0xff] %v1357
                %v1359 = vld [vmem:[%s1349 + $0x20] sm:$0xff]
                %1360 = vst [vmem:[%s1350 + $0x20] sm:$0xff] %v1359
                %v1361 = vld [vmem:[%s1349 + $0x28] sm:$0xff]
                %1362 = vst [vmem:[%s1350 + $0x28] sm:$0xff] %v1361
                %v1363 = vld [vmem:[%s1349 + $0x30] sm:$0xff]
                %1364 = vst [vmem:[%s1350 + $0x30] sm:$0xff] %v1363
                %v1365 = vld [vmem:[%s1349 + $0x38] sm:$0xff]
                %1366 = vst [vmem:[%s1350 + $0x38] sm:$0xff] %v1365
                %v1367 = vld [vmem:[%s1349 + $0x40] sm:$0xff]
                %1368 = vst [vmem:[%s1350 + $0x40] sm:$0xff] %v1367
                %v1369 = vld [vmem:[%s1349 + $0x48] sm:$0xff]
                %1370 = vst [vmem:[%s1350 + $0x48] sm:$0xff] %v1369
                %v1371 = vld [vmem:[%s1349 + $0x50] sm:$0xff]
                %1372 = vst [vmem:[%s1350 + $0x50] sm:$0xff] %v1371
                %v1373 = vld [vmem:[%s1349 + $0x58] sm:$0xff]
                %1374 = vst [vmem:[%s1350 + $0x58] sm:$0xff] %v1373
                %v1375 = vld [vmem:[%s1349 + $0x60] sm:$0xff]
                %1376 = vst [vmem:[%s1350 + $0x60] sm:$0xff] %v1375
                %v1377 = vld [vmem:[%s1349 + $0x68] sm:$0xff]
                %1378 = vst [vmem:[%s1350 + $0x68] sm:$0xff] %v1377
                %v1379 = vld [vmem:[%s1349 + $0x70] sm:$0xff]
                %1380 = vst [vmem:[%s1350 + $0x70] sm:$0xff] %v1379
                %v1381 = vld [vmem:[%s1349 + $0x78] sm:$0xff]
                %1382 = vst [vmem:[%s1350 + $0x78] sm:$0xff] %v1381
                %v1383 = vld [vmem:[%s1349 + $0x80] sm:$0xff]
                %1384 = vst [vmem:[%s1350 + $0x80] sm:$0xff] %v1383
                %v1385 = vld [vmem:[%s1349 + $0x88] sm:$0xff]
                %1386 = vst [vmem:[%s1350 + $0x88] sm:$0xff] %v1385
                %v1387 = vld [vmem:[%s1349 + $0x90] sm:$0xff]
                %1388 = vst [vmem:[%s1350 + $0x90] sm:$0xff] %v1387
                %v1389 = vld [vmem:[%s1349 + $0x98] sm:$0xff]
                %1390 = vst [vmem:[%s1350 + $0x98] sm:$0xff] %v1389
                %v1391 = vld [vmem:[%s1349 + $0xa0] sm:$0xff]
                %1392 = vst [vmem:[%s1350 + $0xa0] sm:$0xff] %v1391
                %v1393 = vld [vmem:[%s1349 + $0xa8] sm:$0xff]
                %1394 = vst [vmem:[%s1350 + $0xa8] sm:$0xff] %v1393
                %v1395 = vld [vmem:[%s1349 + $0xb0] sm:$0xff]
                %1396 = vst [vmem:[%s1350 + $0xb0] sm:$0xff] %v1395
                %v1397 = vld [vmem:[%s1349 + $0xb8] sm:$0xff]
                %1398 = vst [vmem:[%s1350 + $0xb8] sm:$0xff] %v1397
                %s1399 = sadd.s32 1, %s1348
                %p1400 = scmp.ge.s32.totalorder %s1399, %s1340
                %s1401 = scalar_select %p1400, 0, %s1399
                %s1402 = smul.u32 %s1401, 192
                %s1403 = smul.u32 %s1401, 192
                %s1404 = scalar_lea.vmem %s1320, %s1402 [#allocation3]
                %s1405 = scalar_lea.vmem %s1331, %s1403
              $region77: #{tpu_custom_call.1} parent=71 // loop_footer
                %s1345 = sadd.s32 %s1343, 1
              $region78: #{tpu_custom_call.1} parent=71 // loop_footer_branch
                %1342 = sbr.rel target = $region74
              $region79: #{tpu_custom_call.1} parent=71 // loop_exit
                _
              %s1406 = sdiv.u32.pop %s1327, 24
              %s1407 = srem.u32.pop %s1327, 24
              %s1408 = smul.u32 %s1406, 24
              %s1409 = smul.u32 8, %s1408
              %s1410 = scalar_lea.vmem %s1320, %s1409 [#allocation3]
              %s1411 = smul.u32 8, %s1408
              %s1412 = scalar_lea.vmem %s1331, %s1411
              // While loop
              $region80: #{tpu_custom_call.1} parent=71 // loop_pre_header
                _
              $region81: #{tpu_custom_call.1} parent=71 // loop_header
                %s1414 = sphi 0, %s1416
                %p1415 = scmp.ge.s32.totalorder %s1414, %s1407
                %s1419 = sphi 0, %s1426
                %s1420 = sphi %s1410, %s1429
                %s1421 = sphi %s1412, %s1430
              $region82: #{tpu_custom_call.1} parent=71 // loop_header_branch
                %1418 = sbr.rel (%p1415) target = $region86
              $region83: #{tpu_custom_call.1} parent=71 // loop_body
                %v1422 = vld [vmem:[%s1420] sm:$0xff]
                %1423 = vst [vmem:[%s1421] sm:$0xff] %v1422
                %s1424 = sadd.s32 1, %s1419
                %p1425 = scmp.ge.s32.totalorder %s1424, %s1407
                %s1426 = scalar_select %p1425, 0, %s1424
                %s1427 = smul.u32 %s1426, 8
                %s1428 = smul.u32 %s1426, 8
                %s1429 = scalar_lea.vmem %s1410, %s1427 [#allocation3]
                %s1430 = scalar_lea.vmem %s1412, %s1428
              $region84: #{tpu_custom_call.1} parent=71 // loop_footer
                %s1416 = sadd.s32 %s1414, 1
              $region85: #{tpu_custom_call.1} parent=71 // loop_footer_branch
                %1413 = sbr.rel target = $region81
              $region86: #{tpu_custom_call.1} parent=71 // loop_exit
                _
            $region72: #{tpu_custom_call.1} parent=63 // pred_fallthru
              _
          $region64: #{tpu_custom_call.1} parent=59 // pred_fallthru
            _
          %1526 = vnop
        $region60: #{tpu_custom_call.1} parent=55 // pred_fallthru
          _
      $region56: #{tpu_custom_call.1} parent=5 // pred_fallthru
        _
      %p1527 = scmp.le.s32.totalorder 2, %s17
      // Predicated region
      $region109: #{tpu_custom_call.1} parent=5 // pred_check
        %p1528 = pneg %p1527
      $region110: #{tpu_custom_call.1} parent=5 // pred_check_branch
        %1530 = sbr.rel (%p1528) target = $region112
      $region111: #{tpu_custom_call.1} parent=5 // pred_region
        %s1531 = ssub.s32 %s17, 2
        // Predicated region
        $region113: #{tpu_custom_call.1} parent=111 // pred_check
          %p1532 = pneg %p240
        $region114: #{tpu_custom_call.1} parent=111 // pred_check_branch
          %1534 = sbr.rel (%p1532) target = $region116
        $region115: #{tpu_custom_call.1} parent=111 // pred_region
          %s1535 = sand.u32 %s225, 1
          %s1536 = sand.u32 %s225, 1
          %s1537 = smul.addr %s1536, 192
          %s1538 = scalar_lea.vmem [#allocation3], %s1537
        $region116: #{tpu_custom_call.1} parent=111 // pred_fallthru
          _
      $region112: #{tpu_custom_call.1} parent=5 // pred_fallthru
        _
    $region6: #{tpu_custom_call.1} parent=1 // loop_footer
      %s21 = sadd.s32 1, %s17
    $region7: #{tpu_custom_call.1} parent=1 // loop_footer_branch
      %16 = sbr.rel target = $region3
    $region8: #{tpu_custom_call.1} parent=1 // loop_exit
      _

</llo_original>
